<compile_context>
chip_gen: v7x
topology: tpu7x:2x2x1
jax: 0.10.0
libtpu: 0.0.40
codegen_flags: <defaults>
</compile_context>

<pallas_src>
import functools

import jax
import jax.numpy as jnp
from jax import lax
from jax.experimental import pallas as pl
from jax.experimental.pallas import tpu as pltpu


# ----------------------------------------------------------------------------
# Pallas kernel: fused (batched) matmul + bias + activation
# ----------------------------------------------------------------------------
def _fused_matmul_kernel(x_ref, w_ref, b_ref, o_ref, *, act):
    # x_ref: (TM, K) bf16   w_ref: (K, Cout) bf16   b_ref: (1, Cout) f32
    acc = jnp.dot(x_ref[...], w_ref[...], preferred_element_type=jnp.float32)
    acc = acc + b_ref[...]
    if act == "relu":
        acc = jnp.maximum(acc, 0.0)
    elif act == "sigmoid":
        # exp and the approximate reciprocal both run on the EUP slot.
        acc = pl.reciprocal(1.0 + jnp.exp(-acc), approx=True)
    o_ref[...] = acc


def _choose_tm(m, g):
    """Largest M-tile that divides M, is a multiple of 8 (capped at 512) and —
    when the batch/grid dim g is 1 — still yields >= 2 grid steps so both v7x
    TensorCores get work."""
    if m <= 8 or m % 8 != 0:
        return m
    cap = 512
    if g == 1:
        cap = min(cap, max(8, m // 2))
    tm = min(m, (cap // 8) * 8)
    while m % tm != 0:
        tm -= 8
    return tm


def fused_matmul_bias_act(patches, w_mat, bias, act):
    """out[g] = act(patches[g] @ w_mat[g] + bias) for every batch slice g.

    patches: (G, M, K) bf16, w_mat: (G, K, Cout) bf16, bias: (Cout,) f32.
    Returns (G, M, Cout) f32.  No padding anywhere: K / Cout blocks use the
    full array extents and the M tile is a multiple of 8.
    """
    g, m, k = patches.shape
    cout = w_mat.shape[-1]
    tm = _choose_tm(m, g)
    grid = (g, m // tm)
    bias2d = bias.reshape(1, cout).astype(jnp.float32)

    cost = pl.CostEstimate(
        flops=2 * g * m * k * cout,
        transcendentals=(g * m * cout) if act == "sigmoid" else 0,
        bytes_accessed=(patches.size * patches.dtype.itemsize
                        + w_mat.size * w_mat.dtype.itemsize
                        + bias2d.size * 4
                        + g * m * cout * 4),
    )

    return pl.pallas_call(
        functools.partial(_fused_matmul_kernel, act=act),
        out_shape=jax.ShapeDtypeStruct((g, m, cout), jnp.float32),
        grid_spec=pltpu.PrefetchScalarGridSpec(
            num_scalar_prefetch=0,
            grid=grid,
            in_specs=[
                pl.BlockSpec((None, tm, k), lambda gi, mi: (gi, mi, 0)),
                pl.BlockSpec((None, k, cout), lambda gi, mi: (gi, 0, 0)),
                pl.BlockSpec((1, cout), lambda gi, mi: (0, 0)),
            ],
            out_specs=pl.BlockSpec((None, tm, cout), lambda gi, mi: (gi, mi, 0)),
        ),
        compiler_params=pltpu.CompilerParams(
            dimension_semantics=("parallel", "parallel")),
        cost_estimate=cost,
    )(patches, w_mat, bias2d)


# ----------------------------------------------------------------------------
# Conv3d (stride 2) : im2col glue + fused Pallas matmul
# ----------------------------------------------------------------------------
def conv3d_s2(x, w, b, act):
    """x: (N, D, H, W, Cin) f32; w: (Cout, Cin, 3, 3, 3) [PyTorch Conv3d layout].
    stride=2, padding=1."""
    n, d, h, wd, cin = x.shape
    cout = w.shape[0]
    do, ho, wo = (d - 1) // 2 + 1, (h - 1) // 2 + 1, (wd - 1) // 2 + 1
    xp = jnp.pad(x, ((0, 0), (1, 1), (1, 1), (1, 1), (0, 0))).astype(jnp.bfloat16)
    taps = []
    for kd in range(3):
        for kh in range(3):
            for kw in range(3):
                taps.append(xp[:,
                               kd:kd + 2 * do - 1:2,
                               kh:kh + 2 * ho - 1:2,
                               kw:kw + 2 * wo - 1:2, :])
    patches = jnp.concatenate(taps, axis=-1)           # (N, Do, Ho, Wo, 27*Cin)
    patches = patches.reshape(1, n * do * ho * wo, 27 * cin)
    # w_mat[(kd,kh,kw,cin), cout] = w[cout, cin, kd, kh, kw]
    w_mat = jnp.transpose(w, (2, 3, 4, 1, 0)).reshape(1, 27 * cin, cout)
    out = fused_matmul_bias_act(patches, w_mat.astype(jnp.bfloat16), b, act)
    return out.reshape(n, do, ho, wo, cout)


# ----------------------------------------------------------------------------
# ConvTranspose3d (stride 2) : 8-parity sub-pixel decomposition + one batched
# fused Pallas matmul
# ----------------------------------------------------------------------------
def conv_transpose3d_s2(x, w, b, act):
    """x: (N, D, H, W, Cin) f32; w: (Cin, Cout, 3, 3, 3) [PyTorch ConvTranspose3d].
    stride=2, padding=1, output_padding=1 -> output spatial = 2 * input spatial.

    Per dimension, output 2j (even parity) only gets kernel tap k=1 from x[j];
    output 2j+1 (odd parity) gets k=0 from x[j+1] and k=2 from x[j].  Each of
    the 8 output parities is therefore a stride-1 conv with <= 8 taps
    (K <= 8*Cin); all 8 run as one batched matmul and are interleaved after."""
    n, d, h, wd, cin = x.shape
    cout = w.shape[1]
    m = n * d * h * wd
    kmax = 8 * cin

    xp = jnp.pad(x, ((0, 0), (0, 1), (0, 1), (0, 1), (0, 0))).astype(jnp.bfloat16)
    wf = w.astype(jnp.float32)

    def dim_taps(p):
        # (kernel index, input offset) pairs feeding output parity p.
        return [(1, 0)] if p == 0 else [(0, 1), (2, 0)]

    pats, wmats = [], []
    for pd in range(2):
        for ph in range(2):
            for pw in range(2):
                slabs, rows = [], []
                for kd, od in dim_taps(pd):
                    for kh, oh in dim_taps(ph):
                        for kw, ow in dim_taps(pw):
                            slabs.append(xp[:, od:od + d, oh:oh + h, ow:ow + wd, :])
                            rows.append(wf[:, :, kd, kh, kw])        # (Cin, Cout)
                pat = jnp.concatenate(slabs, axis=-1).reshape(m, -1)
                wm = jnp.concatenate(rows, axis=0)                   # (T*Cin, Cout)
                kp = wm.shape[0]
                pats.append(jnp.pad(pat, ((0, 0), (0, kmax - kp))))
                wmats.append(jnp.pad(wm, ((0, kmax - kp), (0, 0))))
    patches = jnp.stack(pats, axis=0)                                # (8, M, Kmax)
    w_mat = jnp.stack(wmats, axis=0).astype(jnp.bfloat16)            # (8, Kmax, Cout)

    y = fused_matmul_bias_act(patches, w_mat, b, act)                # (8, M, Cout)
    y = y.reshape(2, 2, 2, n, d, h, wd, cout)
    y = jnp.transpose(y, (3, 4, 0, 5, 1, 6, 2, 7))                   # (n,d,2,h,2,w,2,c)
    return y.reshape(n, 2 * d, 2 * h, 2 * wd, cout)


# ----------------------------------------------------------------------------
# Model: parameters + forward
# ----------------------------------------------------------------------------
def init_params(key):
    keys = jax.random.split(key, 12)

    def u(k, shape, fan_in):
        bound = 1.0 / float(fan_in) ** 0.5
        return jax.random.uniform(k, shape, jnp.float32, -bound, bound)

    return {
        # encoder: Conv3d weights are (Cout, Cin, 3, 3, 3)
        "enc1_w": u(keys[0], (8, 1, 3, 3, 3), 1 * 27),
        "enc1_b": u(keys[1], (8,), 1 * 27),
        "enc2_w": u(keys[2], (4, 8, 3, 3, 3), 8 * 27),
        "enc2_b": u(keys[3], (4,), 8 * 27),
        "enc3_w": u(keys[4], (4, 4, 3, 3, 3), 4 * 27),
        "enc3_b": u(keys[5], (4,), 4 * 27),
        # decoder: ConvTranspose3d weights are (Cin, Cout, 3, 3, 3)
        "dec1_w": u(keys[6], (4, 4, 3, 3, 3), 4 * 27),
        "dec1_b": u(keys[7], (4,), 4 * 27),
        "dec2_w": u(keys[8], (4, 8, 3, 3, 3), 8 * 27),
        "dec2_b": u(keys[9], (8,), 8 * 27),
        "dec3_w": u(keys[10], (8, 1, 3, 3, 3), 8 * 27),
        "dec3_b": u(keys[11], (1,), 8 * 27),
    }


def autoencoder3d_forward(params, x_ncdhw):
    x = jnp.transpose(x_ncdhw, (0, 2, 3, 4, 1))  # NCDHW -> NDHWC
    # encoder
    x = conv3d_s2(x, params["enc1_w"], params["enc1_b"], "relu")
    x = conv3d_s2(x, params["enc2_w"], params["enc2_b"], "relu")
    x = conv3d_s2(x, params["enc3_w"], params["enc3_b"], "relu")
    # decoder
    x = conv_transpose3d_s2(x, params["dec1_w"], params["dec1_b"], "relu")
    x = conv_transpose3d_s2(x, params["dec2_w"], params["dec2_b"], "relu")
    x = conv_transpose3d_s2(x, params["dec3_w"], params["dec3_b"], "sigmoid")
    return jnp.transpose(x, (0, 4, 1, 2, 3))  # NDHWC -> NCDHW


# ----------------------------------------------------------------------------
# Pure-JAX reference (lax conv) for validation
# ----------------------------------------------------------------------------
def _ref_forward(params, x, *, matmul_dtype=jnp.float32):
    dn = ("NCDHW", "OIDHW", "NCDHW")

    def conv(x, w, b):
        y = lax.conv_general_dilated(
            x.astype(matmul_dtype), w.astype(matmul_dtype),
            (2, 2, 2), [(1, 1)] * 3, dimension_numbers=dn,
            preferred_element_type=jnp.float32)
        return y + b.reshape(1, -1, 1, 1, 1)

    def deconv(x, w, b):
        w_conv = jnp.flip(jnp.transpose(w, (1, 0, 2, 3, 4)), axis=(2, 3, 4))
        y = lax.conv_general_dilated(
            x.astype(matmul_dtype), w_conv.astype(matmul_dtype),
            (1, 1, 1), [(1, 2)] * 3, lhs_dilation=(2, 2, 2),
            dimension_numbers=dn, preferred_element_type=jnp.float32)
        return y + b.reshape(1, -1, 1, 1, 1)

    x = jax.nn.relu(conv(x, params["enc1_w"], params["enc1_b"]))
    x = jax.nn.relu(conv(x, params["enc2_w"], params["enc2_b"]))
    x = jax.nn.relu(conv(x, params["enc3_w"], params["enc3_b"]))
    x = jax.nn.relu(deconv(x, params["dec1_w"], params["dec1_b"]))
    x = jax.nn.relu(deconv(x, params["dec2_w"], params["dec2_b"]))
    x = jax.nn.sigmoid(deconv(x, params["dec3_w"], params["dec3_b"]))
    return x


if __name__ == "__main__":
    depth, height, width = 8, 16, 16
    key = jax.random.PRNGKey(0)
    pkey, xkey = jax.random.split(key)
    params = init_params(pkey)
    x = jax.random.uniform(xkey, (2, 1, depth, height, width), jnp.float32)

    fwd = jax.jit(autoencoder3d_forward)
    out = jax.block_until_ready(fwd(params, x))
    assert out.shape == (2, 1, depth, height, width), out.shape
    assert bool(jnp.all(jnp.isfinite(out)))

    # Matched-precision reference (bf16 matmul inputs, f32 accumulation), same
    # per-layer rounding as the kernel path.
    ref_matched = _ref_forward(params, x, matmul_dtype=jnp.bfloat16)
    err_matched = float(jnp.max(jnp.abs(out - ref_matched)))
    # Full-f32 reference as a loose sanity bound (kernel intentionally uses
    # bf16 MXU inputs per the perf review).
    ref_f32 = _ref_forward(params, x, matmul_dtype=jnp.float32)
    err_f32 = float(jnp.max(jnp.abs(out - ref_f32)))

    assert err_matched < 5e-3, f"mismatch vs matched-precision ref: {err_matched}"
    assert err_f32 < 3e-2, f"mismatch vs f32 ref: {err_f32}"

    print("KERNEL_OK")
</pallas_src>

<mosaic_0001>
module attributes {stable_mosaic.version = 11 : i64} {
  func.func @_fused_matmul_kernel(%arg0: i32, %arg1: i32, %arg2: memref<1x256x27xbf16, #tpu.memory_space<vmem>>, %arg3: memref<1x27x8xbf16, #tpu.memory_space<vmem>>, %arg4: memref<1x8xf32, #tpu.memory_space<vmem>>, %arg5: memref<1x256x8xf32, #tpu.memory_space<vmem>>) attributes {dimension_semantics = [#tpu.dimension_semantics<parallel>, #tpu.dimension_semantics<parallel>], iteration_bounds = array<i64: 1, 2>, scalar_prefetch = 0 : i64, scratch_operands = 0 : i64, tpu.core_type = #tpu.core_type<tc>, window_params = [{transform_indices = @transform_0, window_bounds = array<i64: 1, 256, 27>}, {transform_indices = @transform_1, window_bounds = array<i64: 1, 27, 8>}, {pipeline_mode = #tpu.pipeline_mode<synchronous>, transform_indices = @transform_2, window_bounds = array<i64: 1, 8>}, {transform_indices = @transform_3, window_bounds = array<i64: 1, 256, 8>}]} {
    %c0 = arith.constant 0 : index
    %c0_0 = arith.constant 0 : index
    %c0_1 = arith.constant 0 : index
    %0 = vector.load %arg2[%c0, %c0_0, %c0_1] : memref<1x256x27xbf16, #tpu.memory_space<vmem>>, vector<1x256x27xbf16>
    %1 = vector.shape_cast %0 : vector<1x256x27xbf16> to vector<256x27xbf16>
    %c0_2 = arith.constant 0 : index
    %c0_3 = arith.constant 0 : index
    %c0_4 = arith.constant 0 : index
    %2 = vector.load %arg3[%c0_2, %c0_3, %c0_4] : memref<1x27x8xbf16, #tpu.memory_space<vmem>>, vector<1x27x8xbf16>
    %3 = vector.shape_cast %2 : vector<1x27x8xbf16> to vector<27x8xbf16>
    %cst = arith.constant dense<0.000000e+00> : vector<256x8xf32>
    %4 = tpu.matmul %1, %3, %cst {dimension_numbers = #tpu.dot_dimension_numbers<[1], [0], [0], [1], [0, 0, 1, 1], [], []>} : vector<256x27xbf16>, vector<27x8xbf16>, vector<256x8xf32> -> vector<256x8xf32>
    %c0_5 = arith.constant 0 : index
    %c0_6 = arith.constant 0 : index
    %5 = vector.load %arg4[%c0_5, %c0_6] : memref<1x8xf32, #tpu.memory_space<vmem>>, vector<1x8xf32>
    %6 = vector.broadcast %5 : vector<1x8xf32> to vector<256x8xf32>
    %7 = arith.addf %4, %6 : vector<256x8xf32>
    %cst_7 = arith.constant 0.000000e+00 : f32
    %8 = vector.broadcast %cst_7 : f32 to vector<256x8xf32>
    %9 = arith.maximumf %7, %8 : vector<256x8xf32>
    %c0_8 = arith.constant 0 : index
    %c0_9 = arith.constant 0 : index
    %c0_10 = arith.constant 0 : index
    %10 = vector.load %arg5[%c0_8, %c0_9, %c0_10] : memref<1x256x8xf32, #tpu.memory_space<vmem>>, vector<1x256x8xf32>
    %11 = vector.shape_cast %10 : vector<1x256x8xf32> to vector<256x8xf32>
    %12 = vector.shape_cast %9 : vector<256x8xf32> to vector<1x256x8xf32>
    tpu.vector_store %arg5[%c0_8, %c0_9, %c0_10], %12 {strides = array<i32>} : memref<1x256x8xf32, #tpu.memory_space<vmem>>, vector<1x256x8xf32>,
    return
  }
  func.func @transform_0(%arg0: i32, %arg1: i32) -> (i32, i32, i32) {
    %c0_i32 = arith.constant 0 : i32
    %c0_i32_0 = arith.constant 0 : i32
    return %arg0, %arg1, %c0_i32 : i32, i32, i32
  }
  func.func @transform_1(%arg0: i32, %arg1: i32) -> (i32, i32, i32) {
    %c0_i32 = arith.constant 0 : i32
    %c0_i32_0 = arith.constant 0 : i32
    %c0_i32_1 = arith.constant 0 : i32
    return %arg0, %c0_i32, %c0_i32_0 : i32, i32, i32
  }
  func.func @transform_2(%arg0: i32, %arg1: i32) -> (i32, i32) {
    %c0_i32 = arith.constant 0 : i32
    %c0_i32_0 = arith.constant 0 : i32
    %c0_i32_1 = arith.constant 0 : i32
    return %c0_i32, %c0_i32_0 : i32, i32
  }
  func.func @transform_3(%arg0: i32, %arg1: i32) -> (i32, i32, i32) {
    %c0_i32 = arith.constant 0 : i32
    %c0_i32_0 = arith.constant 0 : i32
    return %arg0, %arg1, %c0_i32 : i32, i32, i32
  }
}

module attributes {stable_mosaic.version = 11 : i64} {
  func.func @_fused_matmul_kernel(%arg0: i32, %arg1: i32, %arg2: memref<1x32x216xbf16, #tpu.memory_space<vmem>>, %arg3: memref<1x216x4xbf16, #tpu.memory_space<vmem>>, %arg4: memref<1x4xf32, #tpu.memory_space<vmem>>, %arg5: memref<1x32x4xf32, #tpu.memory_space<vmem>>) attributes {dimension_semantics = [#tpu.dimension_semantics<parallel>, #tpu.dimension_semantics<parallel>], iteration_bounds = array<i64: 1, 2>, scalar_prefetch = 0 : i64, scratch_operands = 0 : i64, tpu.core_type = #tpu.core_type<tc>, window_params = [{transform_indices = @transform_0, window_bounds = array<i64: 1, 32, 216>}, {transform_indices = @transform_1, window_bounds = array<i64: 1, 216, 4>}, {pipeline_mode = #tpu.pipeline_mode<synchronous>, transform_indices = @transform_2, window_bounds = array<i64: 1, 4>}, {transform_indices = @transform_3, window_bounds = array<i64: 1, 32, 4>}]} {
    %c0 = arith.constant 0 : index
    %c0_0 = arith.constant 0 : index
    %c0_1 = arith.constant 0 : index
    %0 = vector.load %arg2[%c0, %c0_0, %c0_1] : memref<1x32x216xbf16, #tpu.memory_space<vmem>>, vector<1x32x216xbf16>
    %1 = vector.shape_cast %0 : vector<1x32x216xbf16> to vector<32x216xbf16>
    %c0_2 = arith.constant 0 : index
    %c0_3 = arith.constant 0 : index
    %c0_4 = arith.constant 0 : index
    %2 = vector.load %arg3[%c0_2, %c0_3, %c0_4] : memref<1x216x4xbf16, #tpu.memory_space<vmem>>, vector<1x216x4xbf16>
    %3 = vector.shape_cast %2 : vector<1x216x4xbf16> to vector<216x4xbf16>
    %cst = arith.constant dense<0.000000e+00> : vector<32x4xf32>
    %4 = tpu.matmul %1, %3, %cst {dimension_numbers = #tpu.dot_dimension_numbers<[1], [0], [0], [1], [0, 0, 1, 1], [], []>} : vector<32x216xbf16>, vector<216x4xbf16>, vector<32x4xf32> -> vector<32x4xf32>
    %c0_5 = arith.constant 0 : index
    %c0_6 = arith.constant 0 : index
    %5 = vector.load %arg4[%c0_5, %c0_6] : memref<1x4xf32, #tpu.memory_space<vmem>>, vector<1x4xf32>
    %6 = vector.broadcast %5 : vector<1x4xf32> to vector<32x4xf32>
    %7 = arith.addf %4, %6 : vector<32x4xf32>
    %cst_7 = arith.constant 0.000000e+00 : f32
    %8 = vector.broadcast %cst_7 : f32 to vector<32x4xf32>
    %9 = arith.maximumf %7, %8 : vector<32x4xf32>
    %c0_8 = arith.constant 0 : index
    %c0_9 = arith.constant 0 : index
    %c0_10 = arith.constant 0 : index
    %10 = vector.load %arg5[%c0_8, %c0_9, %c0_10] : memref<1x32x4xf32, #tpu.memory_space<vmem>>, vector<1x32x4xf32>
    %11 = vector.shape_cast %10 : vector<1x32x4xf32> to vector<32x4xf32>
    %12 = vector.shape_cast %9 : vector<32x4xf32> to vector<1x32x4xf32>
    tpu.vector_store %arg5[%c0_8, %c0_9, %c0_10], %12 {strides = array<i32>} : memref<1x32x4xf32, #tpu.memory_space<vmem>>, vector<1x32x4xf32>,
    return
  }
  func.func @transform_0(%arg0: i32, %arg1: i32) -> (i32, i32, i32) {
    %c0_i32 = arith.constant 0 : i32
    %c0_i32_0 = arith.constant 0 : i32
    return %arg0, %arg1, %c0_i32 : i32, i32, i32
  }
  func.func @transform_1(%arg0: i32, %arg1: i32) -> (i32, i32, i32) {
    %c0_i32 = arith.constant 0 : i32
    %c0_i32_0 = arith.constant 0 : i32
    %c0_i32_1 = arith.constant 0 : i32
    return %arg0, %c0_i32, %c0_i32_0 : i32, i32, i32
  }
  func.func @transform_2(%arg0: i32, %arg1: i32) -> (i32, i32) {
    %c0_i32 = arith.constant 0 : i32
    %c0_i32_0 = arith.constant 0 : i32
    %c0_i32_1 = arith.constant 0 : i32
    return %c0_i32, %c0_i32_0 : i32, i32
  }
  func.func @transform_3(%arg0: i32, %arg1: i32) -> (i32, i32, i32) {
    %c0_i32 = arith.constant 0 : i32
    %c0_i32_0 = arith.constant 0 : i32
    return %arg0, %arg1, %c0_i32 : i32, i32, i32
  }
}

module attributes {stable_mosaic.version = 11 : i64} {
  func.func @_fused_matmul_kernel(%arg0: i32, %arg1: i32, %arg2: memref<1x8x108xbf16, #tpu.memory_space<vmem>>, %arg3: memref<1x108x4xbf16, #tpu.memory_space<vmem>>, %arg4: memref<1x4xf32, #tpu.memory_space<vmem>>, %arg5: memref<1x8x4xf32, #tpu.memory_space<vmem>>) attributes {dimension_semantics = [#tpu.dimension_semantics<parallel>, #tpu.dimension_semantics<parallel>], iteration_bounds = array<i64: 1, 1>, scalar_prefetch = 0 : i64, scratch_operands = 0 : i64, tpu.core_type = #tpu.core_type<tc>, window_params = [{transform_indices = @transform_0, window_bounds = array<i64: 1, 8, 108>}, {transform_indices = @transform_1, window_bounds = array<i64: 1, 108, 4>}, {pipeline_mode = #tpu.pipeline_mode<synchronous>, transform_indices = @transform_2, window_bounds = array<i64: 1, 4>}, {transform_indices = @transform_3, window_bounds = array<i64: 1, 8, 4>}]} {
    %c0 = arith.constant 0 : index
    %c0_0 = arith.constant 0 : index
    %c0_1 = arith.constant 0 : index
    %0 = vector.load %arg2[%c0, %c0_0, %c0_1] : memref<1x8x108xbf16, #tpu.memory_space<vmem>>, vector<1x8x108xbf16>
    %1 = vector.shape_cast %0 : vector<1x8x108xbf16> to vector<8x108xbf16>
    %c0_2 = arith.constant 0 : index
    %c0_3 = arith.constant 0 : index
    %c0_4 = arith.constant 0 : index
    %2 = vector.load %arg3[%c0_2, %c0_3, %c0_4] : memref<1x108x4xbf16, #tpu.memory_space<vmem>>, vector<1x108x4xbf16>
    %3 = vector.shape_cast %2 : vector<1x108x4xbf16> to vector<108x4xbf16>
    %cst = arith.constant dense<0.000000e+00> : vector<8x4xf32>
    %4 = tpu.matmul %1, %3, %cst {dimension_numbers = #tpu.dot_dimension_numbers<[1], [0], [0], [1], [0, 0, 1, 1], [], []>} : vector<8x108xbf16>, vector<108x4xbf16>, vector<8x4xf32> -> vector<8x4xf32>
    %c0_5 = arith.constant 0 : index
    %c0_6 = arith.constant 0 : index
    %5 = vector.load %arg4[%c0_5, %c0_6] : memref<1x4xf32, #tpu.memory_space<vmem>>, vector<1x4xf32>
    %6 = vector.broadcast %5 : vector<1x4xf32> to vector<8x4xf32>
    %7 = arith.addf %4, %6 : vector<8x4xf32>
    %cst_7 = arith.constant 0.000000e+00 : f32
    %8 = vector.broadcast %cst_7 : f32 to vector<8x4xf32>
    %9 = arith.maximumf %7, %8 : vector<8x4xf32>
    %c0_8 = arith.constant 0 : index
    %c0_9 = arith.constant 0 : index
    %c0_10 = arith.constant 0 : index
    %10 = vector.load %arg5[%c0_8, %c0_9, %c0_10] : memref<1x8x4xf32, #tpu.memory_space<vmem>>, vector<1x8x4xf32>
    %11 = vector.shape_cast %10 : vector<1x8x4xf32> to vector<8x4xf32>
    %12 = vector.shape_cast %9 : vector<8x4xf32> to vector<1x8x4xf32>
    tpu.vector_store %arg5[%c0_8, %c0_9, %c0_10], %12 {strides = array<i32>} : memref<1x8x4xf32, #tpu.memory_space<vmem>>, vector<1x8x4xf32>,
    return
  }
  func.func @transform_0(%arg0: i32, %arg1: i32) -> (i32, i32, i32) {
    %c0_i32 = arith.constant 0 : i32
    %c0_i32_0 = arith.constant 0 : i32
    return %arg0, %arg1, %c0_i32 : i32, i32, i32
  }
  func.func @transform_1(%arg0: i32, %arg1: i32) -> (i32, i32, i32) {
    %c0_i32 = arith.constant 0 : i32
    %c0_i32_0 = arith.constant 0 : i32
    %c0_i32_1 = arith.constant 0 : i32
    return %arg0, %c0_i32, %c0_i32_0 : i32, i32, i32
  }
  func.func @transform_2(%arg0: i32, %arg1: i32) -> (i32, i32) {
    %c0_i32 = arith.constant 0 : i32
    %c0_i32_0 = arith.constant 0 : i32
    %c0_i32_1 = arith.constant 0 : i32
    return %c0_i32, %c0_i32_0 : i32, i32
  }
  func.func @transform_3(%arg0: i32, %arg1: i32) -> (i32, i32, i32) {
    %c0_i32 = arith.constant 0 : i32
    %c0_i32_0 = arith.constant 0 : i32
    return %arg0, %arg1, %c0_i32 : i32, i32, i32
  }
}

module attributes {stable_mosaic.version = 11 : i64} {
  func.func @_fused_matmul_kernel(%arg0: i32, %arg1: i32, %arg2: memref<1x8x32xbf16, #tpu.memory_space<vmem>>, %arg3: memref<1x32x4xbf16, #tpu.memory_space<vmem>>, %arg4: memref<1x4xf32, #tpu.memory_space<vmem>>, %arg5: memref<1x8x4xf32, #tpu.memory_space<vmem>>) attributes {dimension_semantics = [#tpu.dimension_semantics<parallel>, #tpu.dimension_semantics<parallel>], iteration_bounds = array<i64: 8, 1>, scalar_prefetch = 0 : i64, scratch_operands = 0 : i64, tpu.core_type = #tpu.core_type<tc>, window_params = [{transform_indices = @transform_0, window_bounds = array<i64: 1, 8, 32>}, {transform_indices = @transform_1, window_bounds = array<i64: 1, 32, 4>}, {pipeline_mode = #tpu.pipeline_mode<synchronous>, transform_indices = @transform_2, window_bounds = array<i64: 1, 4>}, {transform_indices = @transform_3, window_bounds = array<i64: 1, 8, 4>}]} {
    %c0 = arith.constant 0 : index
    %c0_0 = arith.constant 0 : index
    %c0_1 = arith.constant 0 : index
    %0 = vector.load %arg2[%c0, %c0_0, %c0_1] : memref<1x8x32xbf16, #tpu.memory_space<vmem>>, vector<1x8x32xbf16>
    %1 = vector.shape_cast %0 : vector<1x8x32xbf16> to vector<8x32xbf16>
    %c0_2 = arith.constant 0 : index
    %c0_3 = arith.constant 0 : index
    %c0_4 = arith.constant 0 : index
    %2 = vector.load %arg3[%c0_2, %c0_3, %c0_4] : memref<1x32x4xbf16, #tpu.memory_space<vmem>>, vector<1x32x4xbf16>
    %3 = vector.shape_cast %2 : vector<1x32x4xbf16> to vector<32x4xbf16>
    %cst = arith.constant dense<0.000000e+00> : vector<8x4xf32>
    %4 = tpu.matmul %1, %3, %cst {dimension_numbers = #tpu.dot_dimension_numbers<[1], [0], [0], [1], [0, 0, 1, 1], [], []>} : vector<8x32xbf16>, vector<32x4xbf16>, vector<8x4xf32> -> vector<8x4xf32>
    %c0_5 = arith.constant 0 : index
    %c0_6 = arith.constant 0 : index
    %5 = vector.load %arg4[%c0_5, %c0_6] : memref<1x4xf32, #tpu.memory_space<vmem>>, vector<1x4xf32>
    %6 = vector.broadcast %5 : vector<1x4xf32> to vector<8x4xf32>
    %7 = arith.addf %4, %6 : vector<8x4xf32>
    %cst_7 = arith.constant 0.000000e+00 : f32
    %8 = vector.broadcast %cst_7 : f32 to vector<8x4xf32>
    %9 = arith.maximumf %7, %8 : vector<8x4xf32>
    %c0_8 = arith.constant 0 : index
    %c0_9 = arith.constant 0 : index
    %c0_10 = arith.constant 0 : index
    %10 = vector.load %arg5[%c0_8, %c0_9, %c0_10] : memref<1x8x4xf32, #tpu.memory_space<vmem>>, vector<1x8x4xf32>
    %11 = vector.shape_cast %10 : vector<1x8x4xf32> to vector<8x4xf32>
    %12 = vector.shape_cast %9 : vector<8x4xf32> to vector<1x8x4xf32>
    tpu.vector_store %arg5[%c0_8, %c0_9, %c0_10], %12 {strides = array<i32>} : memref<1x8x4xf32, #tpu.memory_space<vmem>>, vector<1x8x4xf32>,
    return
  }
  func.func @transform_0(%arg0: i32, %arg1: i32) -> (i32, i32, i32) {
    %c0_i32 = arith.constant 0 : i32
    %c0_i32_0 = arith.constant 0 : i32
    return %arg0, %arg1, %c0_i32 : i32, i32, i32
  }
  func.func @transform_1(%arg0: i32, %arg1: i32) -> (i32, i32, i32) {
    %c0_i32 = arith.constant 0 : i32
    %c0_i32_0 = arith.constant 0 : i32
    %c0_i32_1 = arith.constant 0 : i32
    return %arg0, %c0_i32, %c0_i32_0 : i32, i32, i32
  }
  func.func @transform_2(%arg0: i32, %arg1: i32) -> (i32, i32) {
    %c0_i32 = arith.constant 0 : i32
    %c0_i32_0 = arith.constant 0 : i32
    %c0_i32_1 = arith.constant 0 : i32
    return %c0_i32, %c0_i32_0 : i32, i32
  }
  func.func @transform_3(%arg0: i32, %arg1: i32) -> (i32, i32, i32) {
    %c0_i32 = arith.constant 0 : i32
    %c0_i32_0 = arith.constant 0 : i32
    return %arg0, %arg1, %c0_i32 : i32, i32, i32
  }
}

module attributes {stable_mosaic.version = 11 : i64} {
  func.func @_fused_matmul_kernel(%arg0: i32, %arg1: i32, %arg2: memref<1x64x32xbf16, #tpu.memory_space<vmem>>, %arg3: memref<1x32x8xbf16, #tpu.memory_space<vmem>>, %arg4: memref<1x8xf32, #tpu.memory_space<vmem>>, %arg5: memref<1x64x8xf32, #tpu.memory_space<vmem>>) attributes {dimension_semantics = [#tpu.dimension_semantics<parallel>, #tpu.dimension_semantics<parallel>], iteration_bounds = array<i64: 8, 1>, scalar_prefetch = 0 : i64, scratch_operands = 0 : i64, tpu.core_type = #tpu.core_type<tc>, window_params = [{transform_indices = @transform_0, window_bounds = array<i64: 1, 64, 32>}, {transform_indices = @transform_1, window_bounds = array<i64: 1, 32, 8>}, {pipeline_mode = #tpu.pipeline_mode<synchronous>, transform_indices = @transform_2, window_bounds = array<i64: 1, 8>}, {transform_indices = @transform_3, window_bounds = array<i64: 1, 64, 8>}]} {
    %c0 = arith.constant 0 : index
    %c0_0 = arith.constant 0 : index
    %c0_1 = arith.constant 0 : index
    %0 = vector.load %arg2[%c0, %c0_0, %c0_1] : memref<1x64x32xbf16, #tpu.memory_space<vmem>>, vector<1x64x32xbf16>
    %1 = vector.shape_cast %0 : vector<1x64x32xbf16> to vector<64x32xbf16>
    %c0_2 = arith.constant 0 : index
    %c0_3 = arith.constant 0 : index
    %c0_4 = arith.constant 0 : index
    %2 = vector.load %arg3[%c0_2, %c0_3, %c0_4] : memref<1x32x8xbf16, #tpu.memory_space<vmem>>, vector<1x32x8xbf16>
    %3 = vector.shape_cast %2 : vector<1x32x8xbf16> to vector<32x8xbf16>
    %cst = arith.constant dense<0.000000e+00> : vector<64x8xf32>
    %4 = tpu.matmul %1, %3, %cst {dimension_numbers = #tpu.dot_dimension_numbers<[1], [0], [0], [1], [0, 0, 1, 1], [], []>} : vector<64x32xbf16>, vector<32x8xbf16>, vector<64x8xf32> -> vector<64x8xf32>
    %c0_5 = arith.constant 0 : index
    %c0_6 = arith.constant 0 : index
    %5 = vector.load %arg4[%c0_5, %c0_6] : memref<1x8xf32, #tpu.memory_space<vmem>>, vector<1x8xf32>
    %6 = vector.broadcast %5 : vector<1x8xf32> to vector<64x8xf32>
    %7 = arith.addf %4, %6 : vector<64x8xf32>
    %cst_7 = arith.constant 0.000000e+00 : f32
    %8 = vector.broadcast %cst_7 : f32 to vector<64x8xf32>
    %9 = arith.maximumf %7, %8 : vector<64x8xf32>
    %c0_8 = arith.constant 0 : index
    %c0_9 = arith.constant 0 : index
    %c0_10 = arith.constant 0 : index
    %10 = vector.load %arg5[%c0_8, %c0_9, %c0_10] : memref<1x64x8xf32, #tpu.memory_space<vmem>>, vector<1x64x8xf32>
    %11 = vector.shape_cast %10 : vector<1x64x8xf32> to vector<64x8xf32>
    %12 = vector.shape_cast %9 : vector<64x8xf32> to vector<1x64x8xf32>
    tpu.vector_store %arg5[%c0_8, %c0_9, %c0_10], %12 {strides = array<i32>} : memref<1x64x8xf32, #tpu.memory_space<vmem>>, vector<1x64x8xf32>,
    return
  }
  func.func @transform_0(%arg0: i32, %arg1: i32) -> (i32, i32, i32) {
    %c0_i32 = arith.constant 0 : i32
    %c0_i32_0 = arith.constant 0 : i32
    return %arg0, %arg1, %c0_i32 : i32, i32, i32
  }
  func.func @transform_1(%arg0: i32, %arg1: i32) -> (i32, i32, i32) {
    %c0_i32 = arith.constant 0 : i32
    %c0_i32_0 = arith.constant 0 : i32
    %c0_i32_1 = arith.constant 0 : i32
    return %arg0, %c0_i32, %c0_i32_0 : i32, i32, i32
  }
  func.func @transform_2(%arg0: i32, %arg1: i32) -> (i32, i32) {
    %c0_i32 = arith.constant 0 : i32
    %c0_i32_0 = arith.constant 0 : i32
    %c0_i32_1 = arith.constant 0 : i32
    return %c0_i32, %c0_i32_0 : i32, i32
  }
  func.func @transform_3(%arg0: i32, %arg1: i32) -> (i32, i32, i32) {
    %c0_i32 = arith.constant 0 : i32
    %c0_i32_0 = arith.constant 0 : i32
    return %arg0, %arg1, %c0_i32 : i32, i32, i32
  }
}

module attributes {stable_mosaic.version = 11 : i64} {
  func.func @_fused_matmul_kernel(%arg0: i32, %arg1: i32, %arg2: memref<1x512x64xbf16, #tpu.memory_space<vmem>>, %arg3: memref<1x64x1xbf16, #tpu.memory_space<vmem>>, %arg4: memref<1x1xf32, #tpu.memory_space<vmem>>, %arg5: memref<1x512x1xf32, #tpu.memory_space<vmem>>) attributes {dimension_semantics = [#tpu.dimension_semantics<parallel>, #tpu.dimension_semantics<parallel>], iteration_bounds = array<i64: 8, 1>, scalar_prefetch = 0 : i64, scratch_operands = 0 : i64, tpu.core_type = #tpu.core_type<tc>, window_params = [{transform_indices = @transform_0, window_bounds = array<i64: 1, 512, 64>}, {transform_indices = @transform_1, window_bounds = array<i64: 1, 64, 1>}, {pipeline_mode = #tpu.pipeline_mode<synchronous>, transform_indices = @transform_2, window_bounds = array<i64: 1, 1>}, {transform_indices = @transform_3, window_bounds = array<i64: 1, 512, 1>}]} {
    %c0 = arith.constant 0 : index
    %c0_0 = arith.constant 0 : index
    %c0_1 = arith.constant 0 : index
    %0 = vector.load %arg2[%c0, %c0_0, %c0_1] : memref<1x512x64xbf16, #tpu.memory_space<vmem>>, vector<1x512x64xbf16>
    %1 = vector.shape_cast %0 : vector<1x512x64xbf16> to vector<512x64xbf16>
    %c0_2 = arith.constant 0 : index
    %c0_3 = arith.constant 0 : index
    %c0_4 = arith.constant 0 : index
    %2 = vector.load %arg3[%c0_2, %c0_3, %c0_4] : memref<1x64x1xbf16, #tpu.memory_space<vmem>>, vector<1x64x1xbf16>
    %3 = vector.shape_cast %2 : vector<1x64x1xbf16> to vector<64x1xbf16>
    %cst = arith.constant dense<0.000000e+00> : vector<512x1xf32>
    %4 = tpu.matmul %1, %3, %cst {dimension_numbers = #tpu.dot_dimension_numbers<[1], [0], [0], [1], [0, 0, 1, 1], [], []>} : vector<512x64xbf16>, vector<64x1xbf16>, vector<512x1xf32> -> vector<512x1xf32>
    %c0_5 = arith.constant 0 : index
    %c0_6 = arith.constant 0 : index
    %5 = vector.load %arg4[%c0_5, %c0_6] : memref<1x1xf32, #tpu.memory_space<vmem>>, vector<1x1xf32>
    %6 = vector.broadcast %5 : vector<1x1xf32> to vector<512x1xf32>
    %7 = arith.addf %4, %6 : vector<512x1xf32>
    %cst_7 = arith.constant 0.000000e+00 : f32
    %8 = vector.broadcast %cst_7 : f32 to vector<512x1xf32>
    %9 = arith.subf %8, %7 : vector<512x1xf32>
    %10 = math.exp %9 : vector<512x1xf32>
    %cst_8 = arith.constant 1.000000e+00 : f32
    %11 = vector.broadcast %cst_8 : f32 to vector<512x1xf32>
    %12 = arith.addf %11, %10 : vector<512x1xf32>
    %13 = tpu.reciprocal %12 {approx = true} : vector<512x1xf32> -> vector<512x1xf32>
    %c0_9 = arith.constant 0 : index
    %c0_10 = arith.constant 0 : index
    %c0_11 = arith.constant 0 : index
    %14 = vector.load %arg5[%c0_9, %c0_10, %c0_11] : memref<1x512x1xf32, #tpu.memory_space<vmem>>, vector<1x512x1xf32>
    %15 = vector.shape_cast %14 : vector<1x512x1xf32> to vector<512x1xf32>
    %16 = vector.shape_cast %13 : vector<512x1xf32> to vector<1x512x1xf32>
    tpu.vector_store %arg5[%c0_9, %c0_10, %c0_11], %16 {strides = array<i32>} : memref<1x512x1xf32, #tpu.memory_space<vmem>>, vector<1x512x1xf32>,
    return
  }
  func.func @transform_0(%arg0: i32, %arg1: i32) -> (i32, i32, i32) {
    %c0_i32 = arith.constant 0 : i32
    %c0_i32_0 = arith.constant 0 : i32
    return %arg0, %arg1, %c0_i32 : i32, i32, i32
  }
  func.func @transform_1(%arg0: i32, %arg1: i32) -> (i32, i32, i32) {
    %c0_i32 = arith.constant 0 : i32
    %c0_i32_0 = arith.constant 0 : i32
    %c0_i32_1 = arith.constant 0 : i32
    return %arg0, %c0_i32, %c0_i32_0 : i32, i32, i32
  }
  func.func @transform_2(%arg0: i32, %arg1: i32) -> (i32, i32) {
    %c0_i32 = arith.constant 0 : i32
    %c0_i32_0 = arith.constant 0 : i32
    %c0_i32_1 = arith.constant 0 : i32
    return %c0_i32, %c0_i32_0 : i32, i32
  }
  func.func @transform_3(%arg0: i32, %arg1: i32) -> (i32, i32, i32) {
    %c0_i32 = arith.constant 0 : i32
    %c0_i32_0 = arith.constant 0 : i32
    return %arg0, %arg1, %c0_i32 : i32, i32, i32
  }
}

</mosaic_0001>

<llo_original>
// kernel: autoencoder3d_forward.6
$region0: #{autoencoder3d_forward.6}
  #allocation0 [shape = 'u32[]', space=smem, size = 0x4, offset = 0x4, fixed_abs, tag = 'smem constant byte address 0x4 - core index']
  #allocation1 [shape = 'u32[144,128]{1,0:T(1,128)}', space=vmem, size = 0x12000, scoped, tag = 'internal scratch']
  %s0 = inlined_call_operand.vmem [shape: bf16[1,512,27], index: 0, kind: input, shape index: {}]
  %s1 = inlined_call_operand.vmem [shape: bf16[1,27,8], index: 1, kind: input, shape index: {}]
  %s2 = inlined_call_operand.vmem [shape: f32[1,8], index: 2, kind: input, shape index: {}]
  %s3 = inlined_call_operand.vmem [shape: f32[1,512,8], index: 3, kind: output, shape index: {}]
  %s4 = sld [smem:[#allocation0]]
  $region45: #{autoencoder3d_forward.6} parent=0
    _
  %s6 = ssub.s32 1, %s4
  %s7 = scalar_select 0, %s6, %s4
  loop: start=0, step=1, limit=4
  $region2: #{autoencoder3d_forward.6} parent=0 // loop_pre_header
    _
  $region3: #{autoencoder3d_forward.6} parent=0 // loop_header
    %s9 = sphi 0, %s13
    %p10 = scmp.ge.s32.totalorder %s9, 4
    %s16 = sphi 0, %s28
    %s17 = sphi 0, %s24
    %s18 = sphi 0, %s16
    %s19 = sphi 0, %s17
    %s20 = sphi 0, %s18
    %s21 = sphi 0, %s19
    %s33 = sphi 0, %s35
    %s36 = sphi 0, %s33
    %s37 = sphi 0, %s36
    %s53 = sphi 0, %s37
    %s59 = sphi 0, %s61
    %s62 = sphi 0, %s59
    %s63 = sphi 0, %s62
    %s79 = sphi 0, %s63
    %s83 = sphi 0, %s83
    %s85 = sphi 0, %s83
    %s86 = sphi 0, %s85
    %s100 = sphi 0, %s86
    %s108 = sphi 0, %s110
    %s111 = sphi 0, %s108
    %s112 = sphi 0, %s111
    %s128 = sphi 0, %s112
  $region4: #{autoencoder3d_forward.6} parent=0 // loop_header_branch
    %12 = sbr.rel (%p10) target = $region8
  $region5: #{autoencoder3d_forward.6} parent=0 // loop_body
    %s14 = ssub.s32 %s9, 1
    %s15 = ssub.s32 %s9, 2
    %s22 = sadd.s32 1, %s17
    %p23 = scmp.ge.s32.totalorder %s22, 2
    %s24 = scalar_select %p23, 0, %s22
    %s25 = sadd.s32 1, %s16
    %s26 = scalar_select %p23, %s25, %s16
    %p27 = scmp.ge.s32.totalorder %s26, 1
    %s28 = scalar_select %p27, 0, %s26
    %s29 = ssub.s32 %s16, %s28
    %s30 = ssub.s32 %s17, %s24
    %s31 = sor.u32 %s29, %s30
    %p32 = scmp.eq.s32.totalorder %s31, 0
    %s34 = sadd.s32 %s33, 1
    %s35 = scalar_select %p32, %s33, %s34
    %p38 = pneg %p32
    %p39 = scmp.eq.s32.totalorder %s9, 1
    %p40 = por %p38, %p39
    %p41 = scmp.ne.s32.totalorder %s33, %s36
    %p42 = scmp.eq.s32.totalorder %s9, 0
    %p43 = por %p41, %p42
    %p44 = scmp.ne.s32.totalorder %s33, %s36
    %p45 = scmp.eq.s32.totalorder %s14, 1
    %p46 = por %p44, %p45
    %p47 = scmp.ne.s32.totalorder %s36, %s37
    %p48 = scmp.eq.s32.totalorder %s14, 0
    %p49 = por %p47, %p48
    %p50 = scmp.ne.s32.totalorder %s36, %s37
    %p51 = scmp.eq.s32.totalorder %s15, 1
    %p52 = por %p50, %p51
    %p54 = scmp.ne.s32.totalorder %s37, %s53
    %p55 = scmp.eq.s32.totalorder %s15, 0
    %p56 = por %p54, %p55
    %s57 = ssub.s32 %s16, %s28
    %p58 = scmp.eq.s32.totalorder %s57, 0
    %s60 = sadd.s32 %s59, 1
    %s61 = scalar_select %p58, %s59, %s60
    %p64 = pneg %p58
    %p65 = scmp.eq.s32.totalorder %s9, 1
    %p66 = por %p64, %p65
    %p67 = scmp.ne.s32.totalorder %s59, %s62
    %p68 = scmp.eq.s32.totalorder %s9, 0
    %p69 = por %p67, %p68
    %p70 = scmp.ne.s32.totalorder %s59, %s62
    %p71 = scmp.eq.s32.totalorder %s14, 1
    %p72 = por %p70, %p71
    %p73 = scmp.ne.s32.totalorder %s62, %s63
    %p74 = scmp.eq.s32.totalorder %s14, 0
    %p75 = por %p73, %p74
    %p76 = scmp.ne.s32.totalorder %s62, %s63
    %p77 = scmp.eq.s32.totalorder %s15, 1
    %p78 = por %p76, %p77
    %p80 = scmp.ne.s32.totalorder %s63, %s79
    %p81 = scmp.eq.s32.totalorder %s15, 0
    %p82 = por %p80, %p81
    %s84 = sadd.s32 %s83, 1
    %p87 = scmp.eq.s32.totalorder %s9, 1
    %p88 = scmp.ne.s32.totalorder %s83, %s85
    %p89 = scmp.eq.s32.totalorder %s9, 0
    %p90 = por %p88, %p89
    %p91 = scmp.ne.s32.totalorder %s83, %s85
    %p92 = scmp.eq.s32.totalorder %s14, 1
    %p93 = por %p91, %p92
    %p94 = scmp.ne.s32.totalorder %s85, %s86
    %p95 = scmp.eq.s32.totalorder %s14, 0
    %p96 = por %p94, %p95
    %p97 = scmp.ne.s32.totalorder %s85, %s86
    %p98 = scmp.eq.s32.totalorder %s15, 1
    %p99 = por %p97, %p98
    %p101 = scmp.ne.s32.totalorder %s86, %s100
    %p102 = scmp.eq.s32.totalorder %s15, 0
    %p103 = por %p101, %p102
    %s104 = ssub.s32 %s16, %s28
    %s105 = ssub.s32 %s17, %s24
    %s106 = sor.u32 %s104, %s105
    %p107 = scmp.eq.s32.totalorder %s106, 0
    %s109 = sadd.s32 %s108, 1
    %s110 = scalar_select %p107, %s108, %s109
    %p113 = pneg %p107
    %p114 = scmp.eq.s32.totalorder %s9, 1
    %p115 = por %p113, %p114
    %p116 = scmp.ne.s32.totalorder %s108, %s111
    %p117 = scmp.eq.s32.totalorder %s9, 0
    %p118 = por %p116, %p117
    %p119 = scmp.ne.s32.totalorder %s108, %s111
    %p120 = scmp.eq.s32.totalorder %s14, 1
    %p121 = por %p119, %p120
    %p122 = scmp.ne.s32.totalorder %s111, %s112
    %p123 = scmp.eq.s32.totalorder %s14, 0
    %p124 = por %p122, %p123
    %p125 = scmp.ne.s32.totalorder %s111, %s112
    %p126 = scmp.eq.s32.totalorder %s15, 1
    %p127 = por %p125, %p126
    %p129 = scmp.ne.s32.totalorder %s112, %s128
    %p130 = scmp.eq.s32.totalorder %s15, 0
    %p131 = por %p129, %p130
    %p132 = scmp.le.s32.totalorder 1, %s9
    %p133 = scmp.lt.s32.totalorder %s9, 3
    %p134 = pnand %p132, %p133
    %p135 = pneg %p134
    // Predicated region
    $region9: #{autoencoder3d_forward.6} parent=5 // pred_check
      _
    $region10: #{autoencoder3d_forward.6} parent=5 // pred_check_branch
      %137 = sbr.rel (%p134) target = $region12
    $region11: #{autoencoder3d_forward.6} parent=5 // pred_region
      %s138 = ssub.s32 %s9, 1
      // Predicated region
      $region13: #{autoencoder3d_forward.6} parent=11 // pred_check
        %p139 = pneg %p75
      $region14: #{autoencoder3d_forward.6} parent=11 // pred_check_branch
        %141 = sbr.rel (%p139) target = $region16
      $region15: #{autoencoder3d_forward.6} parent=11 // pred_region
        %p142 = scmp.lt.s32.totalorder %s18, 0
        %s143 = scalar_select %p142, %s18, 0
        %s144 = smul.addr %s143, 4
        %s145 = smul.addr %s144, 4
        %s146 = scalar_lea.vmem %s1, %s145
      $region16: #{autoencoder3d_forward.6} parent=11 // pred_fallthru
        _
      // Predicated region
      $region17: #{autoencoder3d_forward.6} parent=11 // pred_check
        %p147 = pneg %p96
      $region18: #{autoencoder3d_forward.6} parent=11 // pred_check_branch
        %149 = sbr.rel (%p147) target = $region20
      $region19: #{autoencoder3d_forward.6} parent=11 // pred_region
        _
      $region20: #{autoencoder3d_forward.6} parent=11 // pred_fallthru
        _
    $region12: #{autoencoder3d_forward.6} parent=5 // pred_fallthru
      _
    %p150 = scmp.lt.s32.totalorder %s9, 2
    // Predicated region
    $region21: #{autoencoder3d_forward.6} parent=5 // pred_check
      %p151 = pneg %p150
    $region22: #{autoencoder3d_forward.6} parent=5 // pred_check_branch
      %153 = sbr.rel (%p151) target = $region24
    $region23: #{autoencoder3d_forward.6} parent=5 // pred_region
      // Predicated region
      $region25: #{autoencoder3d_forward.6} parent=23 // pred_check
        %p154 = pneg %p43
      $region26: #{autoencoder3d_forward.6} parent=23 // pred_check_branch
        %156 = sbr.rel (%p154) target = $region28
      $region27: #{autoencoder3d_forward.6} parent=23 // pred_region
        %s157 = smul.u32 32, %s17
        %p158 = scmp.lt.s32.totalorder %s16, 0
        %s159 = scalar_select %p158, %s16, 0
        %p160 = scmp.lt.s32.totalorder %s157, 63
        %s161 = scalar_select %p160, %s157, 63
        %s162 = smul.addr %s159, 64
        %s163 = sadd.s32 %s161, %s162
        %s164 = smul.addr %s163, 4
        %s165 = scalar_lea.vmem %s0, %s164
        %s166 = smul.u32 32, %s17
      $region28: #{autoencoder3d_forward.6} parent=23 // pred_fallthru
        _
    $region24: #{autoencoder3d_forward.6} parent=5 // pred_fallthru
      _
    %p167 = scmp.le.s32.totalorder 1, %s9
    %p168 = scmp.lt.s32.totalorder %s9, 3
    %p169 = pnand %p167, %p168
    %p170 = pneg %p169
    // Predicated region
    $region29: #{autoencoder3d_forward.6} parent=5 // pred_check
      _
    $region30: #{autoencoder3d_forward.6} parent=5 // pred_check_branch
      %172 = sbr.rel (%p169) target = $region32
    $region31: #{autoencoder3d_forward.6} parent=5 // pred_region
      %s173 = ssub.s32 %s9, 1
      %s174 = smul.u32 32, %s19
      %p175 = scmp.lt.s32.totalorder %s18, 0
      %s176 = scalar_select %p175, %s18, 0
      %p177 = scmp.lt.s32.totalorder %s174, 63
      %s178 = scalar_select %p177, %s174, 63
      %s179 = smul.addr %s176, 64
      %s180 = sadd.s32 %s178, %s179
      %s181 = smul.addr %s180, 4
      %s182 = scalar_lea.vmem %s0, %s181
      %p183 = pneg %p49
      %p184 = pneg %p46
      %p185 = scmp.lt.s32.totalorder %s18, 0
      %s186 = scalar_select %p185, %s18, 0
      %s187 = smul.addr %s186, 4
      %s188 = smul.addr %s187, 4
      %s189 = scalar_lea.vmem %s1, %s188
      %p190 = pneg %p75
      %p191 = pneg %p72
      %p192 = pneg %p96
      %p193 = pneg %p93
      %p194 = pneg %p124
      %p195 = pneg %p121
      %s196 = smul.u32 32, %s19
      %p197 = scmp.lt.s32.totalorder %s18, 0
      %s198 = scalar_select %p197, %s18, 0
      %p199 = scmp.lt.s32.totalorder %s196, 63
      %s200 = scalar_select %p199, %s196, 63
      %s201 = smul.addr %s198, 64
      %s202 = sadd.s32 %s200, %s201
      %s203 = smul.addr %s202, 8
      %s204 = scalar_lea.vmem %s3, %s203
      %s205 = smul.u32 32, %s19
      %p206 = scmp.lt.s32.totalorder %s18, 0
      %s207 = scalar_select %p206, %s18, 0
      %p208 = scmp.lt.s32.totalorder %s205, 63
      %s209 = scalar_select %p208, %s205, 63
      %s210 = smul.addr %s207, 64
      %s211 = sadd.s32 %s209, %s210
      %s212 = smul.addr %s211, 4
      %s213 = scalar_lea.vmem %s0, %s212
      %s214 = smul.u32 32, %s19
      %p215 = scmp.lt.s32.totalorder %s18, 0
      %s216 = scalar_select %p215, %s18, 0
      %s217 = smul.addr %s216, 4
      %s218 = smul.addr %s217, 4
      %s219 = scalar_lea.vmem %s1, %s218
      %s220 = smul.u32 32, %s19
      %p221 = scmp.lt.s32.totalorder %s18, 0
      %s222 = scalar_select %p221, %s18, 0
      %p223 = scmp.lt.s32.totalorder %s220, 63
      %s224 = scalar_select %p223, %s220, 63
      %s225 = smul.addr %s222, 64
      %s226 = sadd.s32 %s224, %s225
      %s227 = smul.addr %s226, 8
      %s228 = scalar_lea.vmem %s3, %s227
      %s229 = smul.u32 32, %s19
      %v231 = vld [vmem:[%s213] sm:$0xf]
      %v232 = vld [vmem:[%s213 + $0x4] sm:$0xf]
      %v233 = vld [vmem:[%s213 + $0x8] sm:$0xf]
      %v234 = vld [vmem:[%s213 + $0xc] sm:$0xf]
      %v235 = vld [vmem:[%s213 + $0x10] sm:$0xf]
      %v236 = vld [vmem:[%s213 + $0x14] sm:$0xf]
      %v237 = vld [vmem:[%s213 + $0x18] sm:$0xf]
      %v238 = vld [vmem:[%s213 + $0x1c] sm:$0xf]
      %v239 = vld [vmem:[%s213 + $0x20] sm:$0xf]
      %v240 = vld [vmem:[%s213 + $0x24] sm:$0xf]
      %v241 = vld [vmem:[%s213 + $0x28] sm:$0xf]
      %v242 = vld [vmem:[%s213 + $0x2c] sm:$0xf]
      %v243 = vld [vmem:[%s213 + $0x30] sm:$0xf]
      %v244 = vld [vmem:[%s213 + $0x34] sm:$0xf]
      %v245 = vld [vmem:[%s213 + $0x38] sm:$0xf]
      %v246 = vld [vmem:[%s213 + $0x3c] sm:$0xf]
      %v247 = vld [vmem:[%s213 + $0x40] sm:$0xf]
      %v248 = vld [vmem:[%s213 + $0x44] sm:$0xf]
      %v249 = vld [vmem:[%s213 + $0x48] sm:$0xf]
      %v250 = vld [vmem:[%s213 + $0x4c] sm:$0xf]
      %v251 = vld [vmem:[%s213 + $0x50] sm:$0xf]
      %v252 = vld [vmem:[%s213 + $0x54] sm:$0xf]
      %v253 = vld [vmem:[%s213 + $0x58] sm:$0xf]
      %v254 = vld [vmem:[%s213 + $0x5c] sm:$0xf]
      %v255 = vld [vmem:[%s213 + $0x60] sm:$0xf]
      %v256 = vld [vmem:[%s213 + $0x64] sm:$0xf]
      %v257 = vld [vmem:[%s213 + $0x68] sm:$0xf]
      %v258 = vld [vmem:[%s213 + $0x6c] sm:$0xf]
      %v259 = vld [vmem:[%s213 + $0x70] sm:$0xf]
      %v260 = vld [vmem:[%s213 + $0x74] sm:$0xf]
      %v261 = vld [vmem:[%s213 + $0x78] sm:$0xf]
      %v262 = vld [vmem:[%s213 + $0x7c] sm:$0xf]
      %v263 = vld [vmem:[%s219] sm:$0xf]
      %v264 = vld [vmem:[%s219 + $0x4] sm:$0xf]
      %v265 = vld [vmem:[%s219 + $0x8] sm:$0xf]
      %v266 = vld [vmem:[%s219 + $0xc] sm:$0x3]
      %v267 = vld [vmem:[%s2] sm:$0x1]
      %v269 = vlaneseq
      %v270 = vshrl.u32 %v269, 7
      %v271 = vsub.s32 0, %v270
      %v272 = vrot.slane %v267, %v271
      %v306 = vunpack.c.l.b16 %v231
      %v307 = vunpack.c.l.b16 %v232
      %v308 = vunpack.c.l.b16 %v233
      %v309 = vunpack.c.l.b16 %v234
      %v310 = vunpack.c.l.b16 %v235
      %v311 = vunpack.c.l.b16 %v236
      %v312 = vunpack.c.l.b16 %v237
      %v313 = vunpack.c.l.b16 %v238
      %v314 = vunpack.c.l.b16 %v239
      %v315 = vunpack.c.l.b16 %v240
      %v316 = vunpack.c.l.b16 %v241
      %v317 = vunpack.c.l.b16 %v242
      %v318 = vunpack.c.l.b16 %v243
      %v319 = vunpack.c.l.b16 %v244
      %v320 = vunpack.c.l.b16 %v245
      %v321 = vunpack.c.l.b16 %v246
      %v322 = vunpack.c.l.b16 %v247
      %v323 = vunpack.c.l.b16 %v248
      %v324 = vunpack.c.l.b16 %v249
      %v325 = vunpack.c.l.b16 %v250
      %v326 = vunpack.c.l.b16 %v251
      %v327 = vunpack.c.l.b16 %v252
      %v328 = vunpack.c.l.b16 %v253
      %v329 = vunpack.c.l.b16 %v254
      %v330 = vunpack.c.l.b16 %v255
      %v331 = vunpack.c.l.b16 %v256
      %v332 = vunpack.c.l.b16 %v257
      %v333 = vunpack.c.l.b16 %v258
      %v334 = vunpack.c.l.b16 %v259
      %v335 = vunpack.c.l.b16 %v260
      %v336 = vunpack.c.l.b16 %v261
      %v337 = vunpack.c.l.b16 %v262
      %v338 = vpack.c.b16 %v307, %v306
      %v339 = vpack.c.b16 %v309, %v308
      %v340 = vpack.c.b16 %v311, %v310
      %v341 = vpack.c.b16 %v313, %v312
      %v342 = vpack.c.b16 %v315, %v314
      %v343 = vpack.c.b16 %v317, %v316
      %v344 = vpack.c.b16 %v319, %v318
      %v345 = vpack.c.b16 %v321, %v320
      %v346 = vpack.c.b16 %v323, %v322
      %v347 = vpack.c.b16 %v325, %v324
      %v348 = vpack.c.b16 %v327, %v326
      %v349 = vpack.c.b16 %v329, %v328
      %v350 = vpack.c.b16 %v331, %v330
      %v351 = vpack.c.b16 %v333, %v332
      %v352 = vpack.c.b16 %v335, %v334
      %v353 = vpack.c.b16 %v337, %v336
      %v358 = vunpack.c.l.b16 %v263
      %v359 = vunpack.c.l.b16 %v264
      %v360 = vunpack.c.l.b16 %v265
      %v361 = vunpack.c.l.b16 %v266
      %v362 = vpack.c.b16 %v359, %v358
      %v363 = vpack.c.b16 %v361, %v360
      %vm365 = vcmask 220160
      %v367 = vsel %vm365, %v338, 0
      %v370 = vsel %vm365, %v339, 0
      %v373 = vsel %vm365, %v340, 0
      %v376 = vsel %vm365, %v341, 0
      %v379 = vsel %vm365, %v342, 0
      %v382 = vsel %vm365, %v343, 0
      %v385 = vsel %vm365, %v344, 0
      %v388 = vsel %vm365, %v345, 0
      %v391 = vsel %vm365, %v346, 0
      %v394 = vsel %vm365, %v347, 0
      %v397 = vsel %vm365, %v348, 0
      %v400 = vsel %vm365, %v349, 0
      %v403 = vsel %vm365, %v350, 0
      %v406 = vsel %vm365, %v351, 0
      %v409 = vsel %vm365, %v352, 0
      %v412 = vsel %vm365, %v353, 0
      %vm414 = vcmask 1044480
      %vm415 = vcmask 1045504
      %v416 = vsel %vm414, 4294967295, 65535
      %v417 = vsel %vm415, %v416, 0
      %v419 = vand.u32 %v363, %v417
      %421 = vmatprep.subr.bf16.mxu0 0
      %422 = vmatpush1.bf16.msra.mxu0 %v362
      %423 = vmatprep.subr.bf16.mxu0 0
      %424 = vmatpush1.bf16.msra.mxu0 %v419
      %425 = vmatprep.subr.bf16.mxu0 0
      %426 = vmatpush1.bf16.msra.mxu0 0
      %427 = vmatprep.subr.bf16.mxu0 0
      %428 = vmatpush1.bf16.msra.mxu0 0
      %429 = vmatprep.subr.bf16.mxu0 0
      %430 = vmatpush1.bf16.msra.mxu0 0
      %431 = vmatprep.subr.bf16.mxu0 0
      %432 = vmatpush1.bf16.msra.mxu0 0
      %433 = vmatprep.subr.bf16.mxu0 0
      %434 = vmatpush1.bf16.msra.mxu0 0
      %435 = vmatprep.subr.bf16.mxu0 0
      %436 = vmatpush1.bf16.msra.mxu0 0
      %437 = vmatprep.subr.bf16.mxu0 0
      %438 = vmatpush1.bf16.msra.mxu0 0
      %439 = vmatprep.subr.bf16.mxu0 0
      %440 = vmatpush1.bf16.msra.mxu0 0
      %441 = vmatprep.subr.bf16.mxu0 0
      %442 = vmatpush1.bf16.msra.mxu0 0
      %443 = vmatprep.subr.bf16.mxu0 0
      %444 = vmatpush1.bf16.msra.mxu0 0
      %445 = vmatprep.subr.bf16.mxu0 0
      %446 = vmatpush1.bf16.msra.mxu0 0
      %447 = vmatprep.subr.bf16.mxu0 0
      %448 = vmatpush1.bf16.msra.mxu0 0
      %449 = vmatprep.subr.bf16.mxu0 0
      %450 = vmatpush1.bf16.msra.mxu0 0
      %451 = vmatprep.subr.bf16.mxu0 0
      %452 = vmatpush1.bf16.msra.mxu0 0
      %453 = vmatprep.mubr.bf16.mxu0 0
      %454 = vmatmul.mubr.bf16.gmra.mrb[0].mxu0 %v367
      %v455 = vpop.f32.mrb[0].mxu0
      %v456 = vadd.f32 %v272, %v455
      %v457 = vpop.f32.mrb[0].mxu0
      %v458 = vpop.f32.mrb[0].mxu0
      %v459 = vadd.f32 %v272, %v458
      %v460 = vpop.f32.mrb[0].mxu0
      %461 = vmatprep.mubr.bf16.mxu0 0
      %462 = vmatmul.mubr.bf16.gmra.mrb[0].mxu0 %v370
      %v463 = vpop.f32.mrb[0].mxu0
      %v464 = vadd.f32 %v272, %v463
      %v465 = vpop.f32.mrb[0].mxu0
      %v466 = vpop.f32.mrb[0].mxu0
      %v467 = vadd.f32 %v272, %v466
      %v468 = vpop.f32.mrb[0].mxu0
      %469 = vmatprep.mubr.bf16.mxu0 0
      %470 = vmatmul.mubr.bf16.gmra.mrb[0].mxu0 %v373
      %v471 = vpop.f32.mrb[0].mxu0
      %v472 = vadd.f32 %v272, %v471
      %v473 = vpop.f32.mrb[0].mxu0
      %v474 = vpop.f32.mrb[0].mxu0
      %v475 = vadd.f32 %v272, %v474
      %v476 = vpop.f32.mrb[0].mxu0
      %477 = vmatprep.mubr.bf16.mxu0 0
      %478 = vmatmul.mubr.bf16.gmra.mrb[0].mxu0 %v376
      %v479 = vpop.f32.mrb[0].mxu0
      %v480 = vadd.f32 %v272, %v479
      %v481 = vpop.f32.mrb[0].mxu0
      %v482 = vpop.f32.mrb[0].mxu0
      %v483 = vadd.f32 %v272, %v482
      %v484 = vpop.f32.mrb[0].mxu0
      %485 = vmatprep.mubr.bf16.mxu0 0
      %486 = vmatmul.mubr.bf16.gmra.mrb[0].mxu0 %v379
      %v487 = vpop.f32.mrb[0].mxu0
      %v488 = vadd.f32 %v272, %v487
      %v489 = vpop.f32.mrb[0].mxu0
      %v490 = vpop.f32.mrb[0].mxu0
      %v491 = vadd.f32 %v272, %v490
      %v492 = vpop.f32.mrb[0].mxu0
      %493 = vmatprep.mubr.bf16.mxu0 0
      %494 = vmatmul.mubr.bf16.gmra.mrb[0].mxu0 %v382
      %v495 = vpop.f32.mrb[0].mxu0
      %v496 = vadd.f32 %v272, %v495
      %v497 = vpop.f32.mrb[0].mxu0
      %v498 = vpop.f32.mrb[0].mxu0
      %v499 = vadd.f32 %v272, %v498
      %v500 = vpop.f32.mrb[0].mxu0
      %501 = vmatprep.mubr.bf16.mxu0 0
      %502 = vmatmul.mubr.bf16.gmra.mrb[0].mxu0 %v385
      %v503 = vpop.f32.mrb[0].mxu0
      %v504 = vadd.f32 %v272, %v503
      %v505 = vpop.f32.mrb[0].mxu0
      %v506 = vpop.f32.mrb[0].mxu0
      %v507 = vadd.f32 %v272, %v506
      %v508 = vpop.f32.mrb[0].mxu0
      %509 = vmatprep.mubr.bf16.mxu0 0
      %510 = vmatmul.mubr.bf16.gmra.mrb[0].mxu0 %v388
      %v511 = vpop.f32.mrb[0].mxu0
      %v512 = vadd.f32 %v272, %v511
      %v513 = vpop.f32.mrb[0].mxu0
      %v514 = vpop.f32.mrb[0].mxu0
      %v515 = vadd.f32 %v272, %v514
      %v516 = vpop.f32.mrb[0].mxu0
      %517 = vmatprep.mubr.bf16.mxu0 0
      %518 = vmatmul.mubr.bf16.gmra.mrb[0].mxu0 %v391
      %v519 = vpop.f32.mrb[0].mxu0
      %v520 = vadd.f32 %v272, %v519
      %v521 = vpop.f32.mrb[0].mxu0
      %v522 = vpop.f32.mrb[0].mxu0
      %v523 = vadd.f32 %v272, %v522
      %v524 = vpop.f32.mrb[0].mxu0
      %525 = vmatprep.mubr.bf16.mxu0 0
      %526 = vmatmul.mubr.bf16.gmra.mrb[0].mxu0 %v394
      %v527 = vpop.f32.mrb[0].mxu0
      %v528 = vadd.f32 %v272, %v527
      %v529 = vpop.f32.mrb[0].mxu0
      %v530 = vpop.f32.mrb[0].mxu0
      %v531 = vadd.f32 %v272, %v530
      %v532 = vpop.f32.mrb[0].mxu0
      %533 = vmatprep.mubr.bf16.mxu0 0
      %534 = vmatmul.mubr.bf16.gmra.mrb[0].mxu0 %v397
      %v535 = vpop.f32.mrb[0].mxu0
      %v536 = vadd.f32 %v272, %v535
      %v537 = vpop.f32.mrb[0].mxu0
      %v538 = vpop.f32.mrb[0].mxu0
      %v539 = vadd.f32 %v272, %v538
      %v540 = vpop.f32.mrb[0].mxu0
      %541 = vmatprep.mubr.bf16.mxu0 0
      %542 = vmatmul.mubr.bf16.gmra.mrb[0].mxu0 %v400
      %v543 = vpop.f32.mrb[0].mxu0
      %v544 = vadd.f32 %v272, %v543
      %v545 = vpop.f32.mrb[0].mxu0
      %v546 = vpop.f32.mrb[0].mxu0
      %v547 = vadd.f32 %v272, %v546
      %v548 = vpop.f32.mrb[0].mxu0
      %549 = vmatprep.mubr.bf16.mxu0 0
      %550 = vmatmul.mubr.bf16.gmra.mrb[0].mxu0 %v403
      %v551 = vpop.f32.mrb[0].mxu0
      %v552 = vadd.f32 %v272, %v551
      %v553 = vpop.f32.mrb[0].mxu0
      %v554 = vpop.f32.mrb[0].mxu0
      %v555 = vadd.f32 %v272, %v554
      %v556 = vpop.f32.mrb[0].mxu0
      %557 = vmatprep.mubr.bf16.mxu0 0
      %558 = vmatmul.mubr.bf16.gmra.mrb[0].mxu0 %v406
      %v559 = vpop.f32.mrb[0].mxu0
      %v560 = vadd.f32 %v272, %v559
      %v561 = vpop.f32.mrb[0].mxu0
      %v562 = vpop.f32.mrb[0].mxu0
      %v563 = vadd.f32 %v272, %v562
      %v564 = vpop.f32.mrb[0].mxu0
      %565 = vmatprep.mubr.bf16.mxu0 0
      %566 = vmatmul.mubr.bf16.gmra.mrb[0].mxu0 %v409
      %v567 = vpop.f32.mrb[0].mxu0
      %v568 = vadd.f32 %v272, %v567
      %v569 = vpop.f32.mrb[0].mxu0
      %v570 = vpop.f32.mrb[0].mxu0
      %v571 = vadd.f32 %v272, %v570
      %v572 = vpop.f32.mrb[0].mxu0
      %573 = vmatprep.mubr.bf16.mxu0 0
      %574 = vmatmul.mubr.bf16.gmra.mrb[0].mxu0 %v412
      %v575 = vpop.f32.mrb[0].mxu0
      %v576 = vadd.f32 %v272, %v575
      %v577 = vpop.f32.mrb[0].mxu0
      %v578 = vpop.f32.mrb[0].mxu0
      %v579 = vadd.f32 %v272, %v578
      %v580 = vpop.f32.mrb[0].mxu0
      %581 = vdwg.mxu0
      %v582 = vmax.f32 %v456, 0.0
      %v583 = vmax.f32 %v459, 0.0
      %v584 = vmax.f32 %v464, 0.0
      %v585 = vmax.f32 %v467, 0.0
      %v586 = vmax.f32 %v472, 0.0
      %v587 = vmax.f32 %v475, 0.0
      %v588 = vmax.f32 %v480, 0.0
      %v589 = vmax.f32 %v483, 0.0
      %v590 = vmax.f32 %v488, 0.0
      %v591 = vmax.f32 %v491, 0.0
      %v592 = vmax.f32 %v496, 0.0
      %v593 = vmax.f32 %v499, 0.0
      %v594 = vmax.f32 %v504, 0.0
      %v595 = vmax.f32 %v507, 0.0
      %v596 = vmax.f32 %v512, 0.0
      %v597 = vmax.f32 %v515, 0.0
      %v598 = vmax.f32 %v520, 0.0
      %v599 = vmax.f32 %v523, 0.0
      %v600 = vmax.f32 %v528, 0.0
      %v601 = vmax.f32 %v531, 0.0
      %v602 = vmax.f32 %v536, 0.0
      %v603 = vmax.f32 %v539, 0.0
      %v604 = vmax.f32 %v544, 0.0
      %v605 = vmax.f32 %v547, 0.0
      %v606 = vmax.f32 %v552, 0.0
      %v607 = vmax.f32 %v555, 0.0
      %v608 = vmax.f32 %v560, 0.0
      %v609 = vmax.f32 %v563, 0.0
      %v610 = vmax.f32 %v568, 0.0
      %v611 = vmax.f32 %v571, 0.0
      %v612 = vmax.f32 %v576, 0.0
      %v613 = vmax.f32 %v579, 0.0
      %vm614 = vcmask 64512
      %615 = vst.msk [vmem:[%s228] sm:$0xff] %vm614, %v582
      %616 = vst.msk [vmem:[%s228 + $0x8] sm:$0xff] %vm614, %v583
      %617 = vst.msk [vmem:[%s228 + $0x10] sm:$0xff] %vm614, %v584
      %618 = vst.msk [vmem:[%s228 + $0x18] sm:$0xff] %vm614, %v585
      %619 = vst.msk [vmem:[%s228 + $0x20] sm:$0xff] %vm614, %v586
      %620 = vst.msk [vmem:[%s228 + $0x28] sm:$0xff] %vm614, %v587
      %621 = vst.msk [vmem:[%s228 + $0x30] sm:$0xff] %vm614, %v588
      %622 = vst.msk [vmem:[%s228 + $0x38] sm:$0xff] %vm614, %v589
      %623 = vst.msk [vmem:[%s228 + $0x40] sm:$0xff] %vm614, %v590
      %624 = vst.msk [vmem:[%s228 + $0x48] sm:$0xff] %vm614, %v591
      %625 = vst.msk [vmem:[%s228 + $0x50] sm:$0xff] %vm614, %v592
      %626 = vst.msk [vmem:[%s228 + $0x58] sm:$0xff] %vm614, %v593
      %627 = vst.msk [vmem:[%s228 + $0x60] sm:$0xff] %vm614, %v594
      %628 = vst.msk [vmem:[%s228 + $0x68] sm:$0xff] %vm614, %v595
      %629 = vst.msk [vmem:[%s228 + $0x70] sm:$0xff] %vm614, %v596
      %630 = vst.msk [vmem:[%s228 + $0x78] sm:$0xff] %vm614, %v597
      %631 = vst.msk [vmem:[%s228 + $0x80] sm:$0xff] %vm614, %v598
      %632 = vst.msk [vmem:[%s228 + $0x88] sm:$0xff] %vm614, %v599
      %633 = vst.msk [vmem:[%s228 + $0x90] sm:$0xff] %vm614, %v600
      %634 = vst.msk [vmem:[%s228 + $0x98] sm:$0xff] %vm614, %v601
      %635 = vst.msk [vmem:[%s228 + $0xa0] sm:$0xff] %vm614, %v602
      %636 = vst.msk [vmem:[%s228 + $0xa8] sm:$0xff] %vm614, %v603
      %637 = vst.msk [vmem:[%s228 + $0xb0] sm:$0xff] %vm614, %v604
      %638 = vst.msk [vmem:[%s228 + $0xb8] sm:$0xff] %vm614, %v605
      %639 = vst.msk [vmem:[%s228 + $0xc0] sm:$0xff] %vm614, %v606
      %640 = vst.msk [vmem:[%s228 + $0xc8] sm:$0xff] %vm614, %v607
      %641 = vst.msk [vmem:[%s228 + $0xd0] sm:$0xff] %vm614, %v608
      %642 = vst.msk [vmem:[%s228 + $0xd8] sm:$0xff] %vm614, %v609
      %643 = vst.msk [vmem:[%s228 + $0xe0] sm:$0xff] %vm614, %v610
      %644 = vst.msk [vmem:[%s228 + $0xe8] sm:$0xff] %vm614, %v611
      %645 = vst.msk [vmem:[%s228 + $0xf0] sm:$0xff] %vm614, %v612
      %646 = vst.msk [vmem:[%s228 + $0xf8] sm:$0xff] %vm614, %v613
      %s647 = smul.u32 32, %s19
      %p648 = scmp.lt.s32.totalorder %s18, 0
      %s649 = scalar_select %p648, %s18, 0
      %p650 = scmp.lt.s32.totalorder %s647, 63
      %s651 = scalar_select %p650, %s647, 63
      %s652 = smul.addr %s649, 64
      %s653 = sadd.s32 %s651, %s652
      %s654 = smul.addr %s653, 8
      %s655 = scalar_lea.vmem %s3, %s654
      // Predicated region
      $region33: #{autoencoder3d_forward.6} parent=31 // pred_check
        %p656 = pneg %p121
      $region34: #{autoencoder3d_forward.6} parent=31 // pred_check_branch
        %658 = sbr.rel (%p656) target = $region36
      $region35: #{autoencoder3d_forward.6} parent=31 // pred_region
        %s659 = smul.u32 32, %s19
      $region36: #{autoencoder3d_forward.6} parent=31 // pred_fallthru
        _
    $region32: #{autoencoder3d_forward.6} parent=5 // pred_fallthru
      _
    %p660 = scmp.le.s32.totalorder 2, %s9
    // Predicated region
    $region37: #{autoencoder3d_forward.6} parent=5 // pred_check
      %p661 = pneg %p660
    $region38: #{autoencoder3d_forward.6} parent=5 // pred_check_branch
      %663 = sbr.rel (%p661) target = $region40
    $region39: #{autoencoder3d_forward.6} parent=5 // pred_region
      %s664 = ssub.s32 %s9, 2
      // Predicated region
      $region41: #{autoencoder3d_forward.6} parent=39 // pred_check
        %p665 = pneg %p127
      $region42: #{autoencoder3d_forward.6} parent=39 // pred_check_branch
        %667 = sbr.rel (%p665) target = $region44
      $region43: #{autoencoder3d_forward.6} parent=39 // pred_region
        %s668 = smul.u32 32, %s21
        %p669 = scmp.lt.s32.totalorder %s20, 0
        %s670 = scalar_select %p669, %s20, 0
        %p671 = scmp.lt.s32.totalorder %s668, 63
        %s672 = scalar_select %p671, %s668, 63
        %s673 = smul.addr %s670, 64
        %s674 = sadd.s32 %s672, %s673
        %s675 = smul.addr %s674, 8
        %s676 = scalar_lea.vmem %s3, %s675
      $region44: #{autoencoder3d_forward.6} parent=39 // pred_fallthru
        _
    $region40: #{autoencoder3d_forward.6} parent=5 // pred_fallthru
      _
  $region6: #{autoencoder3d_forward.6} parent=0 // loop_footer
    %s13 = sadd.s32 1, %s9
  $region7: #{autoencoder3d_forward.6} parent=0 // loop_footer_branch
    %8 = sbr.rel target = $region3
  $region8: #{autoencoder3d_forward.6} parent=0 // loop_exit
    _

// kernel: autoencoder3d_forward.7
$region0: #{autoencoder3d_forward.7}
  #allocation0 [shape = 'u32[]', space=smem, size = 0x4, offset = 0x4, fixed_abs, tag = 'smem constant byte address 0x4 - core index']
  #allocation1 [shape = 'u32[144,128]{1,0:T(1,128)}', space=vmem, size = 0x12000, scoped, tag = 'internal scratch']
  %s0 = inlined_call_operand.vmem [shape: bf16[1,64,216], index: 0, kind: input, shape index: {}]
  %s1 = inlined_call_operand.vmem [shape: bf16[1,216,4], index: 1, kind: input, shape index: {}]
  %s2 = inlined_call_operand.vmem [shape: f32[1,4], index: 2, kind: input, shape index: {}]
  %s3 = inlined_call_operand.vmem [shape: f32[1,64,4], index: 3, kind: output, shape index: {}]
  %s4 = sld [smem:[#allocation0]]
  $region45: #{autoencoder3d_forward.7} parent=0
    _
  %s6 = ssub.s32 1, %s4
  %s7 = scalar_select 0, %s6, %s4
  loop: start=0, step=1, limit=4
  $region2: #{autoencoder3d_forward.7} parent=0 // loop_pre_header
    _
  $region3: #{autoencoder3d_forward.7} parent=0 // loop_header
    %s9 = sphi 0, %s13
    %p10 = scmp.ge.s32.totalorder %s9, 4
    %s16 = sphi 0, %s28
    %s17 = sphi 0, %s24
    %s18 = sphi 0, %s16
    %s19 = sphi 0, %s17
    %s20 = sphi 0, %s18
    %s21 = sphi 0, %s19
    %s33 = sphi 0, %s35
    %s36 = sphi 0, %s33
    %s37 = sphi 0, %s36
    %s53 = sphi 0, %s37
    %s59 = sphi 0, %s61
    %s62 = sphi 0, %s59
    %s63 = sphi 0, %s62
    %s79 = sphi 0, %s63
    %s83 = sphi 0, %s83
    %s85 = sphi 0, %s83
    %s86 = sphi 0, %s85
    %s100 = sphi 0, %s86
    %s108 = sphi 0, %s110
    %s111 = sphi 0, %s108
    %s112 = sphi 0, %s111
    %s128 = sphi 0, %s112
  $region4: #{autoencoder3d_forward.7} parent=0 // loop_header_branch
    %12 = sbr.rel (%p10) target = $region8
  $region5: #{autoencoder3d_forward.7} parent=0 // loop_body
    %s14 = ssub.s32 %s9, 1
    %s15 = ssub.s32 %s9, 2
    %s22 = sadd.s32 1, %s17
    %p23 = scmp.ge.s32.totalorder %s22, 2
    %s24 = scalar_select %p23, 0, %s22
    %s25 = sadd.s32 1, %s16
    %s26 = scalar_select %p23, %s25, %s16
    %p27 = scmp.ge.s32.totalorder %s26, 1
    %s28 = scalar_select %p27, 0, %s26
    %s29 = ssub.s32 %s16, %s28
    %s30 = ssub.s32 %s17, %s24
    %s31 = sor.u32 %s29, %s30
    %p32 = scmp.eq.s32.totalorder %s31, 0
    %s34 = sadd.s32 %s33, 1
    %s35 = scalar_select %p32, %s33, %s34
    %p38 = pneg %p32
    %p39 = scmp.eq.s32.totalorder %s9, 1
    %p40 = por %p38, %p39
    %p41 = scmp.ne.s32.totalorder %s33, %s36
    %p42 = scmp.eq.s32.totalorder %s9, 0
    %p43 = por %p41, %p42
    %p44 = scmp.ne.s32.totalorder %s33, %s36
    %p45 = scmp.eq.s32.totalorder %s14, 1
    %p46 = por %p44, %p45
    %p47 = scmp.ne.s32.totalorder %s36, %s37
    %p48 = scmp.eq.s32.totalorder %s14, 0
    %p49 = por %p47, %p48
    %p50 = scmp.ne.s32.totalorder %s36, %s37
    %p51 = scmp.eq.s32.totalorder %s15, 1
    %p52 = por %p50, %p51
    %p54 = scmp.ne.s32.totalorder %s37, %s53
    %p55 = scmp.eq.s32.totalorder %s15, 0
    %p56 = por %p54, %p55
    %s57 = ssub.s32 %s16, %s28
    %p58 = scmp.eq.s32.totalorder %s57, 0
    %s60 = sadd.s32 %s59, 1
    %s61 = scalar_select %p58, %s59, %s60
    %p64 = pneg %p58
    %p65 = scmp.eq.s32.totalorder %s9, 1
    %p66 = por %p64, %p65
    %p67 = scmp.ne.s32.totalorder %s59, %s62
    %p68 = scmp.eq.s32.totalorder %s9, 0
    %p69 = por %p67, %p68
    %p70 = scmp.ne.s32.totalorder %s59, %s62
    %p71 = scmp.eq.s32.totalorder %s14, 1
    %p72 = por %p70, %p71
    %p73 = scmp.ne.s32.totalorder %s62, %s63
    %p74 = scmp.eq.s32.totalorder %s14, 0
    %p75 = por %p73, %p74
    %p76 = scmp.ne.s32.totalorder %s62, %s63
    %p77 = scmp.eq.s32.totalorder %s15, 1
    %p78 = por %p76, %p77
    %p80 = scmp.ne.s32.totalorder %s63, %s79
    %p81 = scmp.eq.s32.totalorder %s15, 0
    %p82 = por %p80, %p81
    %s84 = sadd.s32 %s83, 1
    %p87 = scmp.eq.s32.totalorder %s9, 1
    %p88 = scmp.ne.s32.totalorder %s83, %s85
    %p89 = scmp.eq.s32.totalorder %s9, 0
    %p90 = por %p88, %p89
    %p91 = scmp.ne.s32.totalorder %s83, %s85
    %p92 = scmp.eq.s32.totalorder %s14, 1
    %p93 = por %p91, %p92
    %p94 = scmp.ne.s32.totalorder %s85, %s86
    %p95 = scmp.eq.s32.totalorder %s14, 0
    %p96 = por %p94, %p95
    %p97 = scmp.ne.s32.totalorder %s85, %s86
    %p98 = scmp.eq.s32.totalorder %s15, 1
    %p99 = por %p97, %p98
    %p101 = scmp.ne.s32.totalorder %s86, %s100
    %p102 = scmp.eq.s32.totalorder %s15, 0
    %p103 = por %p101, %p102
    %s104 = ssub.s32 %s16, %s28
    %s105 = ssub.s32 %s17, %s24
    %s106 = sor.u32 %s104, %s105
    %p107 = scmp.eq.s32.totalorder %s106, 0
    %s109 = sadd.s32 %s108, 1
    %s110 = scalar_select %p107, %s108, %s109
    %p113 = pneg %p107
    %p114 = scmp.eq.s32.totalorder %s9, 1
    %p115 = por %p113, %p114
    %p116 = scmp.ne.s32.totalorder %s108, %s111
    %p117 = scmp.eq.s32.totalorder %s9, 0
    %p118 = por %p116, %p117
    %p119 = scmp.ne.s32.totalorder %s108, %s111
    %p120 = scmp.eq.s32.totalorder %s14, 1
    %p121 = por %p119, %p120
    %p122 = scmp.ne.s32.totalorder %s111, %s112
    %p123 = scmp.eq.s32.totalorder %s14, 0
    %p124 = por %p122, %p123
    %p125 = scmp.ne.s32.totalorder %s111, %s112
    %p126 = scmp.eq.s32.totalorder %s15, 1
    %p127 = por %p125, %p126
    %p129 = scmp.ne.s32.totalorder %s112, %s128
    %p130 = scmp.eq.s32.totalorder %s15, 0
    %p131 = por %p129, %p130
    %p132 = scmp.le.s32.totalorder 1, %s9
    %p133 = scmp.lt.s32.totalorder %s9, 3
    %p134 = pnand %p132, %p133
    %p135 = pneg %p134
    // Predicated region
    $region9: #{autoencoder3d_forward.7} parent=5 // pred_check
      _
    $region10: #{autoencoder3d_forward.7} parent=5 // pred_check_branch
      %137 = sbr.rel (%p134) target = $region12
    $region11: #{autoencoder3d_forward.7} parent=5 // pred_region
      %s138 = ssub.s32 %s9, 1
      // Predicated region
      $region13: #{autoencoder3d_forward.7} parent=11 // pred_check
        %p139 = pneg %p75
      $region14: #{autoencoder3d_forward.7} parent=11 // pred_check_branch
        %141 = sbr.rel (%p139) target = $region16
      $region15: #{autoencoder3d_forward.7} parent=11 // pred_region
        %p142 = scmp.lt.s32.totalorder %s18, 0
        %s143 = scalar_select %p142, %s18, 0
        %s144 = smul.addr %s143, 27
        %s145 = smul.addr %s144, 4
        %s146 = scalar_lea.vmem %s1, %s145
      $region16: #{autoencoder3d_forward.7} parent=11 // pred_fallthru
        _
      // Predicated region
      $region17: #{autoencoder3d_forward.7} parent=11 // pred_check
        %p147 = pneg %p96
      $region18: #{autoencoder3d_forward.7} parent=11 // pred_check_branch
        %149 = sbr.rel (%p147) target = $region20
      $region19: #{autoencoder3d_forward.7} parent=11 // pred_region
        _
      $region20: #{autoencoder3d_forward.7} parent=11 // pred_fallthru
        _
    $region12: #{autoencoder3d_forward.7} parent=5 // pred_fallthru
      _
    %p150 = scmp.lt.s32.totalorder %s9, 2
    // Predicated region
    $region21: #{autoencoder3d_forward.7} parent=5 // pred_check
      %p151 = pneg %p150
    $region22: #{autoencoder3d_forward.7} parent=5 // pred_check_branch
      %153 = sbr.rel (%p151) target = $region24
    $region23: #{autoencoder3d_forward.7} parent=5 // pred_region
      // Predicated region
      $region25: #{autoencoder3d_forward.7} parent=23 // pred_check
        %p154 = pneg %p43
      $region26: #{autoencoder3d_forward.7} parent=23 // pred_check_branch
        %156 = sbr.rel (%p154) target = $region28
      $region27: #{autoencoder3d_forward.7} parent=23 // pred_region
        %s157 = smul.u32 4, %s17
        %p158 = scmp.lt.s32.totalorder %s16, 0
        %s159 = scalar_select %p158, %s16, 0
        %p160 = scmp.lt.s32.totalorder %s157, 7
        %s161 = scalar_select %p160, %s157, 7
        %s162 = smul.addr %s161, 2
        %s163 = smul.addr %s159, 16
        %s164 = sadd.s32 %s162, %s163
        %s165 = smul.addr %s164, 4
        %s166 = scalar_lea.vmem %s0, %s165
        %s167 = smul.u32 4, %s17
      $region28: #{autoencoder3d_forward.7} parent=23 // pred_fallthru
        _
    $region24: #{autoencoder3d_forward.7} parent=5 // pred_fallthru
      _
    %p168 = scmp.le.s32.totalorder 1, %s9
    %p169 = scmp.lt.s32.totalorder %s9, 3
    %p170 = pnand %p168, %p169
    %p171 = pneg %p170
    // Predicated region
    $region29: #{autoencoder3d_forward.7} parent=5 // pred_check
      _
    $region30: #{autoencoder3d_forward.7} parent=5 // pred_check_branch
      %173 = sbr.rel (%p170) target = $region32
    $region31: #{autoencoder3d_forward.7} parent=5 // pred_region
      %s174 = ssub.s32 %s9, 1
      %s175 = smul.u32 4, %s19
      %p176 = scmp.lt.s32.totalorder %s18, 0
      %s177 = scalar_select %p176, %s18, 0
      %p178 = scmp.lt.s32.totalorder %s175, 7
      %s179 = scalar_select %p178, %s175, 7
      %s180 = smul.addr %s179, 2
      %s181 = smul.addr %s177, 16
      %s182 = sadd.s32 %s180, %s181
      %s183 = smul.addr %s182, 4
      %s184 = scalar_lea.vmem %s0, %s183
      %p185 = pneg %p49
      %p186 = pneg %p46
      %p187 = scmp.lt.s32.totalorder %s18, 0
      %s188 = scalar_select %p187, %s18, 0
      %s189 = smul.addr %s188, 27
      %s190 = smul.addr %s189, 4
      %s191 = scalar_lea.vmem %s1, %s190
      %p192 = pneg %p75
      %p193 = pneg %p72
      %p194 = pneg %p96
      %p195 = pneg %p93
      %p196 = pneg %p124
      %p197 = pneg %p121
      %s198 = smul.u32 4, %s19
      %p199 = scmp.lt.s32.totalorder %s18, 0
      %s200 = scalar_select %p199, %s18, 0
      %p201 = scmp.lt.s32.totalorder %s198, 7
      %s202 = scalar_select %p201, %s198, 7
      %s203 = smul.addr %s200, 8
      %s204 = sadd.s32 %s202, %s203
      %s205 = smul.addr %s204, 8
      %s206 = scalar_lea.vmem %s3, %s205
      %s207 = smul.u32 4, %s19
      %p208 = scmp.lt.s32.totalorder %s18, 0
      %s209 = scalar_select %p208, %s18, 0
      %p210 = scmp.lt.s32.totalorder %s207, 7
      %s211 = scalar_select %p210, %s207, 7
      %s212 = smul.addr %s211, 2
      %s213 = smul.addr %s209, 16
      %s214 = sadd.s32 %s212, %s213
      %s215 = smul.addr %s214, 4
      %s216 = scalar_lea.vmem %s0, %s215
      %s217 = smul.u32 4, %s19
      %p218 = scmp.lt.s32.totalorder %s18, 0
      %s219 = scalar_select %p218, %s18, 0
      %s220 = smul.addr %s219, 27
      %s221 = smul.addr %s220, 4
      %s222 = scalar_lea.vmem %s1, %s221
      %s223 = smul.u32 4, %s19
      %p224 = scmp.lt.s32.totalorder %s18, 0
      %s225 = scalar_select %p224, %s18, 0
      %p226 = scmp.lt.s32.totalorder %s223, 7
      %s227 = scalar_select %p226, %s223, 7
      %s228 = smul.addr %s225, 8
      %s229 = sadd.s32 %s227, %s228
      %s230 = smul.addr %s229, 8
      %s231 = scalar_lea.vmem %s3, %s230
      %s232 = smul.u32 4, %s19
      %v234 = vld [vmem:[%s216] sm:$0xff]
      %v235 = vld [vmem:[%s216 + $0x8] sm:$0xff]
      %v236 = vld [vmem:[%s216 + $0x10] sm:$0xff]
      %v237 = vld [vmem:[%s216 + $0x18] sm:$0xff]
      %v238 = vld [vmem:[%s222] sm:$0xf]
      %v239 = vld [vmem:[%s222 + $0x4] sm:$0xf]
      %v240 = vld [vmem:[%s222 + $0x8] sm:$0xf]
      %v241 = vld [vmem:[%s222 + $0xc] sm:$0xf]
      %v242 = vld [vmem:[%s222 + $0x10] sm:$0xf]
      %v243 = vld [vmem:[%s222 + $0x14] sm:$0xf]
      %v244 = vld [vmem:[%s222 + $0x18] sm:$0xf]
      %v245 = vld [vmem:[%s222 + $0x1c] sm:$0xf]
      %v246 = vld [vmem:[%s222 + $0x20] sm:$0xf]
      %v247 = vld [vmem:[%s222 + $0x24] sm:$0xf]
      %v248 = vld [vmem:[%s222 + $0x28] sm:$0xf]
      %v249 = vld [vmem:[%s222 + $0x2c] sm:$0xf]
      %v250 = vld [vmem:[%s222 + $0x30] sm:$0xf]
      %v251 = vld [vmem:[%s222 + $0x34] sm:$0xf]
      %v252 = vld [vmem:[%s222 + $0x38] sm:$0xf]
      %v253 = vld [vmem:[%s222 + $0x3c] sm:$0xf]
      %v254 = vld [vmem:[%s222 + $0x40] sm:$0xf]
      %v255 = vld [vmem:[%s222 + $0x44] sm:$0xf]
      %v256 = vld [vmem:[%s222 + $0x48] sm:$0xf]
      %v257 = vld [vmem:[%s222 + $0x4c] sm:$0xf]
      %v258 = vld [vmem:[%s222 + $0x50] sm:$0xf]
      %v259 = vld [vmem:[%s222 + $0x54] sm:$0xf]
      %v260 = vld [vmem:[%s222 + $0x58] sm:$0xf]
      %v261 = vld [vmem:[%s222 + $0x5c] sm:$0xf]
      %v262 = vld [vmem:[%s222 + $0x60] sm:$0xf]
      %v263 = vld [vmem:[%s222 + $0x64] sm:$0xf]
      %v264 = vld [vmem:[%s222 + $0x68] sm:$0xf]
      %v265 = vld [vmem:[%s2] sm:$0x1]
      %v267 = vlaneseq
      %v268 = vshrl.u32 %v267, 7
      %v269 = vsub.s32 0, %v268
      %v270 = vrot.slane %v265, %v269
      %v276 = vunpack.c.l.b16 %v234
      %v277 = vunpack.c.h.b16 %v234
      %v278 = vunpack.c.l.b16 %v235
      %v279 = vunpack.c.h.b16 %v235
      %v280 = vunpack.c.l.b16 %v236
      %v281 = vunpack.c.h.b16 %v236
      %v282 = vunpack.c.l.b16 %v237
      %v283 = vunpack.c.h.b16 %v237
      %v284 = vpack.c.b16 %v278, %v276
      %v285 = vpack.c.b16 %v279, %v277
      %v286 = vpack.c.b16 %v282, %v280
      %v287 = vpack.c.b16 %v283, %v281
      %v317 = vunpack.c.l.b16 %v238
      %v318 = vunpack.c.l.b16 %v239
      %v319 = vunpack.c.l.b16 %v240
      %v320 = vunpack.c.l.b16 %v241
      %v321 = vunpack.c.l.b16 %v242
      %v322 = vunpack.c.l.b16 %v243
      %v323 = vunpack.c.l.b16 %v244
      %v324 = vunpack.c.l.b16 %v245
      %v325 = vunpack.c.l.b16 %v246
      %v326 = vunpack.c.l.b16 %v247
      %v327 = vunpack.c.l.b16 %v248
      %v328 = vunpack.c.l.b16 %v249
      %v329 = vunpack.c.l.b16 %v250
      %v330 = vunpack.c.l.b16 %v251
      %v331 = vunpack.c.l.b16 %v252
      %v332 = vunpack.c.l.b16 %v253
      %v333 = vunpack.c.l.b16 %v254
      %v334 = vunpack.c.l.b16 %v255
      %v335 = vunpack.c.l.b16 %v256
      %v336 = vunpack.c.l.b16 %v257
      %v337 = vunpack.c.l.b16 %v258
      %v338 = vunpack.c.l.b16 %v259
      %v339 = vunpack.c.l.b16 %v260
      %v340 = vunpack.c.l.b16 %v261
      %v341 = vunpack.c.l.b16 %v262
      %v342 = vunpack.c.l.b16 %v263
      %v343 = vunpack.c.l.b16 %v264
      %v344 = vpack.c.b16 %v318, %v317
      %v345 = vpack.c.b16 %v320, %v319
      %v346 = vpack.c.b16 %v322, %v321
      %v347 = vpack.c.b16 %v324, %v323
      %v348 = vpack.c.b16 %v326, %v325
      %v349 = vpack.c.b16 %v328, %v327
      %v350 = vpack.c.b16 %v330, %v329
      %v351 = vpack.c.b16 %v332, %v331
      %v352 = vpack.c.b16 %v334, %v333
      %v353 = vpack.c.b16 %v336, %v335
      %v354 = vpack.c.b16 %v338, %v337
      %v355 = vpack.c.b16 %v340, %v339
      %v356 = vpack.c.b16 %v342, %v341
      %v357 = vpack.c.b16 %v343, %v343
      %vm371 = vcmask 719872
      %v373 = vsel %vm371, %v285, 0
      %v376 = vsel %vm371, %v287, 0
      %vm378 = vcmask 1043456
      %v380 = vsel %vm378, %v357, 0
      %382 = vmatprep.subr.bf16.mxu0 0
      %383 = vmatpush1.bf16.msra.mxu0 %v344
      %384 = vmatprep.subr.bf16.mxu0 0
      %385 = vmatpush1.bf16.msra.mxu0 %v345
      %386 = vmatprep.subr.bf16.mxu0 0
      %387 = vmatpush1.bf16.msra.mxu0 %v346
      %388 = vmatprep.subr.bf16.mxu0 0
      %389 = vmatpush1.bf16.msra.mxu0 %v347
      %390 = vmatprep.subr.bf16.mxu0 0
      %391 = vmatpush1.bf16.msra.mxu0 %v348
      %392 = vmatprep.subr.bf16.mxu0 0
      %393 = vmatpush1.bf16.msra.mxu0 %v349
      %394 = vmatprep.subr.bf16.mxu0 0
      %395 = vmatpush1.bf16.msra.mxu0 %v350
      %396 = vmatprep.subr.bf16.mxu0 0
      %397 = vmatpush1.bf16.msra.mxu0 %v351
      %398 = vmatprep.subr.bf16.mxu0 0
      %399 = vmatpush1.bf16.msra.mxu0 %v352
      %400 = vmatprep.subr.bf16.mxu0 0
      %401 = vmatpush1.bf16.msra.mxu0 %v353
      %402 = vmatprep.subr.bf16.mxu0 0
      %403 = vmatpush1.bf16.msra.mxu0 %v354
      %404 = vmatprep.subr.bf16.mxu0 0
      %405 = vmatpush1.bf16.msra.mxu0 %v355
      %406 = vmatprep.subr.bf16.mxu0 0
      %407 = vmatpush1.bf16.msra.mxu0 %v356
      %408 = vmatprep.subr.bf16.mxu0 0
      %409 = vmatpush1.bf16.msra.mxu0 %v380
      %410 = vmatprep.subr.bf16.mxu0 0
      %411 = vmatpush1.bf16.msra.mxu0 0
      %412 = vmatprep.subr.bf16.mxu0 0
      %413 = vmatpush1.bf16.msra.mxu0 0
      %414 = vmatprep.mubr.bf16.mxu0 %v373
      %415 = vmatmul.mubr.bf16.gmra.mrb[0].mxu0 %v284
      %v416 = vpop.f32.mrb[0].mxu0
      %v417 = vadd.f32 %v270, %v416
      %v418 = vpop.f32.mrb[0].mxu0
      %v419 = vpop.f32.mrb[0].mxu0
      %v420 = vadd.f32 %v270, %v419
      %v421 = vpop.f32.mrb[0].mxu0
      %422 = vmatprep.mubr.bf16.mxu0 %v376
      %423 = vmatmul.mubr.bf16.gmra.mrb[0].mxu0 %v286
      %v424 = vpop.f32.mrb[0].mxu0
      %v425 = vadd.f32 %v270, %v424
      %v426 = vpop.f32.mrb[0].mxu0
      %v427 = vpop.f32.mrb[0].mxu0
      %v428 = vadd.f32 %v270, %v427
      %v429 = vpop.f32.mrb[0].mxu0
      %430 = vdwg.mxu0
      %v431 = vmax.f32 %v417, 0.0
      %v432 = vmax.f32 %v420, 0.0
      %v433 = vmax.f32 %v425, 0.0
      %v434 = vmax.f32 %v428, 0.0
      %vm435 = vcmask 31744
      %436 = vst.msk [vmem:[%s231] sm:$0xff] %vm435, %v431
      %437 = vst.msk [vmem:[%s231 + $0x8] sm:$0xff] %vm435, %v432
      %438 = vst.msk [vmem:[%s231 + $0x10] sm:$0xff] %vm435, %v433
      %439 = vst.msk [vmem:[%s231 + $0x18] sm:$0xff] %vm435, %v434
      %s440 = smul.u32 4, %s19
      %p441 = scmp.lt.s32.totalorder %s18, 0
      %s442 = scalar_select %p441, %s18, 0
      %p443 = scmp.lt.s32.totalorder %s440, 7
      %s444 = scalar_select %p443, %s440, 7
      %s445 = smul.addr %s442, 8
      %s446 = sadd.s32 %s444, %s445
      %s447 = smul.addr %s446, 8
      %s448 = scalar_lea.vmem %s3, %s447
      // Predicated region
      $region33: #{autoencoder3d_forward.7} parent=31 // pred_check
        %p449 = pneg %p121
      $region34: #{autoencoder3d_forward.7} parent=31 // pred_check_branch
        %451 = sbr.rel (%p449) target = $region36
      $region35: #{autoencoder3d_forward.7} parent=31 // pred_region
        %s452 = smul.u32 4, %s19
      $region36: #{autoencoder3d_forward.7} parent=31 // pred_fallthru
        _
    $region32: #{autoencoder3d_forward.7} parent=5 // pred_fallthru
      _
    %p453 = scmp.le.s32.totalorder 2, %s9
    // Predicated region
    $region37: #{autoencoder3d_forward.7} parent=5 // pred_check
      %p454 = pneg %p453
    $region38: #{autoencoder3d_forward.7} parent=5 // pred_check_branch
      %456 = sbr.rel (%p454) target = $region40
    $region39: #{autoencoder3d_forward.7} parent=5 // pred_region
      %s457 = ssub.s32 %s9, 2
      // Predicated region
      $region41: #{autoencoder3d_forward.7} parent=39 // pred_check
        %p458 = pneg %p127
      $region42: #{autoencoder3d_forward.7} parent=39 // pred_check_branch
        %460 = sbr.rel (%p458) target = $region44
      $region43: #{autoencoder3d_forward.7} parent=39 // pred_region
        %s461 = smul.u32 4, %s21
        %p462 = scmp.lt.s32.totalorder %s20, 0
        %s463 = scalar_select %p462, %s20, 0
        %p464 = scmp.lt.s32.totalorder %s461, 7
        %s465 = scalar_select %p464, %s461, 7
        %s466 = smul.addr %s463, 8
        %s467 = sadd.s32 %s465, %s466
        %s468 = smul.addr %s467, 8
        %s469 = scalar_lea.vmem %s3, %s468
      $region44: #{autoencoder3d_forward.7} parent=39 // pred_fallthru
        _
    $region40: #{autoencoder3d_forward.7} parent=5 // pred_fallthru
      _
  $region6: #{autoencoder3d_forward.7} parent=0 // loop_footer
    %s13 = sadd.s32 1, %s9
  $region7: #{autoencoder3d_forward.7} parent=0 // loop_footer_branch
    %8 = sbr.rel target = $region3
  $region8: #{autoencoder3d_forward.7} parent=0 // loop_exit
    _

// kernel: autoencoder3d_forward.8
$region0: #{autoencoder3d_forward.8}
  #allocation0 [shape = 'u32[]', space=smem, size = 0x4, offset = 0x4, fixed_abs, tag = 'smem constant byte address 0x4 - core index']
  #allocation1 [shape = 'u32[144,128]{1,0:T(1,128)}', space=vmem, size = 0x12000, scoped, tag = 'internal scratch']
  %s0 = inlined_call_operand.vmem [shape: bf16[1,8,108], index: 0, kind: input, shape index: {}]
  %s1 = inlined_call_operand.vmem [shape: bf16[1,108,4], index: 1, kind: input, shape index: {}]
  %s2 = inlined_call_operand.vmem [shape: f32[1,4], index: 2, kind: input, shape index: {}]
  %s3 = inlined_call_operand.vmem [shape: f32[1,8,4], index: 3, kind: output, shape index: {}]
  %s4 = sld [smem:[#allocation0]]
  $region22: #{autoencoder3d_forward.8} parent=0
    _
  %s6 = ssub.s32 1, %s4
  %s7 = scalar_select 0, %s6, %s4
  // Predicated region
  $region2: #{autoencoder3d_forward.8} parent=0 // pred_check
    _
  $region3: #{autoencoder3d_forward.8} parent=0 // pred_check_branch
    %9 = sbr.rel (0) target = $region5
  $region4: #{autoencoder3d_forward.8} parent=0 // pred_region
    _
  $region5: #{autoencoder3d_forward.8} parent=0 // pred_fallthru
    _
  // Predicated region
  $region6: #{autoencoder3d_forward.8} parent=0 // pred_check
    _
  $region7: #{autoencoder3d_forward.8} parent=0 // pred_check_branch
    %11 = sbr.rel (0) target = $region9
  $region8: #{autoencoder3d_forward.8} parent=0 // pred_region
    _
  $region9: #{autoencoder3d_forward.8} parent=0 // pred_fallthru
    _
  // Predicated region
  $region10: #{autoencoder3d_forward.8} parent=0 // pred_check
    _
  $region11: #{autoencoder3d_forward.8} parent=0 // pred_check_branch
    %13 = sbr.rel (0) target = $region13
  $region12: #{autoencoder3d_forward.8} parent=0 // pred_region
    _
  $region13: #{autoencoder3d_forward.8} parent=0 // pred_fallthru
    _
  %v15 = vld [vmem:[%s0] sm:$0xf]
  %v16 = vld [vmem:[%s1] sm:$0xf]
  %v17 = vld [vmem:[%s1 + $0x4] sm:$0xf]
  %v18 = vld [vmem:[%s1 + $0x8] sm:$0xf]
  %v19 = vld [vmem:[%s1 + $0xc] sm:$0xf]
  %v20 = vld [vmem:[%s1 + $0x10] sm:$0xf]
  %v21 = vld [vmem:[%s1 + $0x14] sm:$0xf]
  %v22 = vld [vmem:[%s1 + $0x18] sm:$0xf]
  %v23 = vld [vmem:[%s1 + $0x1c] sm:$0xf]
  %v24 = vld [vmem:[%s1 + $0x20] sm:$0xf]
  %v25 = vld [vmem:[%s1 + $0x24] sm:$0xf]
  %v26 = vld [vmem:[%s1 + $0x28] sm:$0xf]
  %v27 = vld [vmem:[%s1 + $0x2c] sm:$0xf]
  %v28 = vld [vmem:[%s1 + $0x30] sm:$0xf]
  %v29 = vld [vmem:[%s1 + $0x34] sm:$0x3]
  %v30 = vld [vmem:[%s2] sm:$0x1]
  %v32 = vlaneseq
  %v33 = vshrl.u32 %v32, 7
  %v34 = vsub.s32 0, %v33
  %v35 = vrot.slane %v30, %v34
  %v51 = vunpack.c.l.b16 %v16
  %v52 = vunpack.c.l.b16 %v17
  %v53 = vunpack.c.l.b16 %v18
  %v54 = vunpack.c.l.b16 %v19
  %v55 = vunpack.c.l.b16 %v20
  %v56 = vunpack.c.l.b16 %v21
  %v57 = vunpack.c.l.b16 %v22
  %v58 = vunpack.c.l.b16 %v23
  %v59 = vunpack.c.l.b16 %v24
  %v60 = vunpack.c.l.b16 %v25
  %v61 = vunpack.c.l.b16 %v26
  %v62 = vunpack.c.l.b16 %v27
  %v63 = vunpack.c.l.b16 %v28
  %v64 = vunpack.c.l.b16 %v29
  %v65 = vpack.c.b16 %v52, %v51
  %v66 = vpack.c.b16 %v54, %v53
  %v67 = vpack.c.b16 %v56, %v55
  %v68 = vpack.c.b16 %v58, %v57
  %v69 = vpack.c.b16 %v60, %v59
  %v70 = vpack.c.b16 %v62, %v61
  %v71 = vpack.c.b16 %v64, %v63
  %vm78 = vcmask 883712
  %v80 = vsel %vm78, %v15, 0
  %vm82 = vcmask 1045504
  %v84 = vsel %vm82, %v71, 0
  %86 = vmatprep.subr.bf16.mxu0 0
  %87 = vmatpush1.bf16.msra.mxu0 %v65
  %88 = vmatprep.subr.bf16.mxu0 0
  %89 = vmatpush1.bf16.msra.mxu0 %v66
  %90 = vmatprep.subr.bf16.mxu0 0
  %91 = vmatpush1.bf16.msra.mxu0 %v67
  %92 = vmatprep.subr.bf16.mxu0 0
  %93 = vmatpush1.bf16.msra.mxu0 %v68
  %94 = vmatprep.subr.bf16.mxu0 0
  %95 = vmatpush1.bf16.msra.mxu0 %v69
  %96 = vmatprep.subr.bf16.mxu0 0
  %97 = vmatpush1.bf16.msra.mxu0 %v70
  %98 = vmatprep.subr.bf16.mxu0 0
  %99 = vmatpush1.bf16.msra.mxu0 %v84
  %100 = vmatprep.subr.bf16.mxu0 0
  %101 = vmatpush1.bf16.msra.mxu0 0
  %102 = vmatprep.subr.bf16.mxu0 0
  %103 = vmatpush1.bf16.msra.mxu0 0
  %104 = vmatprep.subr.bf16.mxu0 0
  %105 = vmatpush1.bf16.msra.mxu0 0
  %106 = vmatprep.subr.bf16.mxu0 0
  %107 = vmatpush1.bf16.msra.mxu0 0
  %108 = vmatprep.subr.bf16.mxu0 0
  %109 = vmatpush1.bf16.msra.mxu0 0
  %110 = vmatprep.subr.bf16.mxu0 0
  %111 = vmatpush1.bf16.msra.mxu0 0
  %112 = vmatprep.subr.bf16.mxu0 0
  %113 = vmatpush1.bf16.msra.mxu0 0
  %114 = vmatprep.subr.bf16.mxu0 0
  %115 = vmatpush1.bf16.msra.mxu0 0
  %116 = vmatprep.subr.bf16.mxu0 0
  %117 = vmatpush1.bf16.msra.mxu0 0
  %118 = vmatprep.mubr.bf16.mxu0 0
  %119 = vmatmul.mubr.bf16.gmra.mrb[0].mxu0 %v80
  %v120 = vpop.f32.mrb[0].mxu0
  %v121 = vadd.f32 %v35, %v120
  %v122 = vpop.f32.mrb[0].mxu0
  %v123 = vpop.f32.mrb[0].mxu0
  %v124 = vpop.f32.mrb[0].mxu0
  %125 = vdwg.mxu0
  %v126 = vmax.f32 %v121, 0.0
  %vm127 = vcmask 31744
  %128 = vst.msk [vmem:[%s3] sm:$0xff] %vm127, %v126
  // Predicated region
  $region14: #{autoencoder3d_forward.8} parent=0 // pred_check
    _
  $region15: #{autoencoder3d_forward.8} parent=0 // pred_check_branch
    %130 = sbr.rel (0) target = $region17
  $region16: #{autoencoder3d_forward.8} parent=0 // pred_region
    _
  $region17: #{autoencoder3d_forward.8} parent=0 // pred_fallthru
    _
  // Predicated region
  $region18: #{autoencoder3d_forward.8} parent=0 // pred_check
    _
  $region19: #{autoencoder3d_forward.8} parent=0 // pred_check_branch
    %132 = sbr.rel (0) target = $region21
  $region20: #{autoencoder3d_forward.8} parent=0 // pred_region
    _
  $region21: #{autoencoder3d_forward.8} parent=0 // pred_fallthru
    _

// kernel: autoencoder3d_forward.9
$region0: #{autoencoder3d_forward.9}
  #allocation0 [shape = 'u32[]', space=smem, size = 0x4, offset = 0x4, fixed_abs, tag = 'smem constant byte address 0x4 - core index']
  #allocation1 [shape = 'u32[144,128]{1,0:T(1,128)}', space=vmem, size = 0x12000, scoped, tag = 'internal scratch']
  %s0 = inlined_call_operand.vmem [shape: bf16[8,8,32], index: 0, kind: input, shape index: {}]
  %s1 = inlined_call_operand.vmem [shape: bf16[8,32,4], index: 1, kind: input, shape index: {}]
  %s2 = inlined_call_operand.vmem [shape: f32[1,4], index: 2, kind: input, shape index: {}]
  %s3 = inlined_call_operand.vmem [shape: f32[8,8,4], index: 3, kind: output, shape index: {}]
  %s4 = sld [smem:[#allocation0]]
  $region45: #{autoencoder3d_forward.9} parent=0
    _
  %s6 = ssub.s32 1, %s4
  %s7 = scalar_select 0, %s6, %s4
  loop: start=0, step=1, limit=10
  $region2: #{autoencoder3d_forward.9} parent=0 // loop_pre_header
    _
  $region3: #{autoencoder3d_forward.9} parent=0 // loop_header
    %s9 = sphi 0, %s13
    %p10 = scmp.ge.s32.totalorder %s9, 10
    %s16 = sphi 0, %s28
    %s17 = sphi 0, %s24
    %s18 = sphi 0, %s16
    %s19 = sphi 0, %s17
    %s20 = sphi 0, %s18
    %s21 = sphi 0, %s19
    %s33 = sphi 0, %s35
    %s36 = sphi 0, %s33
    %s37 = sphi 0, %s36
    %s53 = sphi 0, %s37
    %s59 = sphi 0, %s61
    %s62 = sphi 0, %s59
    %s63 = sphi 0, %s62
    %s79 = sphi 0, %s63
    %s83 = sphi 0, %s83
    %s85 = sphi 0, %s83
    %s86 = sphi 0, %s85
    %s100 = sphi 0, %s86
    %s108 = sphi 0, %s110
    %s111 = sphi 0, %s108
    %s112 = sphi 0, %s111
    %s128 = sphi 0, %s112
  $region4: #{autoencoder3d_forward.9} parent=0 // loop_header_branch
    %12 = sbr.rel (%p10) target = $region8
  $region5: #{autoencoder3d_forward.9} parent=0 // loop_body
    %s14 = ssub.s32 %s9, 1
    %s15 = ssub.s32 %s9, 2
    %s22 = sadd.s32 1, %s17
    %p23 = scmp.ge.s32.totalorder %s22, 1
    %s24 = scalar_select %p23, 0, %s22
    %s25 = sadd.s32 1, %s16
    %s26 = scalar_select %p23, %s25, %s16
    %p27 = scmp.ge.s32.totalorder %s26, 8
    %s28 = scalar_select %p27, 0, %s26
    %s29 = ssub.s32 %s16, %s28
    %s30 = ssub.s32 %s17, %s24
    %s31 = sor.u32 %s29, %s30
    %p32 = scmp.eq.s32.totalorder %s31, 0
    %s34 = sadd.s32 %s33, 1
    %s35 = scalar_select %p32, %s33, %s34
    %p38 = pneg %p32
    %p39 = scmp.eq.s32.totalorder %s9, 7
    %p40 = por %p38, %p39
    %p41 = scmp.ne.s32.totalorder %s33, %s36
    %p42 = scmp.eq.s32.totalorder %s9, 0
    %p43 = por %p41, %p42
    %p44 = scmp.ne.s32.totalorder %s33, %s36
    %p45 = scmp.eq.s32.totalorder %s14, 7
    %p46 = por %p44, %p45
    %p47 = scmp.ne.s32.totalorder %s36, %s37
    %p48 = scmp.eq.s32.totalorder %s14, 0
    %p49 = por %p47, %p48
    %p50 = scmp.ne.s32.totalorder %s36, %s37
    %p51 = scmp.eq.s32.totalorder %s15, 7
    %p52 = por %p50, %p51
    %p54 = scmp.ne.s32.totalorder %s37, %s53
    %p55 = scmp.eq.s32.totalorder %s15, 0
    %p56 = por %p54, %p55
    %s57 = ssub.s32 %s16, %s28
    %p58 = scmp.eq.s32.totalorder %s57, 0
    %s60 = sadd.s32 %s59, 1
    %s61 = scalar_select %p58, %s59, %s60
    %p64 = pneg %p58
    %p65 = scmp.eq.s32.totalorder %s9, 7
    %p66 = por %p64, %p65
    %p67 = scmp.ne.s32.totalorder %s59, %s62
    %p68 = scmp.eq.s32.totalorder %s9, 0
    %p69 = por %p67, %p68
    %p70 = scmp.ne.s32.totalorder %s59, %s62
    %p71 = scmp.eq.s32.totalorder %s14, 7
    %p72 = por %p70, %p71
    %p73 = scmp.ne.s32.totalorder %s62, %s63
    %p74 = scmp.eq.s32.totalorder %s14, 0
    %p75 = por %p73, %p74
    %p76 = scmp.ne.s32.totalorder %s62, %s63
    %p77 = scmp.eq.s32.totalorder %s15, 7
    %p78 = por %p76, %p77
    %p80 = scmp.ne.s32.totalorder %s63, %s79
    %p81 = scmp.eq.s32.totalorder %s15, 0
    %p82 = por %p80, %p81
    %s84 = sadd.s32 %s83, 1
    %p87 = scmp.eq.s32.totalorder %s9, 7
    %p88 = scmp.ne.s32.totalorder %s83, %s85
    %p89 = scmp.eq.s32.totalorder %s9, 0
    %p90 = por %p88, %p89
    %p91 = scmp.ne.s32.totalorder %s83, %s85
    %p92 = scmp.eq.s32.totalorder %s14, 7
    %p93 = por %p91, %p92
    %p94 = scmp.ne.s32.totalorder %s85, %s86
    %p95 = scmp.eq.s32.totalorder %s14, 0
    %p96 = por %p94, %p95
    %p97 = scmp.ne.s32.totalorder %s85, %s86
    %p98 = scmp.eq.s32.totalorder %s15, 7
    %p99 = por %p97, %p98
    %p101 = scmp.ne.s32.totalorder %s86, %s100
    %p102 = scmp.eq.s32.totalorder %s15, 0
    %p103 = por %p101, %p102
    %s104 = ssub.s32 %s16, %s28
    %s105 = ssub.s32 %s17, %s24
    %s106 = sor.u32 %s104, %s105
    %p107 = scmp.eq.s32.totalorder %s106, 0
    %s109 = sadd.s32 %s108, 1
    %s110 = scalar_select %p107, %s108, %s109
    %p113 = pneg %p107
    %p114 = scmp.eq.s32.totalorder %s9, 7
    %p115 = por %p113, %p114
    %p116 = scmp.ne.s32.totalorder %s108, %s111
    %p117 = scmp.eq.s32.totalorder %s9, 0
    %p118 = por %p116, %p117
    %p119 = scmp.ne.s32.totalorder %s108, %s111
    %p120 = scmp.eq.s32.totalorder %s14, 7
    %p121 = por %p119, %p120
    %p122 = scmp.ne.s32.totalorder %s111, %s112
    %p123 = scmp.eq.s32.totalorder %s14, 0
    %p124 = por %p122, %p123
    %p125 = scmp.ne.s32.totalorder %s111, %s112
    %p126 = scmp.eq.s32.totalorder %s15, 7
    %p127 = por %p125, %p126
    %p129 = scmp.ne.s32.totalorder %s112, %s128
    %p130 = scmp.eq.s32.totalorder %s15, 0
    %p131 = por %p129, %p130
    %p132 = scmp.le.s32.totalorder 1, %s9
    %p133 = scmp.lt.s32.totalorder %s9, 9
    %p134 = pnand %p132, %p133
    %p135 = pneg %p134
    // Predicated region
    $region9: #{autoencoder3d_forward.9} parent=5 // pred_check
      _
    $region10: #{autoencoder3d_forward.9} parent=5 // pred_check_branch
      %137 = sbr.rel (%p134) target = $region12
    $region11: #{autoencoder3d_forward.9} parent=5 // pred_region
      %s138 = ssub.s32 %s9, 1
      // Predicated region
      $region13: #{autoencoder3d_forward.9} parent=11 // pred_check
        %p139 = pneg %p96
      $region14: #{autoencoder3d_forward.9} parent=11 // pred_check_branch
        %141 = sbr.rel (%p139) target = $region16
      $region15: #{autoencoder3d_forward.9} parent=11 // pred_region
        _
      $region16: #{autoencoder3d_forward.9} parent=11 // pred_fallthru
        _
    $region12: #{autoencoder3d_forward.9} parent=5 // pred_fallthru
      _
    %p142 = scmp.lt.s32.totalorder %s9, 8
    // Predicated region
    $region17: #{autoencoder3d_forward.9} parent=5 // pred_check
      %p143 = pneg %p142
    $region18: #{autoencoder3d_forward.9} parent=5 // pred_check_branch
      %145 = sbr.rel (%p143) target = $region20
    $region19: #{autoencoder3d_forward.9} parent=5 // pred_region
      // Predicated region
      $region21: #{autoencoder3d_forward.9} parent=19 // pred_check
        %p146 = pneg %p43
      $region22: #{autoencoder3d_forward.9} parent=19 // pred_check_branch
        %148 = sbr.rel (%p146) target = $region24
      $region23: #{autoencoder3d_forward.9} parent=19 // pred_region
        %p149 = scmp.lt.s32.totalorder %s16, 7
        %s150 = scalar_select %p149, %s16, 7
        %p151 = scmp.lt.s32.totalorder %s17, 0
        %s152 = scalar_select %p151, %s17, 0
        %s153 = sadd.s32 %s152, %s150
        %s154 = smul.addr %s153, 4
        %s155 = scalar_lea.vmem %s0, %s154
      $region24: #{autoencoder3d_forward.9} parent=19 // pred_fallthru
        _
      // Predicated region
      $region25: #{autoencoder3d_forward.9} parent=19 // pred_check
        %p156 = pneg %p69
      $region26: #{autoencoder3d_forward.9} parent=19 // pred_check_branch
        %158 = sbr.rel (%p156) target = $region28
      $region27: #{autoencoder3d_forward.9} parent=19 // pred_region
        %p159 = scmp.lt.s32.totalorder %s16, 7
        %s160 = scalar_select %p159, %s16, 7
        %s161 = smul.addr %s160, 4
        %s162 = smul.addr %s161, 4
        %s163 = scalar_lea.vmem %s1, %s162
      $region28: #{autoencoder3d_forward.9} parent=19 // pred_fallthru
        _
    $region20: #{autoencoder3d_forward.9} parent=5 // pred_fallthru
      _
    %p164 = scmp.le.s32.totalorder 1, %s9
    %p165 = scmp.lt.s32.totalorder %s9, 9
    %p166 = pnand %p164, %p165
    %p167 = pneg %p166
    // Predicated region
    $region29: #{autoencoder3d_forward.9} parent=5 // pred_check
      _
    $region30: #{autoencoder3d_forward.9} parent=5 // pred_check_branch
      %169 = sbr.rel (%p166) target = $region32
    $region31: #{autoencoder3d_forward.9} parent=5 // pred_region
      %s170 = ssub.s32 %s9, 1
      %p171 = scmp.lt.s32.totalorder %s18, 7
      %s172 = scalar_select %p171, %s18, 7
      %p173 = scmp.lt.s32.totalorder %s19, 0
      %s174 = scalar_select %p173, %s19, 0
      %s175 = sadd.s32 %s174, %s172
      %s176 = smul.addr %s175, 4
      %s177 = scalar_lea.vmem %s0, %s176
      %p178 = pneg %p49
      %p179 = pneg %p46
      %p180 = scmp.lt.s32.totalorder %s18, 7
      %s181 = scalar_select %p180, %s18, 7
      %s182 = smul.addr %s181, 4
      %s183 = smul.addr %s182, 4
      %s184 = scalar_lea.vmem %s1, %s183
      %p185 = pneg %p75
      %p186 = pneg %p72
      %p187 = pneg %p96
      %p188 = pneg %p93
      %p189 = pneg %p124
      %p190 = pneg %p121
      %p191 = scmp.lt.s32.totalorder %s18, 7
      %s192 = scalar_select %p191, %s18, 7
      %p193 = scmp.lt.s32.totalorder %s19, 0
      %s194 = scalar_select %p193, %s19, 0
      %s195 = sadd.s32 %s194, %s192
      %s196 = smul.addr %s195, 8
      %s197 = scalar_lea.vmem %s3, %s196
      %p198 = scmp.lt.s32.totalorder %s18, 7
      %s199 = scalar_select %p198, %s18, 7
      %p200 = scmp.lt.s32.totalorder %s19, 0
      %s201 = scalar_select %p200, %s19, 0
      %s202 = sadd.s32 %s201, %s199
      %s203 = smul.addr %s202, 4
      %s204 = scalar_lea.vmem %s0, %s203
      %p205 = scmp.lt.s32.totalorder %s18, 7
      %s206 = scalar_select %p205, %s18, 7
      %s207 = smul.addr %s206, 4
      %s208 = smul.addr %s207, 4
      %s209 = scalar_lea.vmem %s1, %s208
      %p210 = scmp.lt.s32.totalorder %s18, 7
      %s211 = scalar_select %p210, %s18, 7
      %p212 = scmp.lt.s32.totalorder %s19, 0
      %s213 = scalar_select %p212, %s19, 0
      %s214 = sadd.s32 %s213, %s211
      %s215 = smul.addr %s214, 8
      %s216 = scalar_lea.vmem %s3, %s215
      %v218 = vld [vmem:[%s204] sm:$0xf]
      %v219 = vld [vmem:[%s209] sm:$0xf]
      %v220 = vld [vmem:[%s209 + $0x4] sm:$0xf]
      %v221 = vld [vmem:[%s209 + $0x8] sm:$0xf]
      %v222 = vld [vmem:[%s209 + $0xc] sm:$0xf]
      %v223 = vld [vmem:[%s2] sm:$0x1]
      %v225 = vlaneseq
      %v226 = vshrl.u32 %v225, 7
      %v227 = vsub.s32 0, %v226
      %v228 = vrot.slane %v223, %v227
      %v234 = vunpack.c.l.b16 %v219
      %v235 = vunpack.c.l.b16 %v220
      %v236 = vunpack.c.l.b16 %v221
      %v237 = vunpack.c.l.b16 %v222
      %v238 = vpack.c.b16 %v235, %v234
      %v239 = vpack.c.b16 %v237, %v236
      %vm242 = vcmask 261120
      %v244 = vsel %vm242, %v218, 0
      %246 = vmatprep.subr.bf16.mxu0 0
      %247 = vmatpush1.bf16.msra.mxu0 %v238
      %248 = vmatprep.subr.bf16.mxu0 0
      %249 = vmatpush1.bf16.msra.mxu0 %v239
      %250 = vmatprep.subr.bf16.mxu0 0
      %251 = vmatpush1.bf16.msra.mxu0 0
      %252 = vmatprep.subr.bf16.mxu0 0
      %253 = vmatpush1.bf16.msra.mxu0 0
      %254 = vmatprep.subr.bf16.mxu0 0
      %255 = vmatpush1.bf16.msra.mxu0 0
      %256 = vmatprep.subr.bf16.mxu0 0
      %257 = vmatpush1.bf16.msra.mxu0 0
      %258 = vmatprep.subr.bf16.mxu0 0
      %259 = vmatpush1.bf16.msra.mxu0 0
      %260 = vmatprep.subr.bf16.mxu0 0
      %261 = vmatpush1.bf16.msra.mxu0 0
      %262 = vmatprep.subr.bf16.mxu0 0
      %263 = vmatpush1.bf16.msra.mxu0 0
      %264 = vmatprep.subr.bf16.mxu0 0
      %265 = vmatpush1.bf16.msra.mxu0 0
      %266 = vmatprep.subr.bf16.mxu0 0
      %267 = vmatpush1.bf16.msra.mxu0 0
      %268 = vmatprep.subr.bf16.mxu0 0
      %269 = vmatpush1.bf16.msra.mxu0 0
      %270 = vmatprep.subr.bf16.mxu0 0
      %271 = vmatpush1.bf16.msra.mxu0 0
      %272 = vmatprep.subr.bf16.mxu0 0
      %273 = vmatpush1.bf16.msra.mxu0 0
      %274 = vmatprep.subr.bf16.mxu0 0
      %275 = vmatpush1.bf16.msra.mxu0 0
      %276 = vmatprep.subr.bf16.mxu0 0
      %277 = vmatpush1.bf16.msra.mxu0 0
      %278 = vmatprep.mubr.bf16.mxu0 0
      %279 = vmatmul.mubr.bf16.gmra.mrb[0].mxu0 %v244
      %v280 = vpop.f32.mrb[0].mxu0
      %v281 = vadd.f32 %v228, %v280
      %v282 = vpop.f32.mrb[0].mxu0
      %v283 = vpop.f32.mrb[0].mxu0
      %v284 = vpop.f32.mrb[0].mxu0
      %285 = vdwg.mxu0
      %v286 = vmax.f32 %v281, 0.0
      %vm287 = vcmask 31744
      %288 = vst.msk [vmem:[%s216] sm:$0xff] %vm287, %v286
      %p289 = scmp.lt.s32.totalorder %s18, 7
      %s290 = scalar_select %p289, %s18, 7
      %p291 = scmp.lt.s32.totalorder %s19, 0
      %s292 = scalar_select %p291, %s19, 0
      %s293 = sadd.s32 %s292, %s290
      %s294 = smul.addr %s293, 8
      %s295 = scalar_lea.vmem %s3, %s294
      // Predicated region
      $region33: #{autoencoder3d_forward.9} parent=31 // pred_check
        %p296 = pneg %p121
      $region34: #{autoencoder3d_forward.9} parent=31 // pred_check_branch
        %298 = sbr.rel (%p296) target = $region36
      $region35: #{autoencoder3d_forward.9} parent=31 // pred_region
        _
      $region36: #{autoencoder3d_forward.9} parent=31 // pred_fallthru
        _
    $region32: #{autoencoder3d_forward.9} parent=5 // pred_fallthru
      _
    %p299 = scmp.le.s32.totalorder 2, %s9
    // Predicated region
    $region37: #{autoencoder3d_forward.9} parent=5 // pred_check
      %p300 = pneg %p299
    $region38: #{autoencoder3d_forward.9} parent=5 // pred_check_branch
      %302 = sbr.rel (%p300) target = $region40
    $region39: #{autoencoder3d_forward.9} parent=5 // pred_region
      %s303 = ssub.s32 %s9, 2
      // Predicated region
      $region41: #{autoencoder3d_forward.9} parent=39 // pred_check
        %p304 = pneg %p127
      $region42: #{autoencoder3d_forward.9} parent=39 // pred_check_branch
        %306 = sbr.rel (%p304) target = $region44
      $region43: #{autoencoder3d_forward.9} parent=39 // pred_region
        %p307 = scmp.lt.s32.totalorder %s20, 7
        %s308 = scalar_select %p307, %s20, 7
        %p309 = scmp.lt.s32.totalorder %s21, 0
        %s310 = scalar_select %p309, %s21, 0
        %s311 = sadd.s32 %s310, %s308
        %s312 = smul.addr %s311, 8
        %s313 = scalar_lea.vmem %s3, %s312
      $region44: #{autoencoder3d_forward.9} parent=39 // pred_fallthru
        _
    $region40: #{autoencoder3d_forward.9} parent=5 // pred_fallthru
      _
  $region6: #{autoencoder3d_forward.9} parent=0 // loop_footer
    %s13 = sadd.s32 1, %s9
  $region7: #{autoencoder3d_forward.9} parent=0 // loop_footer_branch
    %8 = sbr.rel target = $region3
  $region8: #{autoencoder3d_forward.9} parent=0 // loop_exit
    _

// kernel: autoencoder3d_forward.10
$region0: #{autoencoder3d_forward.10}
  #allocation0 [shape = 'u32[]', space=smem, size = 0x4, offset = 0x4, fixed_abs, tag = 'smem constant byte address 0x4 - core index']
  #allocation1 [shape = 'u32[144,128]{1,0:T(1,128)}', space=vmem, size = 0x12000, scoped, tag = 'internal scratch']
  %s0 = inlined_call_operand.vmem [shape: bf16[8,64,32], index: 0, kind: input, shape index: {}]
  %s1 = inlined_call_operand.vmem [shape: bf16[8,32,8], index: 1, kind: input, shape index: {}]
  %s2 = inlined_call_operand.vmem [shape: f32[1,8], index: 2, kind: input, shape index: {}]
  %s3 = inlined_call_operand.vmem [shape: f32[8,64,8], index: 3, kind: output, shape index: {}]
  %s4 = sld [smem:[#allocation0]]
  $region45: #{autoencoder3d_forward.10} parent=0
    _
  %s6 = ssub.s32 1, %s4
  %s7 = scalar_select 0, %s6, %s4
  loop: start=0, step=1, limit=10
  $region2: #{autoencoder3d_forward.10} parent=0 // loop_pre_header
    _
  $region3: #{autoencoder3d_forward.10} parent=0 // loop_header
    %s9 = sphi 0, %s13
    %p10 = scmp.ge.s32.totalorder %s9, 10
    %s16 = sphi 0, %s28
    %s17 = sphi 0, %s24
    %s18 = sphi 0, %s16
    %s19 = sphi 0, %s17
    %s20 = sphi 0, %s18
    %s21 = sphi 0, %s19
    %s33 = sphi 0, %s35
    %s36 = sphi 0, %s33
    %s37 = sphi 0, %s36
    %s53 = sphi 0, %s37
    %s59 = sphi 0, %s61
    %s62 = sphi 0, %s59
    %s63 = sphi 0, %s62
    %s79 = sphi 0, %s63
    %s83 = sphi 0, %s83
    %s85 = sphi 0, %s83
    %s86 = sphi 0, %s85
    %s100 = sphi 0, %s86
    %s108 = sphi 0, %s110
    %s111 = sphi 0, %s108
    %s112 = sphi 0, %s111
    %s128 = sphi 0, %s112
  $region4: #{autoencoder3d_forward.10} parent=0 // loop_header_branch
    %12 = sbr.rel (%p10) target = $region8
  $region5: #{autoencoder3d_forward.10} parent=0 // loop_body
    %s14 = ssub.s32 %s9, 1
    %s15 = ssub.s32 %s9, 2
    %s22 = sadd.s32 1, %s17
    %p23 = scmp.ge.s32.totalorder %s22, 1
    %s24 = scalar_select %p23, 0, %s22
    %s25 = sadd.s32 1, %s16
    %s26 = scalar_select %p23, %s25, %s16
    %p27 = scmp.ge.s32.totalorder %s26, 8
    %s28 = scalar_select %p27, 0, %s26
    %s29 = ssub.s32 %s16, %s28
    %s30 = ssub.s32 %s17, %s24
    %s31 = sor.u32 %s29, %s30
    %p32 = scmp.eq.s32.totalorder %s31, 0
    %s34 = sadd.s32 %s33, 1
    %s35 = scalar_select %p32, %s33, %s34
    %p38 = pneg %p32
    %p39 = scmp.eq.s32.totalorder %s9, 7
    %p40 = por %p38, %p39
    %p41 = scmp.ne.s32.totalorder %s33, %s36
    %p42 = scmp.eq.s32.totalorder %s9, 0
    %p43 = por %p41, %p42
    %p44 = scmp.ne.s32.totalorder %s33, %s36
    %p45 = scmp.eq.s32.totalorder %s14, 7
    %p46 = por %p44, %p45
    %p47 = scmp.ne.s32.totalorder %s36, %s37
    %p48 = scmp.eq.s32.totalorder %s14, 0
    %p49 = por %p47, %p48
    %p50 = scmp.ne.s32.totalorder %s36, %s37
    %p51 = scmp.eq.s32.totalorder %s15, 7
    %p52 = por %p50, %p51
    %p54 = scmp.ne.s32.totalorder %s37, %s53
    %p55 = scmp.eq.s32.totalorder %s15, 0
    %p56 = por %p54, %p55
    %s57 = ssub.s32 %s16, %s28
    %p58 = scmp.eq.s32.totalorder %s57, 0
    %s60 = sadd.s32 %s59, 1
    %s61 = scalar_select %p58, %s59, %s60
    %p64 = pneg %p58
    %p65 = scmp.eq.s32.totalorder %s9, 7
    %p66 = por %p64, %p65
    %p67 = scmp.ne.s32.totalorder %s59, %s62
    %p68 = scmp.eq.s32.totalorder %s9, 0
    %p69 = por %p67, %p68
    %p70 = scmp.ne.s32.totalorder %s59, %s62
    %p71 = scmp.eq.s32.totalorder %s14, 7
    %p72 = por %p70, %p71
    %p73 = scmp.ne.s32.totalorder %s62, %s63
    %p74 = scmp.eq.s32.totalorder %s14, 0
    %p75 = por %p73, %p74
    %p76 = scmp.ne.s32.totalorder %s62, %s63
    %p77 = scmp.eq.s32.totalorder %s15, 7
    %p78 = por %p76, %p77
    %p80 = scmp.ne.s32.totalorder %s63, %s79
    %p81 = scmp.eq.s32.totalorder %s15, 0
    %p82 = por %p80, %p81
    %s84 = sadd.s32 %s83, 1
    %p87 = scmp.eq.s32.totalorder %s9, 7
    %p88 = scmp.ne.s32.totalorder %s83, %s85
    %p89 = scmp.eq.s32.totalorder %s9, 0
    %p90 = por %p88, %p89
    %p91 = scmp.ne.s32.totalorder %s83, %s85
    %p92 = scmp.eq.s32.totalorder %s14, 7
    %p93 = por %p91, %p92
    %p94 = scmp.ne.s32.totalorder %s85, %s86
    %p95 = scmp.eq.s32.totalorder %s14, 0
    %p96 = por %p94, %p95
    %p97 = scmp.ne.s32.totalorder %s85, %s86
    %p98 = scmp.eq.s32.totalorder %s15, 7
    %p99 = por %p97, %p98
    %p101 = scmp.ne.s32.totalorder %s86, %s100
    %p102 = scmp.eq.s32.totalorder %s15, 0
    %p103 = por %p101, %p102
    %s104 = ssub.s32 %s16, %s28
    %s105 = ssub.s32 %s17, %s24
    %s106 = sor.u32 %s104, %s105
    %p107 = scmp.eq.s32.totalorder %s106, 0
    %s109 = sadd.s32 %s108, 1
    %s110 = scalar_select %p107, %s108, %s109
    %p113 = pneg %p107
    %p114 = scmp.eq.s32.totalorder %s9, 7
    %p115 = por %p113, %p114
    %p116 = scmp.ne.s32.totalorder %s108, %s111
    %p117 = scmp.eq.s32.totalorder %s9, 0
    %p118 = por %p116, %p117
    %p119 = scmp.ne.s32.totalorder %s108, %s111
    %p120 = scmp.eq.s32.totalorder %s14, 7
    %p121 = por %p119, %p120
    %p122 = scmp.ne.s32.totalorder %s111, %s112
    %p123 = scmp.eq.s32.totalorder %s14, 0
    %p124 = por %p122, %p123
    %p125 = scmp.ne.s32.totalorder %s111, %s112
    %p126 = scmp.eq.s32.totalorder %s15, 7
    %p127 = por %p125, %p126
    %p129 = scmp.ne.s32.totalorder %s112, %s128
    %p130 = scmp.eq.s32.totalorder %s15, 0
    %p131 = por %p129, %p130
    %p132 = scmp.le.s32.totalorder 1, %s9
    %p133 = scmp.lt.s32.totalorder %s9, 9
    %p134 = pnand %p132, %p133
    %p135 = pneg %p134
    // Predicated region
    $region9: #{autoencoder3d_forward.10} parent=5 // pred_check
      _
    $region10: #{autoencoder3d_forward.10} parent=5 // pred_check_branch
      %137 = sbr.rel (%p134) target = $region12
    $region11: #{autoencoder3d_forward.10} parent=5 // pred_region
      %s138 = ssub.s32 %s9, 1
      // Predicated region
      $region13: #{autoencoder3d_forward.10} parent=11 // pred_check
        %p139 = pneg %p96
      $region14: #{autoencoder3d_forward.10} parent=11 // pred_check_branch
        %141 = sbr.rel (%p139) target = $region16
      $region15: #{autoencoder3d_forward.10} parent=11 // pred_region
        _
      $region16: #{autoencoder3d_forward.10} parent=11 // pred_fallthru
        _
    $region12: #{autoencoder3d_forward.10} parent=5 // pred_fallthru
      _
    %p142 = scmp.lt.s32.totalorder %s9, 8
    // Predicated region
    $region17: #{autoencoder3d_forward.10} parent=5 // pred_check
      %p143 = pneg %p142
    $region18: #{autoencoder3d_forward.10} parent=5 // pred_check_branch
      %145 = sbr.rel (%p143) target = $region20
    $region19: #{autoencoder3d_forward.10} parent=5 // pred_region
      // Predicated region
      $region21: #{autoencoder3d_forward.10} parent=19 // pred_check
        %p146 = pneg %p43
      $region22: #{autoencoder3d_forward.10} parent=19 // pred_check_branch
        %148 = sbr.rel (%p146) target = $region24
      $region23: #{autoencoder3d_forward.10} parent=19 // pred_region
        %s149 = smul.u32 8, %s17
        %p150 = scmp.lt.s32.totalorder %s16, 7
        %s151 = scalar_select %p150, %s16, 7
        %p152 = scmp.lt.s32.totalorder %s149, 7
        %s153 = scalar_select %p152, %s149, 7
        %s154 = smul.addr %s151, 8
        %s155 = sadd.s32 %s153, %s154
        %s156 = smul.addr %s155, 4
        %s157 = scalar_lea.vmem %s0, %s156
        %s158 = smul.u32 8, %s17
      $region24: #{autoencoder3d_forward.10} parent=19 // pred_fallthru
        _
      // Predicated region
      $region25: #{autoencoder3d_forward.10} parent=19 // pred_check
        %p159 = pneg %p69
      $region26: #{autoencoder3d_forward.10} parent=19 // pred_check_branch
        %161 = sbr.rel (%p159) target = $region28
      $region27: #{autoencoder3d_forward.10} parent=19 // pred_region
        %p162 = scmp.lt.s32.totalorder %s16, 7
        %s163 = scalar_select %p162, %s16, 7
        %s164 = smul.addr %s163, 4
        %s165 = smul.addr %s164, 4
        %s166 = scalar_lea.vmem %s1, %s165
      $region28: #{autoencoder3d_forward.10} parent=19 // pred_fallthru
        _
    $region20: #{autoencoder3d_forward.10} parent=5 // pred_fallthru
      _
    %p167 = scmp.le.s32.totalorder 1, %s9
    %p168 = scmp.lt.s32.totalorder %s9, 9
    %p169 = pnand %p167, %p168
    %p170 = pneg %p169
    // Predicated region
    $region29: #{autoencoder3d_forward.10} parent=5 // pred_check
      _
    $region30: #{autoencoder3d_forward.10} parent=5 // pred_check_branch
      %172 = sbr.rel (%p169) target = $region32
    $region31: #{autoencoder3d_forward.10} parent=5 // pred_region
      %s173 = ssub.s32 %s9, 1
      %s174 = smul.u32 8, %s19
      %p175 = scmp.lt.s32.totalorder %s18, 7
      %s176 = scalar_select %p175, %s18, 7
      %p177 = scmp.lt.s32.totalorder %s174, 7
      %s178 = scalar_select %p177, %s174, 7
      %s179 = smul.addr %s176, 8
      %s180 = sadd.s32 %s178, %s179
      %s181 = smul.addr %s180, 4
      %s182 = scalar_lea.vmem %s0, %s181
      %p183 = pneg %p49
      %p184 = pneg %p46
      %p185 = scmp.lt.s32.totalorder %s18, 7
      %s186 = scalar_select %p185, %s18, 7
      %s187 = smul.addr %s186, 4
      %s188 = smul.addr %s187, 4
      %s189 = scalar_lea.vmem %s1, %s188
      %p190 = pneg %p75
      %p191 = pneg %p72
      %p192 = pneg %p96
      %p193 = pneg %p93
      %p194 = pneg %p124
      %p195 = pneg %p121
      %s196 = smul.u32 8, %s19
      %p197 = scmp.lt.s32.totalorder %s18, 7
      %s198 = scalar_select %p197, %s18, 7
      %p199 = scmp.lt.s32.totalorder %s196, 7
      %s200 = scalar_select %p199, %s196, 7
      %s201 = smul.addr %s198, 8
      %s202 = sadd.s32 %s200, %s201
      %s203 = smul.addr %s202, 8
      %s204 = scalar_lea.vmem %s3, %s203
      %s205 = smul.u32 8, %s19
      %p206 = scmp.lt.s32.totalorder %s18, 7
      %s207 = scalar_select %p206, %s18, 7
      %p208 = scmp.lt.s32.totalorder %s205, 7
      %s209 = scalar_select %p208, %s205, 7
      %s210 = smul.addr %s207, 8
      %s211 = sadd.s32 %s209, %s210
      %s212 = smul.addr %s211, 4
      %s213 = scalar_lea.vmem %s0, %s212
      %s214 = smul.u32 8, %s19
      %p215 = scmp.lt.s32.totalorder %s18, 7
      %s216 = scalar_select %p215, %s18, 7
      %s217 = smul.addr %s216, 4
      %s218 = smul.addr %s217, 4
      %s219 = scalar_lea.vmem %s1, %s218
      %s220 = smul.u32 8, %s19
      %p221 = scmp.lt.s32.totalorder %s18, 7
      %s222 = scalar_select %p221, %s18, 7
      %p223 = scmp.lt.s32.totalorder %s220, 7
      %s224 = scalar_select %p223, %s220, 7
      %s225 = smul.addr %s222, 8
      %s226 = sadd.s32 %s224, %s225
      %s227 = smul.addr %s226, 8
      %s228 = scalar_lea.vmem %s3, %s227
      %s229 = smul.u32 8, %s19
      %v231 = vld [vmem:[%s213] sm:$0xf]
      %v232 = vld [vmem:[%s213 + $0x4] sm:$0xf]
      %v233 = vld [vmem:[%s213 + $0x8] sm:$0xf]
      %v234 = vld [vmem:[%s213 + $0xc] sm:$0xf]
      %v235 = vld [vmem:[%s213 + $0x10] sm:$0xf]
      %v236 = vld [vmem:[%s213 + $0x14] sm:$0xf]
      %v237 = vld [vmem:[%s213 + $0x18] sm:$0xf]
      %v238 = vld [vmem:[%s213 + $0x1c] sm:$0xf]
      %v239 = vld [vmem:[%s219] sm:$0xf]
      %v240 = vld [vmem:[%s219 + $0x4] sm:$0xf]
      %v241 = vld [vmem:[%s219 + $0x8] sm:$0xf]
      %v242 = vld [vmem:[%s219 + $0xc] sm:$0xf]
      %v243 = vld [vmem:[%s2] sm:$0x1]
      %v245 = vlaneseq
      %v246 = vshrl.u32 %v245, 7
      %v247 = vsub.s32 0, %v246
      %v248 = vrot.slane %v243, %v247
      %v258 = vunpack.c.l.b16 %v231
      %v259 = vunpack.c.l.b16 %v232
      %v260 = vunpack.c.l.b16 %v233
      %v261 = vunpack.c.l.b16 %v234
      %v262 = vunpack.c.l.b16 %v235
      %v263 = vunpack.c.l.b16 %v236
      %v264 = vunpack.c.l.b16 %v237
      %v265 = vunpack.c.l.b16 %v238
      %v266 = vpack.c.b16 %v259, %v258
      %v267 = vpack.c.b16 %v261, %v260
      %v268 = vpack.c.b16 %v263, %v262
      %v269 = vpack.c.b16 %v265, %v264
      %v274 = vunpack.c.l.b16 %v239
      %v275 = vunpack.c.l.b16 %v240
      %v276 = vunpack.c.l.b16 %v241
      %v277 = vunpack.c.l.b16 %v242
      %v278 = vpack.c.b16 %v275, %v274
      %v279 = vpack.c.b16 %v277, %v276
      %vm282 = vcmask 261120
      %v284 = vsel %vm282, %v266, 0
      %v287 = vsel %vm282, %v267, 0
      %v290 = vsel %vm282, %v268, 0
      %v293 = vsel %vm282, %v269, 0
      %295 = vmatprep.subr.bf16.mxu0 0
      %296 = vmatpush1.bf16.msra.mxu0 %v278
      %297 = vmatprep.subr.bf16.mxu0 0
      %298 = vmatpush1.bf16.msra.mxu0 %v279
      %299 = vmatprep.subr.bf16.mxu0 0
      %300 = vmatpush1.bf16.msra.mxu0 0
      %301 = vmatprep.subr.bf16.mxu0 0
      %302 = vmatpush1.bf16.msra.mxu0 0
      %303 = vmatprep.subr.bf16.mxu0 0
      %304 = vmatpush1.bf16.msra.mxu0 0
      %305 = vmatprep.subr.bf16.mxu0 0
      %306 = vmatpush1.bf16.msra.mxu0 0
      %307 = vmatprep.subr.bf16.mxu0 0
      %308 = vmatpush1.bf16.msra.mxu0 0
      %309 = vmatprep.subr.bf16.mxu0 0
      %310 = vmatpush1.bf16.msra.mxu0 0
      %311 = vmatprep.subr.bf16.mxu0 0
      %312 = vmatpush1.bf16.msra.mxu0 0
      %313 = vmatprep.subr.bf16.mxu0 0
      %314 = vmatpush1.bf16.msra.mxu0 0
      %315 = vmatprep.subr.bf16.mxu0 0
      %316 = vmatpush1.bf16.msra.mxu0 0
      %317 = vmatprep.subr.bf16.mxu0 0
      %318 = vmatpush1.bf16.msra.mxu0 0
      %319 = vmatprep.subr.bf16.mxu0 0
      %320 = vmatpush1.bf16.msra.mxu0 0
      %321 = vmatprep.subr.bf16.mxu0 0
      %322 = vmatpush1.bf16.msra.mxu0 0
      %323 = vmatprep.subr.bf16.mxu0 0
      %324 = vmatpush1.bf16.msra.mxu0 0
      %325 = vmatprep.subr.bf16.mxu0 0
      %326 = vmatpush1.bf16.msra.mxu0 0
      %327 = vmatprep.mubr.bf16.mxu0 0
      %328 = vmatmul.mubr.bf16.gmra.mrb[0].mxu0 %v284
      %v329 = vpop.f32.mrb[0].mxu0
      %v330 = vadd.f32 %v248, %v329
      %v331 = vpop.f32.mrb[0].mxu0
      %v332 = vpop.f32.mrb[0].mxu0
      %v333 = vadd.f32 %v248, %v332
      %v334 = vpop.f32.mrb[0].mxu0
      %335 = vmatprep.mubr.bf16.mxu0 0
      %336 = vmatmul.mubr.bf16.gmra.mrb[0].mxu0 %v287
      %v337 = vpop.f32.mrb[0].mxu0
      %v338 = vadd.f32 %v248, %v337
      %v339 = vpop.f32.mrb[0].mxu0
      %v340 = vpop.f32.mrb[0].mxu0
      %v341 = vadd.f32 %v248, %v340
      %v342 = vpop.f32.mrb[0].mxu0
      %343 = vmatprep.mubr.bf16.mxu0 0
      %344 = vmatmul.mubr.bf16.gmra.mrb[0].mxu0 %v290
      %v345 = vpop.f32.mrb[0].mxu0
      %v346 = vadd.f32 %v248, %v345
      %v347 = vpop.f32.mrb[0].mxu0
      %v348 = vpop.f32.mrb[0].mxu0
      %v349 = vadd.f32 %v248, %v348
      %v350 = vpop.f32.mrb[0].mxu0
      %351 = vmatprep.mubr.bf16.mxu0 0
      %352 = vmatmul.mubr.bf16.gmra.mrb[0].mxu0 %v293
      %v353 = vpop.f32.mrb[0].mxu0
      %v354 = vadd.f32 %v248, %v353
      %v355 = vpop.f32.mrb[0].mxu0
      %v356 = vpop.f32.mrb[0].mxu0
      %v357 = vadd.f32 %v248, %v356
      %v358 = vpop.f32.mrb[0].mxu0
      %359 = vdwg.mxu0
      %v360 = vmax.f32 %v330, 0.0
      %v361 = vmax.f32 %v333, 0.0
      %v362 = vmax.f32 %v338, 0.0
      %v363 = vmax.f32 %v341, 0.0
      %v364 = vmax.f32 %v346, 0.0
      %v365 = vmax.f32 %v349, 0.0
      %v366 = vmax.f32 %v354, 0.0
      %v367 = vmax.f32 %v357, 0.0
      %vm368 = vcmask 64512
      %369 = vst.msk [vmem:[%s228] sm:$0xff] %vm368, %v360
      %370 = vst.msk [vmem:[%s228 + $0x8] sm:$0xff] %vm368, %v361
      %371 = vst.msk [vmem:[%s228 + $0x10] sm:$0xff] %vm368, %v362
      %372 = vst.msk [vmem:[%s228 + $0x18] sm:$0xff] %vm368, %v363
      %373 = vst.msk [vmem:[%s228 + $0x20] sm:$0xff] %vm368, %v364
      %374 = vst.msk [vmem:[%s228 + $0x28] sm:$0xff] %vm368, %v365
      %375 = vst.msk [vmem:[%s228 + $0x30] sm:$0xff] %vm368, %v366
      %376 = vst.msk [vmem:[%s228 + $0x38] sm:$0xff] %vm368, %v367
      %s377 = smul.u32 8, %s19
      %p378 = scmp.lt.s32.totalorder %s18, 7
      %s379 = scalar_select %p378, %s18, 7
      %p380 = scmp.lt.s32.totalorder %s377, 7
      %s381 = scalar_select %p380, %s377, 7
      %s382 = smul.addr %s379, 8
      %s383 = sadd.s32 %s381, %s382
      %s384 = smul.addr %s383, 8
      %s385 = scalar_lea.vmem %s3, %s384
      // Predicated region
      $region33: #{autoencoder3d_forward.10} parent=31 // pred_check
        %p386 = pneg %p121
      $region34: #{autoencoder3d_forward.10} parent=31 // pred_check_branch
        %388 = sbr.rel (%p386) target = $region36
      $region35: #{autoencoder3d_forward.10} parent=31 // pred_region
        %s389 = smul.u32 8, %s19
      $region36: #{autoencoder3d_forward.10} parent=31 // pred_fallthru
        _
    $region32: #{autoencoder3d_forward.10} parent=5 // pred_fallthru
      _
    %p390 = scmp.le.s32.totalorder 2, %s9
    // Predicated region
    $region37: #{autoencoder3d_forward.10} parent=5 // pred_check
      %p391 = pneg %p390
    $region38: #{autoencoder3d_forward.10} parent=5 // pred_check_branch
      %393 = sbr.rel (%p391) target = $region40
    $region39: #{autoencoder3d_forward.10} parent=5 // pred_region
      %s394 = ssub.s32 %s9, 2
      // Predicated region
      $region41: #{autoencoder3d_forward.10} parent=39 // pred_check
        %p395 = pneg %p127
      $region42: #{autoencoder3d_forward.10} parent=39 // pred_check_branch
        %397 = sbr.rel (%p395) target = $region44
      $region43: #{autoencoder3d_forward.10} parent=39 // pred_region
        %s398 = smul.u32 8, %s21
        %p399 = scmp.lt.s32.totalorder %s20, 7
        %s400 = scalar_select %p399, %s20, 7
        %p401 = scmp.lt.s32.totalorder %s398, 7
        %s402 = scalar_select %p401, %s398, 7
        %s403 = smul.addr %s400, 8
        %s404 = sadd.s32 %s402, %s403
        %s405 = smul.addr %s404, 8
        %s406 = scalar_lea.vmem %s3, %s405
      $region44: #{autoencoder3d_forward.10} parent=39 // pred_fallthru
        _
    $region40: #{autoencoder3d_forward.10} parent=5 // pred_fallthru
      _
  $region6: #{autoencoder3d_forward.10} parent=0 // loop_footer
    %s13 = sadd.s32 1, %s9
  $region7: #{autoencoder3d_forward.10} parent=0 // loop_footer_branch
    %8 = sbr.rel target = $region3
  $region8: #{autoencoder3d_forward.10} parent=0 // loop_exit
    _

// kernel: autoencoder3d_forward.11
$region0: #{autoencoder3d_forward.11}
  #allocation0 [shape = 'u32[]', space=smem, size = 0x4, offset = 0x4, fixed_abs, tag = 'smem constant byte address 0x4 - core index']
  #allocation1 [shape = 'u32[144,128]{1,0:T(1,128)}', space=vmem, size = 0x12000, scoped, tag = 'internal scratch']
  #allocation2 [shape = 'f32[1,1]{1,0:T(1,128)S(1)}', space=vmem, size = 0x200, scoped, tag = 'scoped memory for autoencoder3d_forward.11']
  %s0 = inlined_call_operand.vmem [shape: bf16[8,512,64], index: 0, kind: input, shape index: {}]
  %s1 = inlined_call_operand.vmem [shape: bf16[8,64,1], index: 1, kind: input, shape index: {}]
  %s2 = inlined_call_operand.<no memory space> [shape: f32[1,1], index: 2, kind: input, shape index: {}]
  %s3 = inlined_call_operand.vmem [shape: f32[8,512,1], index: 3, kind: output, shape index: {}]
  %s4 = sld [smem:[#allocation0]]
  $region45: #{autoencoder3d_forward.11} parent=0
    _
  %s6 = ssub.s32 1, %s4
  %s7 = scalar_select 0, %s6, %s4
  %v8 = vstv %s2
  %9 = vst [vmem:[#allocation2] sm:$0x1] %v8
  loop: start=0, step=1, limit=10
  $region2: #{autoencoder3d_forward.11} parent=0 // loop_pre_header
    _
  $region3: #{autoencoder3d_forward.11} parent=0 // loop_header
    %s11 = sphi 0, %s15
    %p12 = scmp.ge.s32.totalorder %s11, 10
    %s18 = sphi 0, %s30
    %s19 = sphi 0, %s26
    %s20 = sphi 0, %s18
    %s21 = sphi 0, %s19
    %s22 = sphi 0, %s20
    %s23 = sphi 0, %s21
    %s35 = sphi 0, %s37
    %s38 = sphi 0, %s35
    %s39 = sphi 0, %s38
    %s55 = sphi 0, %s39
    %s61 = sphi 0, %s63
    %s64 = sphi 0, %s61
    %s65 = sphi 0, %s64
    %s81 = sphi 0, %s65
    %s85 = sphi 0, %s85
    %s87 = sphi 0, %s85
    %s88 = sphi 0, %s87
    %s102 = sphi 0, %s88
    %s110 = sphi 0, %s112
    %s113 = sphi 0, %s110
    %s114 = sphi 0, %s113
    %s130 = sphi 0, %s114
  $region4: #{autoencoder3d_forward.11} parent=0 // loop_header_branch
    %14 = sbr.rel (%p12) target = $region8
  $region5: #{autoencoder3d_forward.11} parent=0 // loop_body
    %s16 = ssub.s32 %s11, 1
    %s17 = ssub.s32 %s11, 2
    %s24 = sadd.s32 1, %s19
    %p25 = scmp.ge.s32.totalorder %s24, 1
    %s26 = scalar_select %p25, 0, %s24
    %s27 = sadd.s32 1, %s18
    %s28 = scalar_select %p25, %s27, %s18
    %p29 = scmp.ge.s32.totalorder %s28, 8
    %s30 = scalar_select %p29, 0, %s28
    %s31 = ssub.s32 %s18, %s30
    %s32 = ssub.s32 %s19, %s26
    %s33 = sor.u32 %s31, %s32
    %p34 = scmp.eq.s32.totalorder %s33, 0
    %s36 = sadd.s32 %s35, 1
    %s37 = scalar_select %p34, %s35, %s36
    %p40 = pneg %p34
    %p41 = scmp.eq.s32.totalorder %s11, 7
    %p42 = por %p40, %p41
    %p43 = scmp.ne.s32.totalorder %s35, %s38
    %p44 = scmp.eq.s32.totalorder %s11, 0
    %p45 = por %p43, %p44
    %p46 = scmp.ne.s32.totalorder %s35, %s38
    %p47 = scmp.eq.s32.totalorder %s16, 7
    %p48 = por %p46, %p47
    %p49 = scmp.ne.s32.totalorder %s38, %s39
    %p50 = scmp.eq.s32.totalorder %s16, 0
    %p51 = por %p49, %p50
    %p52 = scmp.ne.s32.totalorder %s38, %s39
    %p53 = scmp.eq.s32.totalorder %s17, 7
    %p54 = por %p52, %p53
    %p56 = scmp.ne.s32.totalorder %s39, %s55
    %p57 = scmp.eq.s32.totalorder %s17, 0
    %p58 = por %p56, %p57
    %s59 = ssub.s32 %s18, %s30
    %p60 = scmp.eq.s32.totalorder %s59, 0
    %s62 = sadd.s32 %s61, 1
    %s63 = scalar_select %p60, %s61, %s62
    %p66 = pneg %p60
    %p67 = scmp.eq.s32.totalorder %s11, 7
    %p68 = por %p66, %p67
    %p69 = scmp.ne.s32.totalorder %s61, %s64
    %p70 = scmp.eq.s32.totalorder %s11, 0
    %p71 = por %p69, %p70
    %p72 = scmp.ne.s32.totalorder %s61, %s64
    %p73 = scmp.eq.s32.totalorder %s16, 7
    %p74 = por %p72, %p73
    %p75 = scmp.ne.s32.totalorder %s64, %s65
    %p76 = scmp.eq.s32.totalorder %s16, 0
    %p77 = por %p75, %p76
    %p78 = scmp.ne.s32.totalorder %s64, %s65
    %p79 = scmp.eq.s32.totalorder %s17, 7
    %p80 = por %p78, %p79
    %p82 = scmp.ne.s32.totalorder %s65, %s81
    %p83 = scmp.eq.s32.totalorder %s17, 0
    %p84 = por %p82, %p83
    %s86 = sadd.s32 %s85, 1
    %p89 = scmp.eq.s32.totalorder %s11, 7
    %p90 = scmp.ne.s32.totalorder %s85, %s87
    %p91 = scmp.eq.s32.totalorder %s11, 0
    %p92 = por %p90, %p91
    %p93 = scmp.ne.s32.totalorder %s85, %s87
    %p94 = scmp.eq.s32.totalorder %s16, 7
    %p95 = por %p93, %p94
    %p96 = scmp.ne.s32.totalorder %s87, %s88
    %p97 = scmp.eq.s32.totalorder %s16, 0
    %p98 = por %p96, %p97
    %p99 = scmp.ne.s32.totalorder %s87, %s88
    %p100 = scmp.eq.s32.totalorder %s17, 7
    %p101 = por %p99, %p100
    %p103 = scmp.ne.s32.totalorder %s88, %s102
    %p104 = scmp.eq.s32.totalorder %s17, 0
    %p105 = por %p103, %p104
    %s106 = ssub.s32 %s18, %s30
    %s107 = ssub.s32 %s19, %s26
    %s108 = sor.u32 %s106, %s107
    %p109 = scmp.eq.s32.totalorder %s108, 0
    %s111 = sadd.s32 %s110, 1
    %s112 = scalar_select %p109, %s110, %s111
    %p115 = pneg %p109
    %p116 = scmp.eq.s32.totalorder %s11, 7
    %p117 = por %p115, %p116
    %p118 = scmp.ne.s32.totalorder %s110, %s113
    %p119 = scmp.eq.s32.totalorder %s11, 0
    %p120 = por %p118, %p119
    %p121 = scmp.ne.s32.totalorder %s110, %s113
    %p122 = scmp.eq.s32.totalorder %s16, 7
    %p123 = por %p121, %p122
    %p124 = scmp.ne.s32.totalorder %s113, %s114
    %p125 = scmp.eq.s32.totalorder %s16, 0
    %p126 = por %p124, %p125
    %p127 = scmp.ne.s32.totalorder %s113, %s114
    %p128 = scmp.eq.s32.totalorder %s17, 7
    %p129 = por %p127, %p128
    %p131 = scmp.ne.s32.totalorder %s114, %s130
    %p132 = scmp.eq.s32.totalorder %s17, 0
    %p133 = por %p131, %p132
    %p134 = scmp.le.s32.totalorder 1, %s11
    %p135 = scmp.lt.s32.totalorder %s11, 9
    %p136 = pnand %p134, %p135
    %p137 = pneg %p136
    // Predicated region
    $region9: #{autoencoder3d_forward.11} parent=5 // pred_check
      _
    $region10: #{autoencoder3d_forward.11} parent=5 // pred_check_branch
      %139 = sbr.rel (%p136) target = $region12
    $region11: #{autoencoder3d_forward.11} parent=5 // pred_region
      %s140 = ssub.s32 %s11, 1
      // Predicated region
      $region13: #{autoencoder3d_forward.11} parent=11 // pred_check
        %p141 = pneg %p98
      $region14: #{autoencoder3d_forward.11} parent=11 // pred_check_branch
        %143 = sbr.rel (%p141) target = $region16
      $region15: #{autoencoder3d_forward.11} parent=11 // pred_region
        _
      $region16: #{autoencoder3d_forward.11} parent=11 // pred_fallthru
        _
    $region12: #{autoencoder3d_forward.11} parent=5 // pred_fallthru
      _
    %p144 = scmp.lt.s32.totalorder %s11, 8
    // Predicated region
    $region17: #{autoencoder3d_forward.11} parent=5 // pred_check
      %p145 = pneg %p144
    $region18: #{autoencoder3d_forward.11} parent=5 // pred_check_branch
      %147 = sbr.rel (%p145) target = $region20
    $region19: #{autoencoder3d_forward.11} parent=5 // pred_region
      // Predicated region
      $region21: #{autoencoder3d_forward.11} parent=19 // pred_check
        %p148 = pneg %p45
      $region22: #{autoencoder3d_forward.11} parent=19 // pred_check_branch
        %150 = sbr.rel (%p148) target = $region24
      $region23: #{autoencoder3d_forward.11} parent=19 // pred_region
        %s151 = smul.u32 64, %s19
        %p152 = scmp.lt.s32.totalorder %s18, 7
        %s153 = scalar_select %p152, %s18, 7
        %p154 = scmp.lt.s32.totalorder %s151, 63
        %s155 = scalar_select %p154, %s151, 63
        %s156 = smul.addr %s153, 64
        %s157 = sadd.s32 %s155, %s156
        %s158 = smul.addr %s157, 4
        %s159 = scalar_lea.vmem %s0, %s158
        %s160 = smul.u32 64, %s19
      $region24: #{autoencoder3d_forward.11} parent=19 // pred_fallthru
        _
      // Predicated region
      $region25: #{autoencoder3d_forward.11} parent=19 // pred_check
        %p161 = pneg %p71
      $region26: #{autoencoder3d_forward.11} parent=19 // pred_check_branch
        %163 = sbr.rel (%p161) target = $region28
      $region27: #{autoencoder3d_forward.11} parent=19 // pred_region
        %p164 = scmp.lt.s32.totalorder %s18, 7
        %s165 = scalar_select %p164, %s18, 7
        %s166 = smul.addr %s165, 8
        %s167 = smul.addr %s166, 4
        %s168 = scalar_lea.vmem %s1, %s167
      $region28: #{autoencoder3d_forward.11} parent=19 // pred_fallthru
        _
    $region20: #{autoencoder3d_forward.11} parent=5 // pred_fallthru
      _
    %p169 = scmp.le.s32.totalorder 1, %s11
    %p170 = scmp.lt.s32.totalorder %s11, 9
    %p171 = pnand %p169, %p170
    %p172 = pneg %p171
    // Predicated region
    $region29: #{autoencoder3d_forward.11} parent=5 // pred_check
      _
    $region30: #{autoencoder3d_forward.11} parent=5 // pred_check_branch
      %174 = sbr.rel (%p171) target = $region32
    $region31: #{autoencoder3d_forward.11} parent=5 // pred_region
      %s175 = ssub.s32 %s11, 1
      %s176 = smul.u32 64, %s21
      %p177 = scmp.lt.s32.totalorder %s20, 7
      %s178 = scalar_select %p177, %s20, 7
      %p179 = scmp.lt.s32.totalorder %s176, 63
      %s180 = scalar_select %p179, %s176, 63
      %s181 = smul.addr %s178, 64
      %s182 = sadd.s32 %s180, %s181
      %s183 = smul.addr %s182, 4
      %s184 = scalar_lea.vmem %s0, %s183
      %p185 = pneg %p51
      %p186 = pneg %p48
      %p187 = scmp.lt.s32.totalorder %s20, 7
      %s188 = scalar_select %p187, %s20, 7
      %s189 = smul.addr %s188, 8
      %s190 = smul.addr %s189, 4
      %s191 = scalar_lea.vmem %s1, %s190
      %p192 = pneg %p77
      %p193 = pneg %p74
      %p194 = pneg %p98
      %p195 = pneg %p95
      %p196 = pneg %p126
      %p197 = pneg %p123
      %s198 = smul.u32 64, %s21
      %p199 = scmp.lt.s32.totalorder %s20, 7
      %s200 = scalar_select %p199, %s20, 7
      %p201 = scmp.lt.s32.totalorder %s198, 63
      %s202 = scalar_select %p201, %s198, 63
      %s203 = smul.addr %s200, 64
      %s204 = sadd.s32 %s202, %s203
      %s205 = smul.addr %s204, 8
      %s206 = scalar_lea.vmem %s3, %s205
      %s207 = smul.u32 64, %s21
      %p208 = scmp.lt.s32.totalorder %s20, 7
      %s209 = scalar_select %p208, %s20, 7
      %p210 = scmp.lt.s32.totalorder %s207, 63
      %s211 = scalar_select %p210, %s207, 63
      %s212 = smul.addr %s209, 64
      %s213 = sadd.s32 %s211, %s212
      %s214 = smul.addr %s213, 4
      %s215 = scalar_lea.vmem %s0, %s214
      %s216 = smul.u32 64, %s21
      %p217 = scmp.lt.s32.totalorder %s20, 7
      %s218 = scalar_select %p217, %s20, 7
      %s219 = smul.addr %s218, 8
      %s220 = smul.addr %s219, 4
      %s221 = scalar_lea.vmem %s1, %s220
      %s222 = smul.u32 64, %s21
      %p223 = scmp.lt.s32.totalorder %s20, 7
      %s224 = scalar_select %p223, %s20, 7
      %p225 = scmp.lt.s32.totalorder %s222, 63
      %s226 = scalar_select %p225, %s222, 63
      %s227 = smul.addr %s224, 64
      %s228 = sadd.s32 %s226, %s227
      %s229 = smul.addr %s228, 8
      %s230 = scalar_lea.vmem %s3, %s229
      %s231 = smul.u32 64, %s21
      %v233 = vld [vmem:[%s215] sm:$0xf]
      %v234 = vld [vmem:[%s215 + $0x4] sm:$0xf]
      %v235 = vld [vmem:[%s215 + $0x8] sm:$0xf]
      %v236 = vld [vmem:[%s215 + $0xc] sm:$0xf]
      %v237 = vld [vmem:[%s215 + $0x10] sm:$0xf]
      %v238 = vld [vmem:[%s215 + $0x14] sm:$0xf]
      %v239 = vld [vmem:[%s215 + $0x18] sm:$0xf]
      %v240 = vld [vmem:[%s215 + $0x1c] sm:$0xf]
      %v241 = vld [vmem:[%s215 + $0x20] sm:$0xf]
      %v242 = vld [vmem:[%s215 + $0x24] sm:$0xf]
      %v243 = vld [vmem:[%s215 + $0x28] sm:$0xf]
      %v244 = vld [vmem:[%s215 + $0x2c] sm:$0xf]
      %v245 = vld [vmem:[%s215 + $0x30] sm:$0xf]
      %v246 = vld [vmem:[%s215 + $0x34] sm:$0xf]
      %v247 = vld [vmem:[%s215 + $0x38] sm:$0xf]
      %v248 = vld [vmem:[%s215 + $0x3c] sm:$0xf]
      %v249 = vld [vmem:[%s215 + $0x40] sm:$0xf]
      %v250 = vld [vmem:[%s215 + $0x44] sm:$0xf]
      %v251 = vld [vmem:[%s215 + $0x48] sm:$0xf]
      %v252 = vld [vmem:[%s215 + $0x4c] sm:$0xf]
      %v253 = vld [vmem:[%s215 + $0x50] sm:$0xf]
      %v254 = vld [vmem:[%s215 + $0x54] sm:$0xf]
      %v255 = vld [vmem:[%s215 + $0x58] sm:$0xf]
      %v256 = vld [vmem:[%s215 + $0x5c] sm:$0xf]
      %v257 = vld [vmem:[%s215 + $0x60] sm:$0xf]
      %v258 = vld [vmem:[%s215 + $0x64] sm:$0xf]
      %v259 = vld [vmem:[%s215 + $0x68] sm:$0xf]
      %v260 = vld [vmem:[%s215 + $0x6c] sm:$0xf]
      %v261 = vld [vmem:[%s215 + $0x70] sm:$0xf]
      %v262 = vld [vmem:[%s215 + $0x74] sm:$0xf]
      %v263 = vld [vmem:[%s215 + $0x78] sm:$0xf]
      %v264 = vld [vmem:[%s215 + $0x7c] sm:$0xf]
      %v265 = vld [vmem:[%s215 + $0x80] sm:$0xf]
      %v266 = vld [vmem:[%s215 + $0x84] sm:$0xf]
      %v267 = vld [vmem:[%s215 + $0x88] sm:$0xf]
      %v268 = vld [vmem:[%s215 + $0x8c] sm:$0xf]
      %v269 = vld [vmem:[%s215 + $0x90] sm:$0xf]
      %v270 = vld [vmem:[%s215 + $0x94] sm:$0xf]
      %v271 = vld [vmem:[%s215 + $0x98] sm:$0xf]
      %v272 = vld [vmem:[%s215 + $0x9c] sm:$0xf]
      %v273 = vld [vmem:[%s215 + $0xa0] sm:$0xf]
      %v274 = vld [vmem:[%s215 + $0xa4] sm:$0xf]
      %v275 = vld [vmem:[%s215 + $0xa8] sm:$0xf]
      %v276 = vld [vmem:[%s215 + $0xac] sm:$0xf]
      %v277 = vld [vmem:[%s215 + $0xb0] sm:$0xf]
      %v278 = vld [vmem:[%s215 + $0xb4] sm:$0xf]
      %v279 = vld [vmem:[%s215 + $0xb8] sm:$0xf]
      %v280 = vld [vmem:[%s215 + $0xbc] sm:$0xf]
      %v281 = vld [vmem:[%s215 + $0xc0] sm:$0xf]
      %v282 = vld [vmem:[%s215 + $0xc4] sm:$0xf]
      %v283 = vld [vmem:[%s215 + $0xc8] sm:$0xf]
      %v284 = vld [vmem:[%s215 + $0xcc] sm:$0xf]
      %v285 = vld [vmem:[%s215 + $0xd0] sm:$0xf]
      %v286 = vld [vmem:[%s215 + $0xd4] sm:$0xf]
      %v287 = vld [vmem:[%s215 + $0xd8] sm:$0xf]
      %v288 = vld [vmem:[%s215 + $0xdc] sm:$0xf]
      %v289 = vld [vmem:[%s215 + $0xe0] sm:$0xf]
      %v290 = vld [vmem:[%s215 + $0xe4] sm:$0xf]
      %v291 = vld [vmem:[%s215 + $0xe8] sm:$0xf]
      %v292 = vld [vmem:[%s215 + $0xec] sm:$0xf]
      %v293 = vld [vmem:[%s215 + $0xf0] sm:$0xf]
      %v294 = vld [vmem:[%s215 + $0xf4] sm:$0xf]
      %v295 = vld [vmem:[%s215 + $0xf8] sm:$0xf]
      %v296 = vld [vmem:[%s215 + $0xfc] sm:$0xf]
      %v297 = vld [vmem:[%s221] sm:$0xf]
      %v298 = vld [vmem:[%s221 + $0x4] sm:$0xf]
      %v299 = vld [vmem:[%s221 + $0x8] sm:$0xf]
      %v300 = vld [vmem:[%s221 + $0xc] sm:$0xf]
      %v301 = vld [vmem:[%s221 + $0x10] sm:$0xf]
      %v302 = vld [vmem:[%s221 + $0x14] sm:$0xf]
      %v303 = vld [vmem:[%s221 + $0x18] sm:$0xf]
      %v304 = vld [vmem:[%s221 + $0x1c] sm:$0xf]
      %v305 = vld [vmem:[#allocation2] sm:$0x1]
      %v307 = vlaneseq
      %v308 = vshrl.u32 %v307, 7
      %v309 = vsub.s32 0, %v308
      %v310 = vrot.slane %v305, %v309
      %v376 = vunpack.c.l.b16 %v233
      %v377 = vunpack.c.l.b16 %v234
      %v378 = vunpack.c.l.b16 %v235
      %v379 = vunpack.c.l.b16 %v236
      %v380 = vunpack.c.l.b16 %v237
      %v381 = vunpack.c.l.b16 %v238
      %v382 = vunpack.c.l.b16 %v239
      %v383 = vunpack.c.l.b16 %v240
      %v384 = vunpack.c.l.b16 %v241
      %v385 = vunpack.c.l.b16 %v242
      %v386 = vunpack.c.l.b16 %v243
      %v387 = vunpack.c.l.b16 %v244
      %v388 = vunpack.c.l.b16 %v245
      %v389 = vunpack.c.l.b16 %v246
      %v390 = vunpack.c.l.b16 %v247
      %v391 = vunpack.c.l.b16 %v248
      %v392 = vunpack.c.l.b16 %v249
      %v393 = vunpack.c.l.b16 %v250
      %v394 = vunpack.c.l.b16 %v251
      %v395 = vunpack.c.l.b16 %v252
      %v396 = vunpack.c.l.b16 %v253
      %v397 = vunpack.c.l.b16 %v254
      %v398 = vunpack.c.l.b16 %v255
      %v399 = vunpack.c.l.b16 %v256
      %v400 = vunpack.c.l.b16 %v257
      %v401 = vunpack.c.l.b16 %v258
      %v402 = vunpack.c.l.b16 %v259
      %v403 = vunpack.c.l.b16 %v260
      %v404 = vunpack.c.l.b16 %v261
      %v405 = vunpack.c.l.b16 %v262
      %v406 = vunpack.c.l.b16 %v263
      %v407 = vunpack.c.l.b16 %v264
      %v408 = vunpack.c.l.b16 %v265
      %v409 = vunpack.c.l.b16 %v266
      %v410 = vunpack.c.l.b16 %v267
      %v411 = vunpack.c.l.b16 %v268
      %v412 = vunpack.c.l.b16 %v269
      %v413 = vunpack.c.l.b16 %v270
      %v414 = vunpack.c.l.b16 %v271
      %v415 = vunpack.c.l.b16 %v272
      %v416 = vunpack.c.l.b16 %v273
      %v417 = vunpack.c.l.b16 %v274
      %v418 = vunpack.c.l.b16 %v275
      %v419 = vunpack.c.l.b16 %v276
      %v420 = vunpack.c.l.b16 %v277
      %v421 = vunpack.c.l.b16 %v278
      %v422 = vunpack.c.l.b16 %v279
      %v423 = vunpack.c.l.b16 %v280
      %v424 = vunpack.c.l.b16 %v281
      %v425 = vunpack.c.l.b16 %v282
      %v426 = vunpack.c.l.b16 %v283
      %v427 = vunpack.c.l.b16 %v284
      %v428 = vunpack.c.l.b16 %v285
      %v429 = vunpack.c.l.b16 %v286
      %v430 = vunpack.c.l.b16 %v287
      %v431 = vunpack.c.l.b16 %v288
      %v432 = vunpack.c.l.b16 %v289
      %v433 = vunpack.c.l.b16 %v290
      %v434 = vunpack.c.l.b16 %v291
      %v435 = vunpack.c.l.b16 %v292
      %v436 = vunpack.c.l.b16 %v293
      %v437 = vunpack.c.l.b16 %v294
      %v438 = vunpack.c.l.b16 %v295
      %v439 = vunpack.c.l.b16 %v296
      %v440 = vpack.c.b16 %v377, %v376
      %v441 = vpack.c.b16 %v379, %v378
      %v442 = vpack.c.b16 %v381, %v380
      %v443 = vpack.c.b16 %v383, %v382
      %v444 = vpack.c.b16 %v385, %v384
      %v445 = vpack.c.b16 %v387, %v386
      %v446 = vpack.c.b16 %v389, %v388
      %v447 = vpack.c.b16 %v391, %v390
      %v448 = vpack.c.b16 %v393, %v392
      %v449 = vpack.c.b16 %v395, %v394
      %v450 = vpack.c.b16 %v397, %v396
      %v451 = vpack.c.b16 %v399, %v398
      %v452 = vpack.c.b16 %v401, %v400
      %v453 = vpack.c.b16 %v403, %v402
      %v454 = vpack.c.b16 %v405, %v404
      %v455 = vpack.c.b16 %v407, %v406
      %v456 = vpack.c.b16 %v409, %v408
      %v457 = vpack.c.b16 %v411, %v410
      %v458 = vpack.c.b16 %v413, %v412
      %v459 = vpack.c.b16 %v415, %v414
      %v460 = vpack.c.b16 %v417, %v416
      %v461 = vpack.c.b16 %v419, %v418
      %v462 = vpack.c.b16 %v421, %v420
      %v463 = vpack.c.b16 %v423, %v422
      %v464 = vpack.c.b16 %v425, %v424
      %v465 = vpack.c.b16 %v427, %v426
      %v466 = vpack.c.b16 %v429, %v428
      %v467 = vpack.c.b16 %v431, %v430
      %v468 = vpack.c.b16 %v433, %v432
      %v469 = vpack.c.b16 %v435, %v434
      %v470 = vpack.c.b16 %v437, %v436
      %v471 = vpack.c.b16 %v439, %v438
      %v480 = vunpack.c.l.b16 %v297
      %v481 = vunpack.c.l.b16 %v298
      %v482 = vunpack.c.l.b16 %v299
      %v483 = vunpack.c.l.b16 %v300
      %v484 = vunpack.c.l.b16 %v301
      %v485 = vunpack.c.l.b16 %v302
      %v486 = vunpack.c.l.b16 %v303
      %v487 = vunpack.c.l.b16 %v304
      %v488 = vpack.c.b16 %v481, %v480
      %v489 = vpack.c.b16 %v483, %v482
      %v490 = vpack.c.b16 %v485, %v484
      %v491 = vpack.c.b16 %v487, %v486
      %vm496 = vcmask 523264
      %v498 = vsel %vm496, %v440, 0
      %v501 = vsel %vm496, %v441, 0
      %v504 = vsel %vm496, %v442, 0
      %v507 = vsel %vm496, %v443, 0
      %v510 = vsel %vm496, %v444, 0
      %v513 = vsel %vm496, %v445, 0
      %v516 = vsel %vm496, %v446, 0
      %v519 = vsel %vm496, %v447, 0
      %v522 = vsel %vm496, %v448, 0
      %v525 = vsel %vm496, %v449, 0
      %v528 = vsel %vm496, %v450, 0
      %v531 = vsel %vm496, %v451, 0
      %v534 = vsel %vm496, %v452, 0
      %v537 = vsel %vm496, %v453, 0
      %v540 = vsel %vm496, %v454, 0
      %v543 = vsel %vm496, %v455, 0
      %v546 = vsel %vm496, %v456, 0
      %v549 = vsel %vm496, %v457, 0
      %v552 = vsel %vm496, %v458, 0
      %v555 = vsel %vm496, %v459, 0
      %v558 = vsel %vm496, %v460, 0
      %v561 = vsel %vm496, %v461, 0
      %v564 = vsel %vm496, %v462, 0
      %v567 = vsel %vm496, %v463, 0
      %v570 = vsel %vm496, %v464, 0
      %v573 = vsel %vm496, %v465, 0
      %v576 = vsel %vm496, %v466, 0
      %v579 = vsel %vm496, %v467, 0
      %v582 = vsel %vm496, %v468, 0
      %v585 = vsel %vm496, %v469, 0
      %v588 = vsel %vm496, %v470, 0
      %v591 = vsel %vm496, %v471, 0
      %593 = vmatprep.subr.bf16.mxu0 0
      %594 = vmatpush1.bf16.msra.mxu0 %v488
      %595 = vmatprep.subr.bf16.mxu0 0
      %596 = vmatpush1.bf16.msra.mxu0 %v489
      %597 = vmatprep.subr.bf16.mxu0 0
      %598 = vmatpush1.bf16.msra.mxu0 %v490
      %599 = vmatprep.subr.bf16.mxu0 0
      %600 = vmatpush1.bf16.msra.mxu0 %v491
      %601 = vmatprep.subr.bf16.mxu0 0
      %602 = vmatpush1.bf16.msra.mxu0 0
      %603 = vmatprep.subr.bf16.mxu0 0
      %604 = vmatpush1.bf16.msra.mxu0 0
      %605 = vmatprep.subr.bf16.mxu0 0
      %606 = vmatpush1.bf16.msra.mxu0 0
      %607 = vmatprep.subr.bf16.mxu0 0
      %608 = vmatpush1.bf16.msra.mxu0 0
      %609 = vmatprep.subr.bf16.mxu0 0
      %610 = vmatpush1.bf16.msra.mxu0 0
      %611 = vmatprep.subr.bf16.mxu0 0
      %612 = vmatpush1.bf16.msra.mxu0 0
      %613 = vmatprep.subr.bf16.mxu0 0
      %614 = vmatpush1.bf16.msra.mxu0 0
      %615 = vmatprep.subr.bf16.mxu0 0
      %616 = vmatpush1.bf16.msra.mxu0 0
      %617 = vmatprep.subr.bf16.mxu0 0
      %618 = vmatpush1.bf16.msra.mxu0 0
      %619 = vmatprep.subr.bf16.mxu0 0
      %620 = vmatpush1.bf16.msra.mxu0 0
      %621 = vmatprep.subr.bf16.mxu0 0
      %622 = vmatpush1.bf16.msra.mxu0 0
      %623 = vmatprep.subr.bf16.mxu0 0
      %624 = vmatpush1.bf16.msra.mxu0 0
      %625 = vmatprep.mubr.bf16.mxu0 0
      %626 = vmatmul.mubr.bf16.gmra.mrb[0].mxu0 %v498
      %v627 = vpop.f32.mrb[0].mxu0
      %v628 = vadd.f32 %v310, %v627
      %v629 = vpop.f32.mrb[0].mxu0
      %v630 = vpop.f32.mrb[0].mxu0
      %v631 = vadd.f32 %v310, %v630
      %v632 = vpop.f32.mrb[0].mxu0
      %633 = vmatprep.mubr.bf16.mxu0 0
      %634 = vmatmul.mubr.bf16.gmra.mrb[0].mxu0 %v501
      %v635 = vpop.f32.mrb[0].mxu0
      %v636 = vadd.f32 %v310, %v635
      %v637 = vpop.f32.mrb[0].mxu0
      %v638 = vpop.f32.mrb[0].mxu0
      %v639 = vadd.f32 %v310, %v638
      %v640 = vpop.f32.mrb[0].mxu0
      %641 = vmatprep.mubr.bf16.mxu0 0
      %642 = vmatmul.mubr.bf16.gmra.mrb[0].mxu0 %v504
      %v643 = vpop.f32.mrb[0].mxu0
      %v644 = vadd.f32 %v310, %v643
      %v645 = vpop.f32.mrb[0].mxu0
      %v646 = vpop.f32.mrb[0].mxu0
      %v647 = vadd.f32 %v310, %v646
      %v648 = vpop.f32.mrb[0].mxu0
      %649 = vmatprep.mubr.bf16.mxu0 0
      %650 = vmatmul.mubr.bf16.gmra.mrb[0].mxu0 %v507
      %v651 = vpop.f32.mrb[0].mxu0
      %v652 = vadd.f32 %v310, %v651
      %v653 = vpop.f32.mrb[0].mxu0
      %v654 = vpop.f32.mrb[0].mxu0
      %v655 = vadd.f32 %v310, %v654
      %v656 = vpop.f32.mrb[0].mxu0
      %657 = vmatprep.mubr.bf16.mxu0 0
      %658 = vmatmul.mubr.bf16.gmra.mrb[0].mxu0 %v510
      %v659 = vpop.f32.mrb[0].mxu0
      %v660 = vadd.f32 %v310, %v659
      %v661 = vpop.f32.mrb[0].mxu0
      %v662 = vpop.f32.mrb[0].mxu0
      %v663 = vadd.f32 %v310, %v662
      %v664 = vpop.f32.mrb[0].mxu0
      %665 = vmatprep.mubr.bf16.mxu0 0
      %666 = vmatmul.mubr.bf16.gmra.mrb[0].mxu0 %v513
      %v667 = vpop.f32.mrb[0].mxu0
      %v668 = vadd.f32 %v310, %v667
      %v669 = vpop.f32.mrb[0].mxu0
      %v670 = vpop.f32.mrb[0].mxu0
      %v671 = vadd.f32 %v310, %v670
      %v672 = vpop.f32.mrb[0].mxu0
      %673 = vmatprep.mubr.bf16.mxu0 0
      %674 = vmatmul.mubr.bf16.gmra.mrb[0].mxu0 %v516
      %v675 = vpop.f32.mrb[0].mxu0
      %v676 = vadd.f32 %v310, %v675
      %v677 = vpop.f32.mrb[0].mxu0
      %v678 = vpop.f32.mrb[0].mxu0
      %v679 = vadd.f32 %v310, %v678
      %v680 = vpop.f32.mrb[0].mxu0
      %681 = vmatprep.mubr.bf16.mxu0 0
      %682 = vmatmul.mubr.bf16.gmra.mrb[0].mxu0 %v519
      %v683 = vpop.f32.mrb[0].mxu0
      %v684 = vadd.f32 %v310, %v683
      %v685 = vpop.f32.mrb[0].mxu0
      %v686 = vpop.f32.mrb[0].mxu0
      %v687 = vadd.f32 %v310, %v686
      %v688 = vpop.f32.mrb[0].mxu0
      %689 = vmatprep.mubr.bf16.mxu0 0
      %690 = vmatmul.mubr.bf16.gmra.mrb[0].mxu0 %v522
      %v691 = vpop.f32.mrb[0].mxu0
      %v692 = vadd.f32 %v310, %v691
      %v693 = vpop.f32.mrb[0].mxu0
      %v694 = vpop.f32.mrb[0].mxu0
      %v695 = vadd.f32 %v310, %v694
      %v696 = vpop.f32.mrb[0].mxu0
      %697 = vmatprep.mubr.bf16.mxu0 0
      %698 = vmatmul.mubr.bf16.gmra.mrb[0].mxu0 %v525
      %v699 = vpop.f32.mrb[0].mxu0
      %v700 = vadd.f32 %v310, %v699
      %v701 = vpop.f32.mrb[0].mxu0
      %v702 = vpop.f32.mrb[0].mxu0
      %v703 = vadd.f32 %v310, %v702
      %v704 = vpop.f32.mrb[0].mxu0
      %705 = vmatprep.mubr.bf16.mxu0 0
      %706 = vmatmul.mubr.bf16.gmra.mrb[0].mxu0 %v528
      %v707 = vpop.f32.mrb[0].mxu0
      %v708 = vadd.f32 %v310, %v707
      %v709 = vpop.f32.mrb[0].mxu0
      %v710 = vpop.f32.mrb[0].mxu0
      %v711 = vadd.f32 %v310, %v710
      %v712 = vpop.f32.mrb[0].mxu0
      %713 = vmatprep.mubr.bf16.mxu0 0
      %714 = vmatmul.mubr.bf16.gmra.mrb[0].mxu0 %v531
      %v715 = vpop.f32.mrb[0].mxu0
      %v716 = vadd.f32 %v310, %v715
      %v717 = vpop.f32.mrb[0].mxu0
      %v718 = vpop.f32.mrb[0].mxu0
      %v719 = vadd.f32 %v310, %v718
      %v720 = vpop.f32.mrb[0].mxu0
      %721 = vmatprep.mubr.bf16.mxu0 0
      %722 = vmatmul.mubr.bf16.gmra.mrb[0].mxu0 %v534
      %v723 = vpop.f32.mrb[0].mxu0
      %v724 = vadd.f32 %v310, %v723
      %v725 = vpop.f32.mrb[0].mxu0
      %v726 = vpop.f32.mrb[0].mxu0
      %v727 = vadd.f32 %v310, %v726
      %v728 = vpop.f32.mrb[0].mxu0
      %729 = vmatprep.mubr.bf16.mxu0 0
      %730 = vmatmul.mubr.bf16.gmra.mrb[0].mxu0 %v537
      %v731 = vpop.f32.mrb[0].mxu0
      %v732 = vadd.f32 %v310, %v731
      %v733 = vpop.f32.mrb[0].mxu0
      %v734 = vpop.f32.mrb[0].mxu0
      %v735 = vadd.f32 %v310, %v734
      %v736 = vpop.f32.mrb[0].mxu0
      %737 = vmatprep.mubr.bf16.mxu0 0
      %738 = vmatmul.mubr.bf16.gmra.mrb[0].mxu0 %v540
      %v739 = vpop.f32.mrb[0].mxu0
      %v740 = vadd.f32 %v310, %v739
      %v741 = vpop.f32.mrb[0].mxu0
      %v742 = vpop.f32.mrb[0].mxu0
      %v743 = vadd.f32 %v310, %v742
      %v744 = vpop.f32.mrb[0].mxu0
      %745 = vmatprep.mubr.bf16.mxu0 0
      %746 = vmatmul.mubr.bf16.gmra.mrb[0].mxu0 %v543
      %v747 = vpop.f32.mrb[0].mxu0
      %v748 = vadd.f32 %v310, %v747
      %v749 = vpop.f32.mrb[0].mxu0
      %v750 = vpop.f32.mrb[0].mxu0
      %v751 = vadd.f32 %v310, %v750
      %v752 = vpop.f32.mrb[0].mxu0
      %753 = vmatprep.mubr.bf16.mxu0 0
      %754 = vmatmul.mubr.bf16.gmra.mrb[0].mxu0 %v546
      %v755 = vpop.f32.mrb[0].mxu0
      %v756 = vadd.f32 %v310, %v755
      %v757 = vpop.f32.mrb[0].mxu0
      %v758 = vpop.f32.mrb[0].mxu0
      %v759 = vadd.f32 %v310, %v758
      %v760 = vpop.f32.mrb[0].mxu0
      %761 = vmatprep.mubr.bf16.mxu0 0
      %762 = vmatmul.mubr.bf16.gmra.mrb[0].mxu0 %v549
      %v763 = vpop.f32.mrb[0].mxu0
      %v764 = vadd.f32 %v310, %v763
      %v765 = vpop.f32.mrb[0].mxu0
      %v766 = vpop.f32.mrb[0].mxu0
      %v767 = vadd.f32 %v310, %v766
      %v768 = vpop.f32.mrb[0].mxu0
      %769 = vmatprep.mubr.bf16.mxu0 0
      %770 = vmatmul.mubr.bf16.gmra.mrb[0].mxu0 %v552
      %v771 = vpop.f32.mrb[0].mxu0
      %v772 = vadd.f32 %v310, %v771
      %v773 = vpop.f32.mrb[0].mxu0
      %v774 = vpop.f32.mrb[0].mxu0
      %v775 = vadd.f32 %v310, %v774
      %v776 = vpop.f32.mrb[0].mxu0
      %777 = vmatprep.mubr.bf16.mxu0 0
      %778 = vmatmul.mubr.bf16.gmra.mrb[0].mxu0 %v555
      %v779 = vpop.f32.mrb[0].mxu0
      %v780 = vadd.f32 %v310, %v779
      %v781 = vpop.f32.mrb[0].mxu0
      %v782 = vpop.f32.mrb[0].mxu0
      %v783 = vadd.f32 %v310, %v782
      %v784 = vpop.f32.mrb[0].mxu0
      %785 = vmatprep.mubr.bf16.mxu0 0
      %786 = vmatmul.mubr.bf16.gmra.mrb[0].mxu0 %v558
      %v787 = vpop.f32.mrb[0].mxu0
      %v788 = vadd.f32 %v310, %v787
      %v789 = vpop.f32.mrb[0].mxu0
      %v790 = vpop.f32.mrb[0].mxu0
      %v791 = vadd.f32 %v310, %v790
      %v792 = vpop.f32.mrb[0].mxu0
      %793 = vmatprep.mubr.bf16.mxu0 0
      %794 = vmatmul.mubr.bf16.gmra.mrb[0].mxu0 %v561
      %v795 = vpop.f32.mrb[0].mxu0
      %v796 = vadd.f32 %v310, %v795
      %v797 = vpop.f32.mrb[0].mxu0
      %v798 = vpop.f32.mrb[0].mxu0
      %v799 = vadd.f32 %v310, %v798
      %v800 = vpop.f32.mrb[0].mxu0
      %801 = vmatprep.mubr.bf16.mxu0 0
      %802 = vmatmul.mubr.bf16.gmra.mrb[0].mxu0 %v564
      %v803 = vpop.f32.mrb[0].mxu0
      %v804 = vadd.f32 %v310, %v803
      %v805 = vpop.f32.mrb[0].mxu0
      %v806 = vpop.f32.mrb[0].mxu0
      %v807 = vadd.f32 %v310, %v806
      %v808 = vpop.f32.mrb[0].mxu0
      %809 = vmatprep.mubr.bf16.mxu0 0
      %810 = vmatmul.mubr.bf16.gmra.mrb[0].mxu0 %v567
      %v811 = vpop.f32.mrb[0].mxu0
      %v812 = vadd.f32 %v310, %v811
      %v813 = vpop.f32.mrb[0].mxu0
      %v814 = vpop.f32.mrb[0].mxu0
      %v815 = vadd.f32 %v310, %v814
      %v816 = vpop.f32.mrb[0].mxu0
      %817 = vmatprep.mubr.bf16.mxu0 0
      %818 = vmatmul.mubr.bf16.gmra.mrb[0].mxu0 %v570
      %v819 = vpop.f32.mrb[0].mxu0
      %v820 = vadd.f32 %v310, %v819
      %v821 = vpop.f32.mrb[0].mxu0
      %v822 = vpop.f32.mrb[0].mxu0
      %v823 = vadd.f32 %v310, %v822
      %v824 = vpop.f32.mrb[0].mxu0
      %825 = vmatprep.mubr.bf16.mxu0 0
      %826 = vmatmul.mubr.bf16.gmra.mrb[0].mxu0 %v573
      %v827 = vpop.f32.mrb[0].mxu0
      %v828 = vadd.f32 %v310, %v827
      %v829 = vpop.f32.mrb[0].mxu0
      %v830 = vpop.f32.mrb[0].mxu0
      %v831 = vadd.f32 %v310, %v830
      %v832 = vpop.f32.mrb[0].mxu0
      %833 = vmatprep.mubr.bf16.mxu0 0
      %834 = vmatmul.mubr.bf16.gmra.mrb[0].mxu0 %v576
      %v835 = vpop.f32.mrb[0].mxu0
      %v836 = vadd.f32 %v310, %v835
      %v837 = vpop.f32.mrb[0].mxu0
      %v838 = vpop.f32.mrb[0].mxu0
      %v839 = vadd.f32 %v310, %v838
      %v840 = vpop.f32.mrb[0].mxu0
      %841 = vmatprep.mubr.bf16.mxu0 0
      %842 = vmatmul.mubr.bf16.gmra.mrb[0].mxu0 %v579
      %v843 = vpop.f32.mrb[0].mxu0
      %v844 = vadd.f32 %v310, %v843
      %v845 = vpop.f32.mrb[0].mxu0
      %v846 = vpop.f32.mrb[0].mxu0
      %v847 = vadd.f32 %v310, %v846
      %v848 = vpop.f32.mrb[0].mxu0
      %849 = vmatprep.mubr.bf16.mxu0 0
      %850 = vmatmul.mubr.bf16.gmra.mrb[0].mxu0 %v582
      %v851 = vpop.f32.mrb[0].mxu0
      %v852 = vadd.f32 %v310, %v851
      %v853 = vpop.f32.mrb[0].mxu0
      %v854 = vpop.f32.mrb[0].mxu0
      %v855 = vadd.f32 %v310, %v854
      %v856 = vpop.f32.mrb[0].mxu0
      %857 = vmatprep.mubr.bf16.mxu0 0
      %858 = vmatmul.mubr.bf16.gmra.mrb[0].mxu0 %v585
      %v859 = vpop.f32.mrb[0].mxu0
      %v860 = vadd.f32 %v310, %v859
      %v861 = vpop.f32.mrb[0].mxu0
      %v862 = vpop.f32.mrb[0].mxu0
      %v863 = vadd.f32 %v310, %v862
      %v864 = vpop.f32.mrb[0].mxu0
      %865 = vmatprep.mubr.bf16.mxu0 0
      %866 = vmatmul.mubr.bf16.gmra.mrb[0].mxu0 %v588
      %v867 = vpop.f32.mrb[0].mxu0
      %v868 = vadd.f32 %v310, %v867
      %v869 = vpop.f32.mrb[0].mxu0
      %v870 = vpop.f32.mrb[0].mxu0
      %v871 = vadd.f32 %v310, %v870
      %v872 = vpop.f32.mrb[0].mxu0
      %873 = vmatprep.mubr.bf16.mxu0 0
      %874 = vmatmul.mubr.bf16.gmra.mrb[0].mxu0 %v591
      %v875 = vpop.f32.mrb[0].mxu0
      %v876 = vadd.f32 %v310, %v875
      %v877 = vpop.f32.mrb[0].mxu0
      %v878 = vpop.f32.mrb[0].mxu0
      %v879 = vadd.f32 %v310, %v878
      %v880 = vpop.f32.mrb[0].mxu0
      %881 = vdwg.mxu0
      %v882 = vsub.f32 0.0, %v628
      %v883 = vsub.f32 0.0, %v631
      %v884 = vsub.f32 0.0, %v636
      %v885 = vsub.f32 0.0, %v639
      %v886 = vsub.f32 0.0, %v644
      %v887 = vsub.f32 0.0, %v647
      %v888 = vsub.f32 0.0, %v652
      %v889 = vsub.f32 0.0, %v655
      %v890 = vsub.f32 0.0, %v660
      %v891 = vsub.f32 0.0, %v663
      %v892 = vsub.f32 0.0, %v668
      %v893 = vsub.f32 0.0, %v671
      %v894 = vsub.f32 0.0, %v676
      %v895 = vsub.f32 0.0, %v679
      %v896 = vsub.f32 0.0, %v684
      %v897 = vsub.f32 0.0, %v687
      %v898 = vsub.f32 0.0, %v692
      %v899 = vsub.f32 0.0, %v695
      %v900 = vsub.f32 0.0, %v700
      %v901 = vsub.f32 0.0, %v703
      %v902 = vsub.f32 0.0, %v708
      %v903 = vsub.f32 0.0, %v711
      %v904 = vsub.f32 0.0, %v716
      %v905 = vsub.f32 0.0, %v719
      %v906 = vsub.f32 0.0, %v724
      %v907 = vsub.f32 0.0, %v727
      %v908 = vsub.f32 0.0, %v732
      %v909 = vsub.f32 0.0, %v735
      %v910 = vsub.f32 0.0, %v740
      %v911 = vsub.f32 0.0, %v743
      %v912 = vsub.f32 0.0, %v748
      %v913 = vsub.f32 0.0, %v751
      %v914 = vsub.f32 0.0, %v756
      %v915 = vsub.f32 0.0, %v759
      %v916 = vsub.f32 0.0, %v764
      %v917 = vsub.f32 0.0, %v767
      %v918 = vsub.f32 0.0, %v772
      %v919 = vsub.f32 0.0, %v775
      %v920 = vsub.f32 0.0, %v780
      %v921 = vsub.f32 0.0, %v783
      %v922 = vsub.f32 0.0, %v788
      %v923 = vsub.f32 0.0, %v791
      %v924 = vsub.f32 0.0, %v796
      %v925 = vsub.f32 0.0, %v799
      %v926 = vsub.f32 0.0, %v804
      %v927 = vsub.f32 0.0, %v807
      %v928 = vsub.f32 0.0, %v812
      %v929 = vsub.f32 0.0, %v815
      %v930 = vsub.f32 0.0, %v820
      %v931 = vsub.f32 0.0, %v823
      %v932 = vsub.f32 0.0, %v828
      %v933 = vsub.f32 0.0, %v831
      %v934 = vsub.f32 0.0, %v836
      %v935 = vsub.f32 0.0, %v839
      %v936 = vsub.f32 0.0, %v844
      %v937 = vsub.f32 0.0, %v847
      %v938 = vsub.f32 0.0, %v852
      %v939 = vsub.f32 0.0, %v855
      %v940 = vsub.f32 0.0, %v860
      %v941 = vsub.f32 0.0, %v863
      %v942 = vsub.f32 0.0, %v868
      %v943 = vsub.f32 0.0, %v871
      %v944 = vsub.f32 0.0, %v876
      %v945 = vsub.f32 0.0, %v879
      %v946 = vmul.f32 %v882, 1.442695
      %v947 = vpow.pop %v946
      %v948 = vmul.f32 %v883, 1.442695
      %v949 = vpow.pop %v948
      %v950 = vmul.f32 %v884, 1.442695
      %v951 = vpow.pop %v950
      %v952 = vmul.f32 %v885, 1.442695
      %v953 = vpow.pop %v952
      %v954 = vmul.f32 %v886, 1.442695
      %v955 = vpow.pop %v954
      %v956 = vmul.f32 %v887, 1.442695
      %v957 = vpow.pop %v956
      %v958 = vmul.f32 %v888, 1.442695
      %v959 = vpow.pop %v958
      %v960 = vmul.f32 %v889, 1.442695
      %v961 = vpow.pop %v960
      %v962 = vmul.f32 %v890, 1.442695
      %v963 = vpow.pop %v962
      %v964 = vmul.f32 %v891, 1.442695
      %v965 = vpow.pop %v964
      %v966 = vmul.f32 %v892, 1.442695
      %v967 = vpow.pop %v966
      %v968 = vmul.f32 %v893, 1.442695
      %v969 = vpow.pop %v968
      %v970 = vmul.f32 %v894, 1.442695
      %v971 = vpow.pop %v970
      %v972 = vmul.f32 %v895, 1.442695
      %v973 = vpow.pop %v972
      %v974 = vmul.f32 %v896, 1.442695
      %v975 = vpow.pop %v974
      %v976 = vmul.f32 %v897, 1.442695
      %v977 = vpow.pop %v976
      %v978 = vmul.f32 %v898, 1.442695
      %v979 = vpow.pop %v978
      %v980 = vmul.f32 %v899, 1.442695
      %v981 = vpow.pop %v980
      %v982 = vmul.f32 %v900, 1.442695
      %v983 = vpow.pop %v982
      %v984 = vmul.f32 %v901, 1.442695
      %v985 = vpow.pop %v984
      %v986 = vmul.f32 %v902, 1.442695
      %v987 = vpow.pop %v986
      %v988 = vmul.f32 %v903, 1.442695
      %v989 = vpow.pop %v988
      %v990 = vmul.f32 %v904, 1.442695
      %v991 = vpow.pop %v990
      %v992 = vmul.f32 %v905, 1.442695
      %v993 = vpow.pop %v992
      %v994 = vmul.f32 %v906, 1.442695
      %v995 = vpow.pop %v994
      %v996 = vmul.f32 %v907, 1.442695
      %v997 = vpow.pop %v996
      %v998 = vmul.f32 %v908, 1.442695
      %v999 = vpow.pop %v998
      %v1000 = vmul.f32 %v909, 1.442695
      %v1001 = vpow.pop %v1000
      %v1002 = vmul.f32 %v910, 1.442695
      %v1003 = vpow.pop %v1002
      %v1004 = vmul.f32 %v911, 1.442695
      %v1005 = vpow.pop %v1004
      %v1006 = vmul.f32 %v912, 1.442695
      %v1007 = vpow.pop %v1006
      %v1008 = vmul.f32 %v913, 1.442695
      %v1009 = vpow.pop %v1008
      %v1010 = vmul.f32 %v914, 1.442695
      %v1011 = vpow.pop %v1010
      %v1012 = vmul.f32 %v915, 1.442695
      %v1013 = vpow.pop %v1012
      %v1014 = vmul.f32 %v916, 1.442695
      %v1015 = vpow.pop %v1014
      %v1016 = vmul.f32 %v917, 1.442695
      %v1017 = vpow.pop %v1016
      %v1018 = vmul.f32 %v918, 1.442695
      %v1019 = vpow.pop %v1018
      %v1020 = vmul.f32 %v919, 1.442695
      %v1021 = vpow.pop %v1020
      %v1022 = vmul.f32 %v920, 1.442695
      %v1023 = vpow.pop %v1022
      %v1024 = vmul.f32 %v921, 1.442695
      %v1025 = vpow.pop %v1024
      %v1026 = vmul.f32 %v922, 1.442695
      %v1027 = vpow.pop %v1026
      %v1028 = vmul.f32 %v923, 1.442695
      %v1029 = vpow.pop %v1028
      %v1030 = vmul.f32 %v924, 1.442695
      %v1031 = vpow.pop %v1030
      %v1032 = vmul.f32 %v925, 1.442695
      %v1033 = vpow.pop %v1032
      %v1034 = vmul.f32 %v926, 1.442695
      %v1035 = vpow.pop %v1034
      %v1036 = vmul.f32 %v927, 1.442695
      %v1037 = vpow.pop %v1036
      %v1038 = vmul.f32 %v928, 1.442695
      %v1039 = vpow.pop %v1038
      %v1040 = vmul.f32 %v929, 1.442695
      %v1041 = vpow.pop %v1040
      %v1042 = vmul.f32 %v930, 1.442695
      %v1043 = vpow.pop %v1042
      %v1044 = vmul.f32 %v931, 1.442695
      %v1045 = vpow.pop %v1044
      %v1046 = vmul.f32 %v932, 1.442695
      %v1047 = vpow.pop %v1046
      %v1048 = vmul.f32 %v933, 1.442695
      %v1049 = vpow.pop %v1048
      %v1050 = vmul.f32 %v934, 1.442695
      %v1051 = vpow.pop %v1050
      %v1052 = vmul.f32 %v935, 1.442695
      %v1053 = vpow.pop %v1052
      %v1054 = vmul.f32 %v936, 1.442695
      %v1055 = vpow.pop %v1054
      %v1056 = vmul.f32 %v937, 1.442695
      %v1057 = vpow.pop %v1056
      %v1058 = vmul.f32 %v938, 1.442695
      %v1059 = vpow.pop %v1058
      %v1060 = vmul.f32 %v939, 1.442695
      %v1061 = vpow.pop %v1060
      %v1062 = vmul.f32 %v940, 1.442695
      %v1063 = vpow.pop %v1062
      %v1064 = vmul.f32 %v941, 1.442695
      %v1065 = vpow.pop %v1064
      %v1066 = vmul.f32 %v942, 1.442695
      %v1067 = vpow.pop %v1066
      %v1068 = vmul.f32 %v943, 1.442695
      %v1069 = vpow.pop %v1068
      %v1070 = vmul.f32 %v944, 1.442695
      %v1071 = vpow.pop %v1070
      %v1072 = vmul.f32 %v945, 1.442695
      %v1073 = vpow.pop %v1072
      %v1074 = vadd.f32 %v947, 1.0
      %v1075 = vadd.f32 %v949, 1.0
      %v1076 = vadd.f32 %v951, 1.0
      %v1077 = vadd.f32 %v953, 1.0
      %v1078 = vadd.f32 %v955, 1.0
      %v1079 = vadd.f32 %v957, 1.0
      %v1080 = vadd.f32 %v959, 1.0
      %v1081 = vadd.f32 %v961, 1.0
      %v1082 = vadd.f32 %v963, 1.0
      %v1083 = vadd.f32 %v965, 1.0
      %v1084 = vadd.f32 %v967, 1.0
      %v1085 = vadd.f32 %v969, 1.0
      %v1086 = vadd.f32 %v971, 1.0
      %v1087 = vadd.f32 %v973, 1.0
      %v1088 = vadd.f32 %v975, 1.0
      %v1089 = vadd.f32 %v977, 1.0
      %v1090 = vadd.f32 %v979, 1.0
      %v1091 = vadd.f32 %v981, 1.0
      %v1092 = vadd.f32 %v983, 1.0
      %v1093 = vadd.f32 %v985, 1.0
      %v1094 = vadd.f32 %v987, 1.0
      %v1095 = vadd.f32 %v989, 1.0
      %v1096 = vadd.f32 %v991, 1.0
      %v1097 = vadd.f32 %v993, 1.0
      %v1098 = vadd.f32 %v995, 1.0
      %v1099 = vadd.f32 %v997, 1.0
      %v1100 = vadd.f32 %v999, 1.0
      %v1101 = vadd.f32 %v1001, 1.0
      %v1102 = vadd.f32 %v1003, 1.0
      %v1103 = vadd.f32 %v1005, 1.0
      %v1104 = vadd.f32 %v1007, 1.0
      %v1105 = vadd.f32 %v1009, 1.0
      %v1106 = vadd.f32 %v1011, 1.0
      %v1107 = vadd.f32 %v1013, 1.0
      %v1108 = vadd.f32 %v1015, 1.0
      %v1109 = vadd.f32 %v1017, 1.0
      %v1110 = vadd.f32 %v1019, 1.0
      %v1111 = vadd.f32 %v1021, 1.0
      %v1112 = vadd.f32 %v1023, 1.0
      %v1113 = vadd.f32 %v1025, 1.0
      %v1114 = vadd.f32 %v1027, 1.0
      %v1115 = vadd.f32 %v1029, 1.0
      %v1116 = vadd.f32 %v1031, 1.0
      %v1117 = vadd.f32 %v1033, 1.0
      %v1118 = vadd.f32 %v1035, 1.0
      %v1119 = vadd.f32 %v1037, 1.0
      %v1120 = vadd.f32 %v1039, 1.0
      %v1121 = vadd.f32 %v1041, 1.0
      %v1122 = vadd.f32 %v1043, 1.0
      %v1123 = vadd.f32 %v1045, 1.0
      %v1124 = vadd.f32 %v1047, 1.0
      %v1125 = vadd.f32 %v1049, 1.0
      %v1126 = vadd.f32 %v1051, 1.0
      %v1127 = vadd.f32 %v1053, 1.0
      %v1128 = vadd.f32 %v1055, 1.0
      %v1129 = vadd.f32 %v1057, 1.0
      %v1130 = vadd.f32 %v1059, 1.0
      %v1131 = vadd.f32 %v1061, 1.0
      %v1132 = vadd.f32 %v1063, 1.0
      %v1133 = vadd.f32 %v1065, 1.0
      %v1134 = vadd.f32 %v1067, 1.0
      %v1135 = vadd.f32 %v1069, 1.0
      %v1136 = vadd.f32 %v1071, 1.0
      %v1137 = vadd.f32 %v1073, 1.0
      %v1138 = vrcp.pop %v1074
      %v1139 = vrcp.pop %v1075
      %v1140 = vrcp.pop %v1076
      %v1141 = vrcp.pop %v1077
      %v1142 = vrcp.pop %v1078
      %v1143 = vrcp.pop %v1079
      %v1144 = vrcp.pop %v1080
      %v1145 = vrcp.pop %v1081
      %v1146 = vrcp.pop %v1082
      %v1147 = vrcp.pop %v1083
      %v1148 = vrcp.pop %v1084
      %v1149 = vrcp.pop %v1085
      %v1150 = vrcp.pop %v1086
      %v1151 = vrcp.pop %v1087
      %v1152 = vrcp.pop %v1088
      %v1153 = vrcp.pop %v1089
      %v1154 = vrcp.pop %v1090
      %v1155 = vrcp.pop %v1091
      %v1156 = vrcp.pop %v1092
      %v1157 = vrcp.pop %v1093
      %v1158 = vrcp.pop %v1094
      %v1159 = vrcp.pop %v1095
      %v1160 = vrcp.pop %v1096
      %v1161 = vrcp.pop %v1097
      %v1162 = vrcp.pop %v1098
      %v1163 = vrcp.pop %v1099
      %v1164 = vrcp.pop %v1100
      %v1165 = vrcp.pop %v1101
      %v1166 = vrcp.pop %v1102
      %v1167 = vrcp.pop %v1103
      %v1168 = vrcp.pop %v1104
      %v1169 = vrcp.pop %v1105
      %v1170 = vrcp.pop %v1106
      %v1171 = vrcp.pop %v1107
      %v1172 = vrcp.pop %v1108
      %v1173 = vrcp.pop %v1109
      %v1174 = vrcp.pop %v1110
      %v1175 = vrcp.pop %v1111
      %v1176 = vrcp.pop %v1112
      %v1177 = vrcp.pop %v1113
      %v1178 = vrcp.pop %v1114
      %v1179 = vrcp.pop %v1115
      %v1180 = vrcp.pop %v1116
      %v1181 = vrcp.pop %v1117
      %v1182 = vrcp.pop %v1118
      %v1183 = vrcp.pop %v1119
      %v1184 = vrcp.pop %v1120
      %v1185 = vrcp.pop %v1121
      %v1186 = vrcp.pop %v1122
      %v1187 = vrcp.pop %v1123
      %v1188 = vrcp.pop %v1124
      %v1189 = vrcp.pop %v1125
      %v1190 = vrcp.pop %v1126
      %v1191 = vrcp.pop %v1127
      %v1192 = vrcp.pop %v1128
      %v1193 = vrcp.pop %v1129
      %v1194 = vrcp.pop %v1130
      %v1195 = vrcp.pop %v1131
      %v1196 = vrcp.pop %v1132
      %v1197 = vrcp.pop %v1133
      %v1198 = vrcp.pop %v1134
      %v1199 = vrcp.pop %v1135
      %v1200 = vrcp.pop %v1136
      %v1201 = vrcp.pop %v1137
      %vm1202 = vcmask 7168
      %1203 = vst.msk [vmem:[%s230] sm:$0xff] %vm1202, %v1138
      %1204 = vst.msk [vmem:[%s230 + $0x8] sm:$0xff] %vm1202, %v1139
      %1205 = vst.msk [vmem:[%s230 + $0x10] sm:$0xff] %vm1202, %v1140
      %1206 = vst.msk [vmem:[%s230 + $0x18] sm:$0xff] %vm1202, %v1141
      %1207 = vst.msk [vmem:[%s230 + $0x20] sm:$0xff] %vm1202, %v1142
      %1208 = vst.msk [vmem:[%s230 + $0x28] sm:$0xff] %vm1202, %v1143
      %1209 = vst.msk [vmem:[%s230 + $0x30] sm:$0xff] %vm1202, %v1144
      %1210 = vst.msk [vmem:[%s230 + $0x38] sm:$0xff] %vm1202, %v1145
      %1211 = vst.msk [vmem:[%s230 + $0x40] sm:$0xff] %vm1202, %v1146
      %1212 = vst.msk [vmem:[%s230 + $0x48] sm:$0xff] %vm1202, %v1147
      %1213 = vst.msk [vmem:[%s230 + $0x50] sm:$0xff] %vm1202, %v1148
      %1214 = vst.msk [vmem:[%s230 + $0x58] sm:$0xff] %vm1202, %v1149
      %1215 = vst.msk [vmem:[%s230 + $0x60] sm:$0xff] %vm1202, %v1150
      %1216 = vst.msk [vmem:[%s230 + $0x68] sm:$0xff] %vm1202, %v1151
      %1217 = vst.msk [vmem:[%s230 + $0x70] sm:$0xff] %vm1202, %v1152
      %1218 = vst.msk [vmem:[%s230 + $0x78] sm:$0xff] %vm1202, %v1153
      %1219 = vst.msk [vmem:[%s230 + $0x80] sm:$0xff] %vm1202, %v1154
      %1220 = vst.msk [vmem:[%s230 + $0x88] sm:$0xff] %vm1202, %v1155
      %1221 = vst.msk [vmem:[%s230 + $0x90] sm:$0xff] %vm1202, %v1156
      %1222 = vst.msk [vmem:[%s230 + $0x98] sm:$0xff] %vm1202, %v1157
      %1223 = vst.msk [vmem:[%s230 + $0xa0] sm:$0xff] %vm1202, %v1158
      %1224 = vst.msk [vmem:[%s230 + $0xa8] sm:$0xff] %vm1202, %v1159
      %1225 = vst.msk [vmem:[%s230 + $0xb0] sm:$0xff] %vm1202, %v1160
      %1226 = vst.msk [vmem:[%s230 + $0xb8] sm:$0xff] %vm1202, %v1161
      %1227 = vst.msk [vmem:[%s230 + $0xc0] sm:$0xff] %vm1202, %v1162
      %1228 = vst.msk [vmem:[%s230 + $0xc8] sm:$0xff] %vm1202, %v1163
      %1229 = vst.msk [vmem:[%s230 + $0xd0] sm:$0xff] %vm1202, %v1164
      %1230 = vst.msk [vmem:[%s230 + $0xd8] sm:$0xff] %vm1202, %v1165
      %1231 = vst.msk [vmem:[%s230 + $0xe0] sm:$0xff] %vm1202, %v1166
      %1232 = vst.msk [vmem:[%s230 + $0xe8] sm:$0xff] %vm1202, %v1167
      %1233 = vst.msk [vmem:[%s230 + $0xf0] sm:$0xff] %vm1202, %v1168
      %1234 = vst.msk [vmem:[%s230 + $0xf8] sm:$0xff] %vm1202, %v1169
      %1235 = vst.msk [vmem:[%s230 + $0x100] sm:$0xff] %vm1202, %v1170
      %1236 = vst.msk [vmem:[%s230 + $0x108] sm:$0xff] %vm1202, %v1171
      %1237 = vst.msk [vmem:[%s230 + $0x110] sm:$0xff] %vm1202, %v1172
      %1238 = vst.msk [vmem:[%s230 + $0x118] sm:$0xff] %vm1202, %v1173
      %1239 = vst.msk [vmem:[%s230 + $0x120] sm:$0xff] %vm1202, %v1174
      %1240 = vst.msk [vmem:[%s230 + $0x128] sm:$0xff] %vm1202, %v1175
      %1241 = vst.msk [vmem:[%s230 + $0x130] sm:$0xff] %vm1202, %v1176
      %1242 = vst.msk [vmem:[%s230 + $0x138] sm:$0xff] %vm1202, %v1177
      %1243 = vst.msk [vmem:[%s230 + $0x140] sm:$0xff] %vm1202, %v1178
      %1244 = vst.msk [vmem:[%s230 + $0x148] sm:$0xff] %vm1202, %v1179
      %1245 = vst.msk [vmem:[%s230 + $0x150] sm:$0xff] %vm1202, %v1180
      %1246 = vst.msk [vmem:[%s230 + $0x158] sm:$0xff] %vm1202, %v1181
      %1247 = vst.msk [vmem:[%s230 + $0x160] sm:$0xff] %vm1202, %v1182
      %1248 = vst.msk [vmem:[%s230 + $0x168] sm:$0xff] %vm1202, %v1183
      %1249 = vst.msk [vmem:[%s230 + $0x170] sm:$0xff] %vm1202, %v1184
      %1250 = vst.msk [vmem:[%s230 + $0x178] sm:$0xff] %vm1202, %v1185
      %1251 = vst.msk [vmem:[%s230 + $0x180] sm:$0xff] %vm1202, %v1186
      %1252 = vst.msk [vmem:[%s230 + $0x188] sm:$0xff] %vm1202, %v1187
      %1253 = vst.msk [vmem:[%s230 + $0x190] sm:$0xff] %vm1202, %v1188
      %1254 = vst.msk [vmem:[%s230 + $0x198] sm:$0xff] %vm1202, %v1189
      %1255 = vst.msk [vmem:[%s230 + $0x1a0] sm:$0xff] %vm1202, %v1190
      %1256 = vst.msk [vmem:[%s230 + $0x1a8] sm:$0xff] %vm1202, %v1191
      %1257 = vst.msk [vmem:[%s230 + $0x1b0] sm:$0xff] %vm1202, %v1192
      %1258 = vst.msk [vmem:[%s230 + $0x1b8] sm:$0xff] %vm1202, %v1193
      %1259 = vst.msk [vmem:[%s230 + $0x1c0] sm:$0xff] %vm1202, %v1194
      %1260 = vst.msk [vmem:[%s230 + $0x1c8] sm:$0xff] %vm1202, %v1195
      %1261 = vst.msk [vmem:[%s230 + $0x1d0] sm:$0xff] %vm1202, %v1196
      %1262 = vst.msk [vmem:[%s230 + $0x1d8] sm:$0xff] %vm1202, %v1197
      %1263 = vst.msk [vmem:[%s230 + $0x1e0] sm:$0xff] %vm1202, %v1198
      %1264 = vst.msk [vmem:[%s230 + $0x1e8] sm:$0xff] %vm1202, %v1199
      %1265 = vst.msk [vmem:[%s230 + $0x1f0] sm:$0xff] %vm1202, %v1200
      %1266 = vst.msk [vmem:[%s230 + $0x1f8] sm:$0xff] %vm1202, %v1201
      %s1267 = smul.u32 64, %s21
      %p1268 = scmp.lt.s32.totalorder %s20, 7
      %s1269 = scalar_select %p1268, %s20, 7
      %p1270 = scmp.lt.s32.totalorder %s1267, 63
      %s1271 = scalar_select %p1270, %s1267, 63
      %s1272 = smul.addr %s1269, 64
      %s1273 = sadd.s32 %s1271, %s1272
      %s1274 = smul.addr %s1273, 8
      %s1275 = scalar_lea.vmem %s3, %s1274
      // Predicated region
      $region33: #{autoencoder3d_forward.11} parent=31 // pred_check
        %p1276 = pneg %p123
      $region34: #{autoencoder3d_forward.11} parent=31 // pred_check_branch
        %1278 = sbr.rel (%p1276) target = $region36
      $region35: #{autoencoder3d_forward.11} parent=31 // pred_region
        %s1279 = smul.u32 64, %s21
      $region36: #{autoencoder3d_forward.11} parent=31 // pred_fallthru
        _
    $region32: #{autoencoder3d_forward.11} parent=5 // pred_fallthru
      _
    %p1280 = scmp.le.s32.totalorder 2, %s11
    // Predicated region
    $region37: #{autoencoder3d_forward.11} parent=5 // pred_check
      %p1281 = pneg %p1280
    $region38: #{autoencoder3d_forward.11} parent=5 // pred_check_branch
      %1283 = sbr.rel (%p1281) target = $region40
    $region39: #{autoencoder3d_forward.11} parent=5 // pred_region
      %s1284 = ssub.s32 %s11, 2
      // Predicated region
      $region41: #{autoencoder3d_forward.11} parent=39 // pred_check
        %p1285 = pneg %p129
      $region42: #{autoencoder3d_forward.11} parent=39 // pred_check_branch
        %1287 = sbr.rel (%p1285) target = $region44
      $region43: #{autoencoder3d_forward.11} parent=39 // pred_region
        %s1288 = smul.u32 64, %s23
        %p1289 = scmp.lt.s32.totalorder %s22, 7
        %s1290 = scalar_select %p1289, %s22, 7
        %p1291 = scmp.lt.s32.totalorder %s1288, 63
        %s1292 = scalar_select %p1291, %s1288, 63
        %s1293 = smul.addr %s1290, 64
        %s1294 = sadd.s32 %s1292, %s1293
        %s1295 = smul.addr %s1294, 8
        %s1296 = scalar_lea.vmem %s3, %s1295
      $region44: #{autoencoder3d_forward.11} parent=39 // pred_fallthru
        _
    $region40: #{autoencoder3d_forward.11} parent=5 // pred_fallthru
      _
  $region6: #{autoencoder3d_forward.11} parent=0 // loop_footer
    %s15 = sadd.s32 1, %s11
  $region7: #{autoencoder3d_forward.11} parent=0 // loop_footer_branch
    %10 = sbr.rel target = $region3
  $region8: #{autoencoder3d_forward.11} parent=0 // loop_exit
    _

</llo_original>
